<compile_context>
chip_gen: v5e
topology: v5e:2x2
jax: 0.10.0
libtpu: 0.0.40
codegen_flags: <defaults>
</compile_context>

<pallas_src>
import functools

import jax
import jax.numpy as jnp
from jax.experimental import pallas as pl
from jax.experimental.pallas import tpu as pltpu


# ----------------------------- Pallas kernel -------------------------------

def _ocr_kernel(in_channels, key_channels, cout_pad, use_approx_recip,
                x_ref, p_ref,
                wp1_ref, wp2_ref,           # f_pixel (stage1, stage2*scale)
                wpo_ref,                    # fused [f_object stage1 | f_down]
                wo2_ref,                    # f_object stage2
                wu_ref,                     # f_up
                wf_ref,                     # final conv_bn, rows = [ctx ; x]
                bias_ref,                   # (6, bw) bias slab, f32
                out_ref):
    f32 = jnp.float32
    C, Kc = in_channels, key_channels
    Nb, T, _ = x_ref.shape
    M = p_ref.shape[1]
    cdt = x_ref.dtype          # MXU operand dtype (f32 or bf16)
    relu = lambda v: jnp.maximum(v, 0.0)

    # biases (stay f32; VPU epilogue is f32 on all generations)
    bp1 = bias_ref[0, :Kc]
    bp2 = bias_ref[1, :Kc]          # attention scale already folded in
    bpo = bias_ref[2, :2 * Kc]
    bo2 = bias_ref[3, :Kc]
    bu = bias_ref[4, :C]
    bfc = bias_ref[5, :cout_pad]

    x = x_ref[...].reshape(Nb * T, C)       # (Nb*T, C), compute dtype
    p = p_ref[...].reshape(Nb * M, C)       # (Nb*M, C), compute dtype

    # f_pixel(x): two folded conv+BN+ReLU stages (scale folded into stage 2)
    q = relu(jnp.dot(x, wp1_ref[...], preferred_element_type=f32) + bp1)
    q = relu(jnp.dot(q.astype(cdt), wp2_ref[...],
                     preferred_element_type=f32) + bp2)          # (Nb*T, Kc)

    # fused f_object stage-1 | f_down on proxy: one matmul, then slice
    kv = relu(jnp.dot(p, wpo_ref[...], preferred_element_type=f32) + bpo)
    k = relu(jnp.dot(kv[:, :Kc].astype(cdt), wo2_ref[...],
                     preferred_element_type=f32) + bo2)          # (Nb*M, Kc)
    v = kv[:, Kc:]                                               # (Nb*M, Kc)

    q3 = q.reshape(Nb, T, Kc).astype(cdt)
    k3 = k.reshape(Nb, M, Kc).astype(cdt)
    v3 = v.reshape(Nb, M, Kc).astype(cdt)

    # sim = q @ k^T with contraction on the last dims (no explicit transpose)
    sim = jnp.einsum("bqc,bkc->bqk", q3, k3,
                     preferred_element_type=f32)                 # (Nb, T, M)
    sim = sim - jnp.max(sim, axis=-1, keepdims=True)
    e = jnp.exp(sim)
    denom = jnp.sum(e, axis=-1, keepdims=True)
    if use_approx_recip:
        attn = e * pl.reciprocal(denom, approx=True)             # EUP slot
    else:
        attn = e / denom

    ctx = jnp.einsum("bqk,bkc->bqc", attn.astype(cdt), v3,
                     preferred_element_type=f32)                 # (Nb, T, Kc)

    # f_up(context)
    ctx_up = relu(jnp.dot(ctx.reshape(Nb * T, Kc).astype(cdt), wu_ref[...],
                          preferred_element_type=f32) + bu)      # (Nb*T, C)

    # final conv_bn on cat([context, feats]) WITHOUT materializing the concat:
    # two MXU pushes summed into one f32 accumulator.
    wf = wf_ref[...]                                             # (2C, cout_pad)
    out = jnp.dot(ctx_up.astype(cdt), wf[:C, :], preferred_element_type=f32)
    out = out + jnp.dot(x, wf[C:, :], preferred_element_type=f32)
    out = relu(out + bfc)                                        # (Nb*T, cout_pad)

    out_ref[...] = out.reshape(Nb, T, cout_pad).astype(out_ref.dtype)


# ----------------------- host-side parameter packing ------------------------

def fold_conv_bn(w_oi, gamma, beta, mean, var, eps=1e-5):
    """Fold 1x1 conv (weight (Cout, Cin), no bias) + BatchNorm2d (eval) into
    a matmul weight (Cin, Cout) and bias (1, Cout)."""
    s = gamma / jnp.sqrt(var + eps)
    w_eff = (w_oi * s[:, None]).T
    b_eff = (beta - mean * s)[None, :]
    return w_eff.astype(jnp.float32), b_eff.astype(jnp.float32)


def prepare_kernel_params(params, in_channels, key_channels, out_channels,
                          compute_dtype):
    """Fold scale, fuse proxy-side projections, pad the final weight to a
    lane-dense output width, and pack biases into one slab."""
    (wp1, bp1, wp2, bp2, wo1, bo1, wo2, bo2, wd, bd, wu, bu, wf, bf) = params
    C, Kc = in_channels, key_channels
    f32 = jnp.float32

    # fold attention scale (positive) into f_pixel stage 2: relu(s*z)=s*relu(z)
    scale = float(key_channels) ** (-0.5)
    wp2s, bp2s = wp2 * scale, bp2 * scale

    # fuse f_object stage-1 and f_down (both consume proxy)
    w_po = jnp.concatenate([wo1, wd], axis=1)          # (C, 2Kc)
    b_po = jnp.concatenate([bo1, bd], axis=1)          # (1, 2Kc)

    # pad the final conv to a 128-multiple output width (lane-dense stores)
    cout_pad = ((out_channels + 127) // 128) * 128
    wf_p = jnp.zeros((2 * C, cout_pad), f32).at[:, :out_channels].set(wf)
    bf_p = jnp.zeros((1, cout_pad), f32).at[:, :out_channels].set(bf)

    # pack all biases into one (6, bw) f32 slab
    bw = max(128, cout_pad, C, 2 * Kc)

    def pad_row(b):
        return jnp.zeros((1, bw), f32).at[:, :b.shape[1]].set(b)

    bias_slab = jnp.concatenate(
        [pad_row(bp1), pad_row(bp2s), pad_row(b_po),
         pad_row(bo2), pad_row(bu), pad_row(bf_p)], axis=0)

    weights = [w.astype(compute_dtype)
               for w in (wp1, wp2s, w_po, wo2, wu, wf_p)]
    return weights, bias_slab, cout_pad


# ------------------------------- wrapper ------------------------------------

def spatial_ocr_pallas(x_tok, p_tok, params, in_channels, key_channels,
                       out_channels, *, block_n=None, block_hw=None,
                       compute_dtype=jnp.float32, use_approx_recip=True):
    """x_tok: (N, HW, C) f32, p_tok: (N, M, C) f32 -> (N, HW, out_channels)."""
    N, HW, C = x_tok.shape
    _, M, _ = p_tok.shape
    assert C == in_channels

    block_n = N if block_n is None else block_n
    block_hw = HW if block_hw is None else block_hw
    assert N % block_n == 0 and HW % block_hw == 0 and block_hw % 8 == 0

    weights, bias_slab, cout_pad = prepare_kernel_params(
        params, C, key_channels, out_channels, compute_dtype)

    x_c = x_tok.astype(compute_dtype)
    p_c = p_tok.astype(compute_dtype)

    grid = (N // block_n, HW // block_hw)

    def full_spec(arr):
        nd = arr.ndim
        return pl.BlockSpec(arr.shape, lambda n, h, _nd=nd: (0,) * _nd)

    in_specs = [
        pl.BlockSpec((block_n, block_hw, C), lambda n, h: (n, h, 0)),
        pl.BlockSpec((block_n, M, C), lambda n, h: (n, 0, 0)),
    ] + [full_spec(w) for w in weights] + [full_spec(bias_slab)]

    out_spec = pl.BlockSpec((block_n, block_hw, cout_pad),
                            lambda n, h: (n, h, 0))

    kernel = functools.partial(_ocr_kernel, C, key_channels, cout_pad,
                               use_approx_recip)

    out_padded = pl.pallas_call(
        kernel,
        grid=grid,
        in_specs=in_specs,
        out_specs=out_spec,
        out_shape=jax.ShapeDtypeStruct((N, HW, cout_pad), jnp.float32),
        compiler_params=pltpu.CompilerParams(
            dimension_semantics=("parallel", "parallel"),
            vmem_limit_bytes=48 * 1024 * 1024),   # fits v7x's 64 MiB VMEM/TC
    )(x_c, p_c, *weights, bias_slab)

    return out_padded[:, :, :out_channels]


# ------------------------ parameter setup (random) ---------------------------

def make_params(key, in_channels, key_channels, out_channels):
    keys = jax.random.split(key, 7)

    def conv_bn(k, cin, cout):
        k1, k2, k3, k4, k5 = jax.random.split(k, 5)
        w = 0.2 * jax.random.normal(k1, (cout, cin), jnp.float32)
        gamma = 1.0 + 0.1 * jax.random.normal(k2, (cout,), jnp.float32)
        beta = 0.1 * jax.random.normal(k3, (cout,), jnp.float32)
        mean = 0.1 * jax.random.normal(k4, (cout,), jnp.float32)
        var = jnp.abs(1.0 + 0.1 * jax.random.normal(k5, (cout,), jnp.float32))
        return fold_conv_bn(w, gamma, beta, mean, var)

    wp1, bp1 = conv_bn(keys[0], in_channels, key_channels)    # f_pixel stage 1
    wp2, bp2 = conv_bn(keys[1], key_channels, key_channels)   # f_pixel stage 2
    wo1, bo1 = conv_bn(keys[2], in_channels, key_channels)    # f_object stage 1
    wo2, bo2 = conv_bn(keys[3], key_channels, key_channels)   # f_object stage 2
    wd, bd = conv_bn(keys[4], in_channels, key_channels)      # f_down
    wu, bu = conv_bn(keys[5], key_channels, in_channels)      # f_up
    wf, bf = conv_bn(keys[6], 2 * in_channels, out_channels)  # conv_bn_dropout

    return (wp1, bp1, wp2, bp2, wo1, bo1, wo2, bo2, wd, bd, wu, bu, wf, bf)


# ------------------------------ pure-JAX ref --------------------------------

def reference(x_tok, p_tok, params, key_channels):
    (wp1, bp1, wp2, bp2, wo1, bo1, wo2, bo2, wd, bd, wu, bu, wf, bf) = params
    relu = lambda v: jnp.maximum(v, 0.0)
    q = relu(relu(x_tok @ wp1 + bp1) @ wp2 + bp2)
    k = relu(relu(p_tok @ wo1 + bo1) @ wo2 + bo2)
    v = relu(p_tok @ wd + bd)
    sim = jnp.einsum("nqc,nkc->nqk", q, k) * (key_channels ** -0.5)
    attn = jax.nn.softmax(sim, axis=-1)
    ctx = jnp.einsum("nqk,nkc->nqc", attn, v)
    ctx_up = relu(ctx @ wu + bu)
    cat = jnp.concatenate([ctx_up, x_tok], axis=-1)
    return relu(cat @ wf + bf)


# ---------------------------------- main ------------------------------------

if __name__ == "__main__":
    in_channels = 32
    key_channels = 16
    out_channels = 32
    N, H, W = 2, 16, 16         # feats spatial
    Hp, Wp = 8, 8               # proxy spatial

    root = jax.random.PRNGKey(0)
    k_feat, k_proxy, k_par = jax.random.split(root, 3)

    # PyTorch-style NCHW inputs
    feats = jax.random.normal(k_feat, (N, in_channels, H, W), jnp.float32)
    proxy = jax.random.normal(k_proxy, (N, in_channels, Hp, Wp), jnp.float32)

    # NCHW -> (N, tokens, C)
    x_tok = jnp.transpose(feats.reshape(N, in_channels, H * W), (0, 2, 1))
    p_tok = jnp.transpose(proxy.reshape(N, in_channels, Hp * Wp), (0, 2, 1))

    params = make_params(k_par, in_channels, key_channels, out_channels)
    ref = reference(x_tok, p_tok, params, key_channels)

    # 1) strict path: f32 MXU operands, exact softmax divide (verifies all the
    #    algebraic refactors: scale fold, proxy fusion, concat-free final conv)
    out_f32 = spatial_ocr_pallas(
        x_tok, p_tok, params, in_channels, key_channels, out_channels,
        block_n=N, block_hw=128,
        compute_dtype=jnp.float32, use_approx_recip=False)
    out_f32 = jax.block_until_ready(out_f32)
    assert out_f32.shape == (N, H * W, out_channels)
    assert jnp.allclose(out_f32, ref, atol=1e-4, rtol=1e-4), "f32 mismatch"

    # 2) optimized path (v6e/v7x-style): bf16 MXU operands + approx-reciprocal
    #    softmax; loose tolerance due to bf16 operand quantization.
    out_bf16 = spatial_ocr_pallas(
        x_tok, p_tok, params, in_channels, key_channels, out_channels,
        block_n=N, block_hw=128,
        compute_dtype=jnp.bfloat16, use_approx_recip=True)
    out_bf16 = jax.block_until_ready(out_bf16)
    max_err = float(jnp.max(jnp.abs(out_bf16 - ref)))
    assert max_err < 0.25, f"bf16 path error too large: {max_err}"

    # back to NCHW like the PyTorch module output
    out_nchw = jnp.transpose(out_f32, (0, 2, 1)).reshape(
        N, out_channels, H, W)
    out_nchw = jax.block_until_ready(out_nchw)
    assert out_nchw.shape == (N, out_channels, H, W)

    print("KERNEL_OK")
</pallas_src>

<mosaic_0001>
module attributes {stable_mosaic.version = 11 : i64} {
  func.func @_ocr_kernel(%arg0: i32, %arg1: i32, %arg2: memref<2x128x32xf32, #tpu.memory_space<vmem>>, %arg3: memref<2x64x32xf32, #tpu.memory_space<vmem>>, %arg4: memref<32x16xf32, #tpu.memory_space<vmem>>, %arg5: memref<16x16xf32, #tpu.memory_space<vmem>>, %arg6: memref<32x32xf32, #tpu.memory_space<vmem>>, %arg7: memref<16x16xf32, #tpu.memory_space<vmem>>, %arg8: memref<16x32xf32, #tpu.memory_space<vmem>>, %arg9: memref<64x128xf32, #tpu.memory_space<vmem>>, %arg10: memref<6x128xf32, #tpu.memory_space<vmem>>, %arg11: memref<2x128x128xf32, #tpu.memory_space<vmem>>) attributes {dimension_semantics = [#tpu.dimension_semantics<parallel>, #tpu.dimension_semantics<parallel>], iteration_bounds = array<i64: 1, 2>, scalar_prefetch = 0 : i64, scratch_operands = 0 : i64, tpu.core_type = #tpu.core_type<tc>, window_params = [{transform_indices = @transform_0, window_bounds = array<i64: 2, 128, 32>}, {transform_indices = @transform_1, window_bounds = array<i64: 2, 64, 32>}, {pipeline_mode = #tpu.pipeline_mode<synchronous>, transform_indices = @transform_2, window_bounds = array<i64: 32, 16>}, {pipeline_mode = #tpu.pipeline_mode<synchronous>, transform_indices = @transform_3, window_bounds = array<i64: 16, 16>}, {pipeline_mode = #tpu.pipeline_mode<synchronous>, transform_indices = @transform_4, window_bounds = array<i64: 32, 32>}, {pipeline_mode = #tpu.pipeline_mode<synchronous>, transform_indices = @transform_5, window_bounds = array<i64: 16, 16>}, {pipeline_mode = #tpu.pipeline_mode<synchronous>, transform_indices = @transform_6, window_bounds = array<i64: 16, 32>}, {pipeline_mode = #tpu.pipeline_mode<synchronous>, transform_indices = @transform_7, window_bounds = array<i64: 64, 128>}, {pipeline_mode = #tpu.pipeline_mode<synchronous>, transform_indices = @transform_8, window_bounds = array<i64: 6, 128>}, {transform_indices = @transform_9, window_bounds = array<i64: 2, 128, 128>}]} {
    %c0 = arith.constant 0 : index
    %c0_0 = arith.constant 0 : index
    %0 = vector.load %arg10[%c0, %c0_0] : memref<6x128xf32, #tpu.memory_space<vmem>>, vector<1x16xf32>
    %1 = vector.shape_cast %0 : vector<1x16xf32> to vector<16xf32>
    %c1 = arith.constant 1 : index
    %c0_1 = arith.constant 0 : index
    %2 = vector.load %arg10[%c1, %c0_1] : memref<6x128xf32, #tpu.memory_space<vmem>>, vector<1x16xf32>
    %3 = vector.shape_cast %2 : vector<1x16xf32> to vector<16xf32>
    %c2 = arith.constant 2 : index
    %c0_2 = arith.constant 0 : index
    %4 = vector.load %arg10[%c2, %c0_2] : memref<6x128xf32, #tpu.memory_space<vmem>>, vector<1x32xf32>
    %5 = vector.shape_cast %4 : vector<1x32xf32> to vector<32xf32>
    %c3 = arith.constant 3 : index
    %c0_3 = arith.constant 0 : index
    %6 = vector.load %arg10[%c3, %c0_3] : memref<6x128xf32, #tpu.memory_space<vmem>>, vector<1x16xf32>
    %7 = vector.shape_cast %6 : vector<1x16xf32> to vector<16xf32>
    %c4 = arith.constant 4 : index
    %c0_4 = arith.constant 0 : index
    %8 = vector.load %arg10[%c4, %c0_4] : memref<6x128xf32, #tpu.memory_space<vmem>>, vector<1x32xf32>
    %9 = vector.shape_cast %8 : vector<1x32xf32> to vector<32xf32>
    %c5 = arith.constant 5 : index
    %c0_5 = arith.constant 0 : index
    %10 = vector.load %arg10[%c5, %c0_5] : memref<6x128xf32, #tpu.memory_space<vmem>>, vector<1x128xf32>
    %11 = vector.shape_cast %10 : vector<1x128xf32> to vector<128xf32>
    %c0_6 = arith.constant 0 : index
    %c0_7 = arith.constant 0 : index
    %c0_8 = arith.constant 0 : index
    %12 = vector.load %arg2[%c0_6, %c0_7, %c0_8] : memref<2x128x32xf32, #tpu.memory_space<vmem>>, vector<2x128x32xf32>
    %13 = vector.shape_cast %12 : vector<2x128x32xf32> to vector<256x32xf32>
    %c0_9 = arith.constant 0 : index
    %c0_10 = arith.constant 0 : index
    %c0_11 = arith.constant 0 : index
    %14 = vector.load %arg3[%c0_9, %c0_10, %c0_11] : memref<2x64x32xf32, #tpu.memory_space<vmem>>, vector<2x64x32xf32>
    %15 = vector.shape_cast %14 : vector<2x64x32xf32> to vector<128x32xf32>
    %c0_12 = arith.constant 0 : index
    %c0_13 = arith.constant 0 : index
    %16 = vector.load %arg4[%c0_12, %c0_13] : memref<32x16xf32, #tpu.memory_space<vmem>>, vector<32x16xf32>
    %cst = arith.constant dense<0.000000e+00> : vector<256x16xf32>
    %17 = tpu.matmul %13, %16, %cst {dimension_numbers = #tpu.dot_dimension_numbers<[1], [0], [0], [1], [0, 0, 1, 1], [], []>} : vector<256x32xf32>, vector<32x16xf32>, vector<256x16xf32> -> vector<256x16xf32>
    %18 = vector.shape_cast %1 : vector<16xf32> to vector<1x16xf32>
    %19 = vector.broadcast %18 : vector<1x16xf32> to vector<256x16xf32>
    %20 = arith.addf %17, %19 : vector<256x16xf32>
    %cst_14 = arith.constant 0.000000e+00 : f32
    %21 = vector.broadcast %cst_14 : f32 to vector<256x16xf32>
    %22 = arith.maximumf %20, %21 : vector<256x16xf32>
    %c0_15 = arith.constant 0 : index
    %c0_16 = arith.constant 0 : index
    %23 = vector.load %arg5[%c0_15, %c0_16] : memref<16x16xf32, #tpu.memory_space<vmem>>, vector<16x16xf32>
    %cst_17 = arith.constant dense<0.000000e+00> : vector<256x16xf32>
    %24 = tpu.matmul %22, %23, %cst_17 {dimension_numbers = #tpu.dot_dimension_numbers<[1], [0], [0], [1], [0, 0, 1, 1], [], []>} : vector<256x16xf32>, vector<16x16xf32>, vector<256x16xf32> -> vector<256x16xf32>
    %25 = vector.shape_cast %3 : vector<16xf32> to vector<1x16xf32>
    %26 = vector.broadcast %25 : vector<1x16xf32> to vector<256x16xf32>
    %27 = arith.addf %24, %26 : vector<256x16xf32>
    %cst_18 = arith.constant 0.000000e+00 : f32
    %28 = vector.broadcast %cst_18 : f32 to vector<256x16xf32>
    %29 = arith.maximumf %27, %28 : vector<256x16xf32>
    %c0_19 = arith.constant 0 : index
    %c0_20 = arith.constant 0 : index
    %30 = vector.load %arg6[%c0_19, %c0_20] : memref<32x32xf32, #tpu.memory_space<vmem>>, vector<32x32xf32>
    %cst_21 = arith.constant dense<0.000000e+00> : vector<128x32xf32>
    %31 = tpu.matmul %15, %30, %cst_21 {dimension_numbers = #tpu.dot_dimension_numbers<[1], [0], [0], [1], [0, 0, 1, 1], [], []>} : vector<128x32xf32>, vector<32x32xf32>, vector<128x32xf32> -> vector<128x32xf32>
    %32 = vector.shape_cast %5 : vector<32xf32> to vector<1x32xf32>
    %33 = vector.broadcast %32 : vector<1x32xf32> to vector<128x32xf32>
    %34 = arith.addf %31, %33 : vector<128x32xf32>
    %cst_22 = arith.constant 0.000000e+00 : f32
    %35 = vector.broadcast %cst_22 : f32 to vector<128x32xf32>
    %36 = arith.maximumf %34, %35 : vector<128x32xf32>
    %37 = vector.extract_strided_slice %36 {offsets = [0, 0], sizes = [128, 16], strides = [1, 1]} : vector<128x32xf32> to vector<128x16xf32>
    %c0_23 = arith.constant 0 : index
    %c0_24 = arith.constant 0 : index
    %38 = vector.load %arg7[%c0_23, %c0_24] : memref<16x16xf32, #tpu.memory_space<vmem>>, vector<16x16xf32>
    %cst_25 = arith.constant dense<0.000000e+00> : vector<128x16xf32>
    %39 = tpu.matmul %37, %38, %cst_25 {dimension_numbers = #tpu.dot_dimension_numbers<[1], [0], [0], [1], [0, 0, 1, 1], [], []>} : vector<128x16xf32>, vector<16x16xf32>, vector<128x16xf32> -> vector<128x16xf32>
    %40 = vector.shape_cast %7 : vector<16xf32> to vector<1x16xf32>
    %41 = vector.broadcast %40 : vector<1x16xf32> to vector<128x16xf32>
    %42 = arith.addf %39, %41 : vector<128x16xf32>
    %cst_26 = arith.constant 0.000000e+00 : f32
    %43 = vector.broadcast %cst_26 : f32 to vector<128x16xf32>
    %44 = arith.maximumf %42, %43 : vector<128x16xf32>
    %45 = vector.extract_strided_slice %36 {offsets = [0, 16], sizes = [128, 16], strides = [1, 1]} : vector<128x32xf32> to vector<128x16xf32>
    %46 = vector.shape_cast %29 : vector<256x16xf32> to vector<2x128x16xf32>
    %47 = vector.shape_cast %44 : vector<128x16xf32> to vector<2x64x16xf32>
    %48 = vector.shape_cast %45 : vector<128x16xf32> to vector<2x64x16xf32>
    "tpu.trace_start"() <{level = 10 : i32, message = "bqc,bkc->bqk"}> : () -> ()
    %cst_27 = arith.constant dense<0.000000e+00> : vector<2x128x64xf32>
    %49 = tpu.matmul %46, %47, %cst_27 {dimension_numbers = #tpu.dot_dimension_numbers<[2], [2], [1], [1], [0, 0, 0, 1, 1, 1], [0], [0]>} : vector<2x128x16xf32>, vector<2x64x16xf32>, vector<2x128x64xf32> -> vector<2x128x64xf32>
    "tpu.trace_stop"() : () -> ()
    %cst_28 = arith.constant dense<0xFF800000> : vector<2x128xf32>
    %50 = vector.multi_reduction <maximumf>, %49, %cst_28 [2] : vector<2x128x64xf32> to vector<2x128xf32>
    %51 = vector.shape_cast %50 : vector<2x128xf32> to vector<2x128x1xf32>
    %52 = vector.broadcast %51 : vector<2x128x1xf32> to vector<2x128x64xf32>
    %53 = arith.subf %49, %52 : vector<2x128x64xf32>
    %54 = math.exp %53 : vector<2x128x64xf32>
    %cst_29 = arith.constant dense<0.000000e+00> : vector<2x128xf32>
    %55 = vector.multi_reduction <add>, %54, %cst_29 [2] : vector<2x128x64xf32> to vector<2x128xf32>
    %56 = vector.shape_cast %55 : vector<2x128xf32> to vector<2x128x1xf32>
    %57 = vector.broadcast %56 : vector<2x128x1xf32> to vector<2x128x64xf32>
    %58 = arith.divf %54, %57 : vector<2x128x64xf32>
    "tpu.trace_start"() <{level = 10 : i32, message = "bqk,bkc->bqc"}> : () -> ()
    %cst_30 = arith.constant dense<0.000000e+00> : vector<2x128x16xf32>
    %59 = tpu.matmul %58, %48, %cst_30 {dimension_numbers = #tpu.dot_dimension_numbers<[2], [1], [1], [2], [0, 0, 0, 1, 1, 2], [0], [0]>} : vector<2x128x64xf32>, vector<2x64x16xf32>, vector<2x128x16xf32> -> vector<2x128x16xf32>
    "tpu.trace_stop"() : () -> ()
    %60 = vector.shape_cast %59 : vector<2x128x16xf32> to vector<256x16xf32>
    %c0_31 = arith.constant 0 : index
    %c0_32 = arith.constant 0 : index
    %61 = vector.load %arg8[%c0_31, %c0_32] : memref<16x32xf32, #tpu.memory_space<vmem>>, vector<16x32xf32>
    %cst_33 = arith.constant dense<0.000000e+00> : vector<256x32xf32>
    %62 = tpu.matmul %60, %61, %cst_33 {dimension_numbers = #tpu.dot_dimension_numbers<[1], [0], [0], [1], [0, 0, 1, 1], [], []>} : vector<256x16xf32>, vector<16x32xf32>, vector<256x32xf32> -> vector<256x32xf32>
    %63 = vector.shape_cast %9 : vector<32xf32> to vector<1x32xf32>
    %64 = vector.broadcast %63 : vector<1x32xf32> to vector<256x32xf32>
    %65 = arith.addf %62, %64 : vector<256x32xf32>
    %cst_34 = arith.constant 0.000000e+00 : f32
    %66 = vector.broadcast %cst_34 : f32 to vector<256x32xf32>
    %67 = arith.maximumf %65, %66 : vector<256x32xf32>
    %c0_35 = arith.constant 0 : index
    %c0_36 = arith.constant 0 : index
    %68 = vector.load %arg9[%c0_35, %c0_36] : memref<64x128xf32, #tpu.memory_space<vmem>>, vector<64x128xf32>
    %69 = vector.extract_strided_slice %68 {offsets = [0, 0], sizes = [32, 128], strides = [1, 1]} : vector<64x128xf32> to vector<32x128xf32>
    %cst_37 = arith.constant dense<0.000000e+00> : vector<256x128xf32>
    %70 = tpu.matmul %67, %69, %cst_37 {dimension_numbers = #tpu.dot_dimension_numbers<[1], [0], [0], [1], [0, 0, 1, 1], [], []>} : vector<256x32xf32>, vector<32x128xf32>, vector<256x128xf32> -> vector<256x128xf32>
    %71 = vector.extract_strided_slice %68 {offsets = [32, 0], sizes = [32, 128], strides = [1, 1]} : vector<64x128xf32> to vector<32x128xf32>
    %cst_38 = arith.constant dense<0.000000e+00> : vector<256x128xf32>
    %72 = tpu.matmul %13, %71, %cst_38 {dimension_numbers = #tpu.dot_dimension_numbers<[1], [0], [0], [1], [0, 0, 1, 1], [], []>} : vector<256x32xf32>, vector<32x128xf32>, vector<256x128xf32> -> vector<256x128xf32>
    %73 = arith.addf %70, %72 : vector<256x128xf32>
    %74 = vector.shape_cast %11 : vector<128xf32> to vector<1x128xf32>
    %75 = vector.broadcast %74 : vector<1x128xf32> to vector<256x128xf32>
    %76 = arith.addf %73, %75 : vector<256x128xf32>
    %cst_39 = arith.constant 0.000000e+00 : f32
    %77 = vector.broadcast %cst_39 : f32 to vector<256x128xf32>
    %78 = arith.maximumf %76, %77 : vector<256x128xf32>
    %79 = vector.shape_cast %78 : vector<256x128xf32> to vector<2x128x128xf32>
    %c0_40 = arith.constant 0 : index
    %c0_41 = arith.constant 0 : index
    %c0_42 = arith.constant 0 : index
    %80 = vector.load %arg11[%c0_40, %c0_41, %c0_42] : memref<2x128x128xf32, #tpu.memory_space<vmem>>, vector<2x128x128xf32>
    tpu.vector_store %arg11[%c0_40, %c0_41, %c0_42], %79 {strides = array<i32>} : memref<2x128x128xf32, #tpu.memory_space<vmem>>, vector<2x128x128xf32>,
    return
  }
  func.func @transform_0(%arg0: i32, %arg1: i32) -> (i32, i32, i32) {
    %c0_i32 = arith.constant 0 : i32
    %c0_i32_0 = arith.constant 0 : i32
    return %arg0, %arg1, %c0_i32 : i32, i32, i32
  }
  func.func @transform_1(%arg0: i32, %arg1: i32) -> (i32, i32, i32) {
    %c0_i32 = arith.constant 0 : i32
    %c0_i32_0 = arith.constant 0 : i32
    %c0_i32_1 = arith.constant 0 : i32
    return %arg0, %c0_i32, %c0_i32_0 : i32, i32, i32
  }
  func.func @transform_2(%arg0: i32, %arg1: i32) -> (i32, i32) {
    %c0_i32 = arith.constant 0 : i32
    %c0_i32_0 = arith.constant 0 : i32
    %c0_i32_1 = arith.constant 0 : i32
    return %c0_i32, %c0_i32_0 : i32, i32
  }
  func.func @transform_3(%arg0: i32, %arg1: i32) -> (i32, i32) {
    %c0_i32 = arith.constant 0 : i32
    %c0_i32_0 = arith.constant 0 : i32
    %c0_i32_1 = arith.constant 0 : i32
    return %c0_i32, %c0_i32_0 : i32, i32
  }
  func.func @transform_4(%arg0: i32, %arg1: i32) -> (i32, i32) {
    %c0_i32 = arith.constant 0 : i32
    %c0_i32_0 = arith.constant 0 : i32
    %c0_i32_1 = arith.constant 0 : i32
    return %c0_i32, %c0_i32_0 : i32, i32
  }
  func.func @transform_5(%arg0: i32, %arg1: i32) -> (i32, i32) {
    %c0_i32 = arith.constant 0 : i32
    %c0_i32_0 = arith.constant 0 : i32
    %c0_i32_1 = arith.constant 0 : i32
    return %c0_i32, %c0_i32_0 : i32, i32
  }
  func.func @transform_6(%arg0: i32, %arg1: i32) -> (i32, i32) {
    %c0_i32 = arith.constant 0 : i32
    %c0_i32_0 = arith.constant 0 : i32
    %c0_i32_1 = arith.constant 0 : i32
    return %c0_i32, %c0_i32_0 : i32, i32
  }
  func.func @transform_7(%arg0: i32, %arg1: i32) -> (i32, i32) {
    %c0_i32 = arith.constant 0 : i32
    %c0_i32_0 = arith.constant 0 : i32
    %c0_i32_1 = arith.constant 0 : i32
    return %c0_i32, %c0_i32_0 : i32, i32
  }
  func.func @transform_8(%arg0: i32, %arg1: i32) -> (i32, i32) {
    %c0_i32 = arith.constant 0 : i32
    %c0_i32_0 = arith.constant 0 : i32
    %c0_i32_1 = arith.constant 0 : i32
    return %c0_i32, %c0_i32_0 : i32, i32
  }
  func.func @transform_9(%arg0: i32, %arg1: i32) -> (i32, i32, i32) {
    %c0_i32 = arith.constant 0 : i32
    %c0_i32_0 = arith.constant 0 : i32
    return %arg0, %arg1, %c0_i32 : i32, i32, i32
  }
}

</mosaic_0001>

<llo_original>
// kernel: tpu_custom_call.1
$region0: #{tpu_custom_call.1}
  #allocation0 [shape = 'u32[]', space=smem, size = 0x4, offset = 0x4, fixed_abs, tag = 'smem constant byte address 0x4 - core index']
  #allocation1 [shape = 'u32[72,128]{1,0:T(1,128)}', space=vmem, size = 0x9000, scoped, tag = 'internal scratch']
  #allocation5 [shape = 's32[]', space=sflag, size = 0x4, offset = 0, fixed_abs, tag = 'sflag constant byte address 0x0 - dummy sync flag']
  %s0 = inlined_call_operand.vmem [shape: f32[2,256,32], index: 0, kind: input, shape index: {}]
  %s1 = inlined_call_operand.vmem [shape: f32[2,64,32], index: 1, kind: input, shape index: {}]
  %s2 = inlined_call_operand.vmem [shape: f32[32,16], index: 2, kind: input, shape index: {}]
  %s3 = inlined_call_operand.vmem [shape: f32[16,16], index: 3, kind: input, shape index: {}]
  %s4 = inlined_call_operand.vmem [shape: f32[32,32], index: 4, kind: input, shape index: {}]
  %s5 = inlined_call_operand.vmem [shape: f32[16,16], index: 5, kind: input, shape index: {}]
  %s6 = inlined_call_operand.vmem [shape: f32[16,32], index: 6, kind: input, shape index: {}]
  %s7 = inlined_call_operand.vmem [shape: f32[64,128], index: 7, kind: input, shape index: {}]
  %s8 = inlined_call_operand.vmem [shape: f32[6,128], index: 8, kind: input, shape index: {}]
  %s9 = inlined_call_operand.hbm [shape: f32[2,256,128], index: 9, kind: output, shape index: {}]
  %s10 = sld [smem:[#allocation0]]
  $region107: #{tpu_custom_call.1} parent=0
    _
  %s12 = ssub.s32 1, %s10
  %s13 = scalar_select 0, %s12, %s10
  $region1: #{tpu_custom_call.1} parent=0
    #allocation2 [shape = 'u8[262144]{0}', space=vmem, size = 0x40000, scoped, tag = 'input window, operand 0']
    #allocation3 [shape = 'u8[262144]{0}', space=vmem, size = 0x40000, scoped, tag = 'output window, operand 0']
    #allocation4 [shape = 's32[2]{0}', space=sflag, size = 0x8, scoped, tag = 'scoped memory for tpu_custom_call.1']
    %14 = vsyncpa [#allocation4], 0
    %s15 = scalar_lea.sflag [#allocation4], 1
    %16 = vsyncpa %s15, 0
    loop: start=0, step=1, limit=4
    $region2: #{tpu_custom_call.1} parent=1 // loop_pre_header
      _
    $region3: #{tpu_custom_call.1} parent=1 // loop_header
      %s18 = sphi 0, %s22
      %p19 = scmp.ge.s32.totalorder %s18, 4
      %s25 = sphi 0, %s37
      %s26 = sphi 0, %s33
      %s27 = sphi 0, %s25
      %s28 = sphi 0, %s26
      %s29 = sphi 0, %s27
      %s30 = sphi 0, %s28
      %s42 = sphi 0, %s44
      %s45 = sphi 0, %s42
      %s46 = sphi 0, %s45
      %s62 = sphi 0, %s46
      %s68 = sphi 0, %s70
      %s71 = sphi 0, %s68
      %s72 = sphi 0, %s71
      %s88 = sphi 0, %s72
      %s92 = sphi 0, %s92
      %s94 = sphi 0, %s92
      %s95 = sphi 0, %s94
      %s109 = sphi 0, %s95
      %s113 = sphi 0, %s113
      %s115 = sphi 0, %s113
      %s116 = sphi 0, %s115
      %s130 = sphi 0, %s116
      %s134 = sphi 0, %s134
      %s136 = sphi 0, %s134
      %s137 = sphi 0, %s136
      %s151 = sphi 0, %s137
      %s155 = sphi 0, %s155
      %s157 = sphi 0, %s155
      %s158 = sphi 0, %s157
      %s172 = sphi 0, %s158
      %s176 = sphi 0, %s176
      %s178 = sphi 0, %s176
      %s179 = sphi 0, %s178
      %s193 = sphi 0, %s179
      %s197 = sphi 0, %s197
      %s199 = sphi 0, %s197
      %s200 = sphi 0, %s199
      %s214 = sphi 0, %s200
      %s218 = sphi 0, %s218
      %s220 = sphi 0, %s218
      %s221 = sphi 0, %s220
      %s235 = sphi 0, %s221
      %s243 = sphi 0, %s245
      %s246 = sphi 0, %s243
      %s247 = sphi 0, %s246
      %s263 = sphi 0, %s247
    $region4: #{tpu_custom_call.1} parent=1 // loop_header_branch
      %21 = sbr.rel (%p19) target = $region8
    $region5: #{tpu_custom_call.1} parent=1 // loop_body
      %s23 = ssub.s32 %s18, 1
      %s24 = ssub.s32 %s18, 2
      %s31 = sadd.s32 1, %s26
      %p32 = scmp.ge.s32.totalorder %s31, 2
      %s33 = scalar_select %p32, 0, %s31
      %s34 = sadd.s32 1, %s25
      %s35 = scalar_select %p32, %s34, %s25
      %p36 = scmp.ge.s32.totalorder %s35, 1
      %s37 = scalar_select %p36, 0, %s35
      %s38 = ssub.s32 %s25, %s37
      %s39 = ssub.s32 %s26, %s33
      %s40 = sor.u32 %s38, %s39
      %p41 = scmp.eq.s32.totalorder %s40, 0
      %s43 = sadd.s32 %s42, 1
      %s44 = scalar_select %p41, %s42, %s43
      %p47 = pneg %p41
      %p48 = scmp.eq.s32.totalorder %s18, 1
      %p49 = por %p47, %p48
      %p50 = scmp.ne.s32.totalorder %s42, %s45
      %p51 = scmp.eq.s32.totalorder %s18, 0
      %p52 = por %p50, %p51
      %p53 = scmp.ne.s32.totalorder %s42, %s45
      %p54 = scmp.eq.s32.totalorder %s23, 1
      %p55 = por %p53, %p54
      %p56 = scmp.ne.s32.totalorder %s45, %s46
      %p57 = scmp.eq.s32.totalorder %s23, 0
      %p58 = por %p56, %p57
      %p59 = scmp.ne.s32.totalorder %s45, %s46
      %p60 = scmp.eq.s32.totalorder %s24, 1
      %p61 = por %p59, %p60
      %p63 = scmp.ne.s32.totalorder %s46, %s62
      %p64 = scmp.eq.s32.totalorder %s24, 0
      %p65 = por %p63, %p64
      %s66 = ssub.s32 %s25, %s37
      %p67 = scmp.eq.s32.totalorder %s66, 0
      %s69 = sadd.s32 %s68, 1
      %s70 = scalar_select %p67, %s68, %s69
      %p73 = pneg %p67
      %p74 = scmp.eq.s32.totalorder %s18, 1
      %p75 = por %p73, %p74
      %p76 = scmp.ne.s32.totalorder %s68, %s71
      %p77 = scmp.eq.s32.totalorder %s18, 0
      %p78 = por %p76, %p77
      %p79 = scmp.ne.s32.totalorder %s68, %s71
      %p80 = scmp.eq.s32.totalorder %s23, 1
      %p81 = por %p79, %p80
      %p82 = scmp.ne.s32.totalorder %s71, %s72
      %p83 = scmp.eq.s32.totalorder %s23, 0
      %p84 = por %p82, %p83
      %p85 = scmp.ne.s32.totalorder %s71, %s72
      %p86 = scmp.eq.s32.totalorder %s24, 1
      %p87 = por %p85, %p86
      %p89 = scmp.ne.s32.totalorder %s72, %s88
      %p90 = scmp.eq.s32.totalorder %s24, 0
      %p91 = por %p89, %p90
      %s93 = sadd.s32 %s92, 1
      %p96 = scmp.eq.s32.totalorder %s18, 1
      %p97 = scmp.ne.s32.totalorder %s92, %s94
      %p98 = scmp.eq.s32.totalorder %s18, 0
      %p99 = por %p97, %p98
      %p100 = scmp.ne.s32.totalorder %s92, %s94
      %p101 = scmp.eq.s32.totalorder %s23, 1
      %p102 = por %p100, %p101
      %p103 = scmp.ne.s32.totalorder %s94, %s95
      %p104 = scmp.eq.s32.totalorder %s23, 0
      %p105 = por %p103, %p104
      %p106 = scmp.ne.s32.totalorder %s94, %s95
      %p107 = scmp.eq.s32.totalorder %s24, 1
      %p108 = por %p106, %p107
      %p110 = scmp.ne.s32.totalorder %s95, %s109
      %p111 = scmp.eq.s32.totalorder %s24, 0
      %p112 = por %p110, %p111
      %s114 = sadd.s32 %s113, 1
      %p117 = scmp.eq.s32.totalorder %s18, 1
      %p118 = scmp.ne.s32.totalorder %s113, %s115
      %p119 = scmp.eq.s32.totalorder %s18, 0
      %p120 = por %p118, %p119
      %p121 = scmp.ne.s32.totalorder %s113, %s115
      %p122 = scmp.eq.s32.totalorder %s23, 1
      %p123 = por %p121, %p122
      %p124 = scmp.ne.s32.totalorder %s115, %s116
      %p125 = scmp.eq.s32.totalorder %s23, 0
      %p126 = por %p124, %p125
      %p127 = scmp.ne.s32.totalorder %s115, %s116
      %p128 = scmp.eq.s32.totalorder %s24, 1
      %p129 = por %p127, %p128
      %p131 = scmp.ne.s32.totalorder %s116, %s130
      %p132 = scmp.eq.s32.totalorder %s24, 0
      %p133 = por %p131, %p132
      %s135 = sadd.s32 %s134, 1
      %p138 = scmp.eq.s32.totalorder %s18, 1
      %p139 = scmp.ne.s32.totalorder %s134, %s136
      %p140 = scmp.eq.s32.totalorder %s18, 0
      %p141 = por %p139, %p140
      %p142 = scmp.ne.s32.totalorder %s134, %s136
      %p143 = scmp.eq.s32.totalorder %s23, 1
      %p144 = por %p142, %p143
      %p145 = scmp.ne.s32.totalorder %s136, %s137
      %p146 = scmp.eq.s32.totalorder %s23, 0
      %p147 = por %p145, %p146
      %p148 = scmp.ne.s32.totalorder %s136, %s137
      %p149 = scmp.eq.s32.totalorder %s24, 1
      %p150 = por %p148, %p149
      %p152 = scmp.ne.s32.totalorder %s137, %s151
      %p153 = scmp.eq.s32.totalorder %s24, 0
      %p154 = por %p152, %p153
      %s156 = sadd.s32 %s155, 1
      %p159 = scmp.eq.s32.totalorder %s18, 1
      %p160 = scmp.ne.s32.totalorder %s155, %s157
      %p161 = scmp.eq.s32.totalorder %s18, 0
      %p162 = por %p160, %p161
      %p163 = scmp.ne.s32.totalorder %s155, %s157
      %p164 = scmp.eq.s32.totalorder %s23, 1
      %p165 = por %p163, %p164
      %p166 = scmp.ne.s32.totalorder %s157, %s158
      %p167 = scmp.eq.s32.totalorder %s23, 0
      %p168 = por %p166, %p167
      %p169 = scmp.ne.s32.totalorder %s157, %s158
      %p170 = scmp.eq.s32.totalorder %s24, 1
      %p171 = por %p169, %p170
      %p173 = scmp.ne.s32.totalorder %s158, %s172
      %p174 = scmp.eq.s32.totalorder %s24, 0
      %p175 = por %p173, %p174
      %s177 = sadd.s32 %s176, 1
      %p180 = scmp.eq.s32.totalorder %s18, 1
      %p181 = scmp.ne.s32.totalorder %s176, %s178
      %p182 = scmp.eq.s32.totalorder %s18, 0
      %p183 = por %p181, %p182
      %p184 = scmp.ne.s32.totalorder %s176, %s178
      %p185 = scmp.eq.s32.totalorder %s23, 1
      %p186 = por %p184, %p185
      %p187 = scmp.ne.s32.totalorder %s178, %s179
      %p188 = scmp.eq.s32.totalorder %s23, 0
      %p189 = por %p187, %p188
      %p190 = scmp.ne.s32.totalorder %s178, %s179
      %p191 = scmp.eq.s32.totalorder %s24, 1
      %p192 = por %p190, %p191
      %p194 = scmp.ne.s32.totalorder %s179, %s193
      %p195 = scmp.eq.s32.totalorder %s24, 0
      %p196 = por %p194, %p195
      %s198 = sadd.s32 %s197, 1
      %p201 = scmp.eq.s32.totalorder %s18, 1
      %p202 = scmp.ne.s32.totalorder %s197, %s199
      %p203 = scmp.eq.s32.totalorder %s18, 0
      %p204 = por %p202, %p203
      %p205 = scmp.ne.s32.totalorder %s197, %s199
      %p206 = scmp.eq.s32.totalorder %s23, 1
      %p207 = por %p205, %p206
      %p208 = scmp.ne.s32.totalorder %s199, %s200
      %p209 = scmp.eq.s32.totalorder %s23, 0
      %p210 = por %p208, %p209
      %p211 = scmp.ne.s32.totalorder %s199, %s200
      %p212 = scmp.eq.s32.totalorder %s24, 1
      %p213 = por %p211, %p212
      %p215 = scmp.ne.s32.totalorder %s200, %s214
      %p216 = scmp.eq.s32.totalorder %s24, 0
      %p217 = por %p215, %p216
      %s219 = sadd.s32 %s218, 1
      %p222 = scmp.eq.s32.totalorder %s18, 1
      %p223 = scmp.ne.s32.totalorder %s218, %s220
      %p224 = scmp.eq.s32.totalorder %s18, 0
      %p225 = por %p223, %p224
      %p226 = scmp.ne.s32.totalorder %s218, %s220
      %p227 = scmp.eq.s32.totalorder %s23, 1
      %p228 = por %p226, %p227
      %p229 = scmp.ne.s32.totalorder %s220, %s221
      %p230 = scmp.eq.s32.totalorder %s23, 0
      %p231 = por %p229, %p230
      %p232 = scmp.ne.s32.totalorder %s220, %s221
      %p233 = scmp.eq.s32.totalorder %s24, 1
      %p234 = por %p232, %p233
      %p236 = scmp.ne.s32.totalorder %s221, %s235
      %p237 = scmp.eq.s32.totalorder %s24, 0
      %p238 = por %p236, %p237
      %s239 = ssub.s32 %s25, %s37
      %s240 = ssub.s32 %s26, %s33
      %s241 = sor.u32 %s239, %s240
      %p242 = scmp.eq.s32.totalorder %s241, 0
      %s244 = sadd.s32 %s243, 1
      %s245 = scalar_select %p242, %s243, %s244
      %p248 = pneg %p242
      %p249 = scmp.eq.s32.totalorder %s18, 1
      %p250 = por %p248, %p249
      %p251 = scmp.ne.s32.totalorder %s243, %s246
      %p252 = scmp.eq.s32.totalorder %s18, 0
      %p253 = por %p251, %p252
      %p254 = scmp.ne.s32.totalorder %s243, %s246
      %p255 = scmp.eq.s32.totalorder %s23, 1
      %p256 = por %p254, %p255
      %p257 = scmp.ne.s32.totalorder %s246, %s247
      %p258 = scmp.eq.s32.totalorder %s23, 0
      %p259 = por %p257, %p258
      %p260 = scmp.ne.s32.totalorder %s246, %s247
      %p261 = scmp.eq.s32.totalorder %s24, 1
      %p262 = por %p260, %p261
      %p264 = scmp.ne.s32.totalorder %s247, %s263
      %p265 = scmp.eq.s32.totalorder %s24, 0
      %p266 = por %p264, %p265
      %p267 = scmp.le.s32.totalorder 1, %s18
      %p268 = scmp.lt.s32.totalorder %s18, 3
      %p269 = pnand %p267, %p268
      %p270 = pneg %p269
      // Predicated region
      $region9: #{tpu_custom_call.1} parent=5 // pred_check
        _
      $region10: #{tpu_custom_call.1} parent=5 // pred_check_branch
        %272 = sbr.rel (%p269) target = $region12
      $region11: #{tpu_custom_call.1} parent=5 // pred_region
        %s273 = ssub.s32 %s18, 1
        // Predicated region
        $region13: #{tpu_custom_call.1} parent=11 // pred_check
          %p274 = pneg %p84
        $region14: #{tpu_custom_call.1} parent=11 // pred_check_branch
          %276 = sbr.rel (%p274) target = $region16
        $region15: #{tpu_custom_call.1} parent=11 // pred_region
          %s277 = smul.u32 2, %s27
          %p278 = scmp.lt.s32.totalorder %s277, 1
          %s279 = scalar_select %p278, %s277, 1
          %s280 = smul.addr %s279, 8
          %s281 = smul.addr %s280, 8
          %s282 = scalar_lea.vmem %s1, %s281
          %s283 = smul.u32 2, %s27
        $region16: #{tpu_custom_call.1} parent=11 // pred_fallthru
          _
        // Predicated region
        $region17: #{tpu_custom_call.1} parent=11 // pred_check
          %p284 = pneg %p105
        $region18: #{tpu_custom_call.1} parent=11 // pred_check_branch
          %286 = sbr.rel (%p284) target = $region20
        $region19: #{tpu_custom_call.1} parent=11 // pred_region
          _
        $region20: #{tpu_custom_call.1} parent=11 // pred_fallthru
          _
        // Predicated region
        $region21: #{tpu_custom_call.1} parent=11 // pred_check
          %p287 = pneg %p126
        $region22: #{tpu_custom_call.1} parent=11 // pred_check_branch
          %289 = sbr.rel (%p287) target = $region24
        $region23: #{tpu_custom_call.1} parent=11 // pred_region
          _
        $region24: #{tpu_custom_call.1} parent=11 // pred_fallthru
          _
        // Predicated region
        $region25: #{tpu_custom_call.1} parent=11 // pred_check
          %p290 = pneg %p147
        $region26: #{tpu_custom_call.1} parent=11 // pred_check_branch
          %292 = sbr.rel (%p290) target = $region28
        $region27: #{tpu_custom_call.1} parent=11 // pred_region
          _
        $region28: #{tpu_custom_call.1} parent=11 // pred_fallthru
          _
        // Predicated region
        $region29: #{tpu_custom_call.1} parent=11 // pred_check
          %p293 = pneg %p168
        $region30: #{tpu_custom_call.1} parent=11 // pred_check_branch
          %295 = sbr.rel (%p293) target = $region32
        $region31: #{tpu_custom_call.1} parent=11 // pred_region
          _
        $region32: #{tpu_custom_call.1} parent=11 // pred_fallthru
          _
        // Predicated region
        $region33: #{tpu_custom_call.1} parent=11 // pred_check
          %p296 = pneg %p189
        $region34: #{tpu_custom_call.1} parent=11 // pred_check_branch
          %298 = sbr.rel (%p296) target = $region36
        $region35: #{tpu_custom_call.1} parent=11 // pred_region
          _
        $region36: #{tpu_custom_call.1} parent=11 // pred_fallthru
          _
        // Predicated region
        $region37: #{tpu_custom_call.1} parent=11 // pred_check
          %p299 = pneg %p210
        $region38: #{tpu_custom_call.1} parent=11 // pred_check_branch
          %301 = sbr.rel (%p299) target = $region40
        $region39: #{tpu_custom_call.1} parent=11 // pred_region
          _
        $region40: #{tpu_custom_call.1} parent=11 // pred_fallthru
          _
        // Predicated region
        $region41: #{tpu_custom_call.1} parent=11 // pred_check
          %p302 = pneg %p231
        $region42: #{tpu_custom_call.1} parent=11 // pred_check_branch
          %304 = sbr.rel (%p302) target = $region44
        $region43: #{tpu_custom_call.1} parent=11 // pred_region
          _
        $region44: #{tpu_custom_call.1} parent=11 // pred_fallthru
          _
      $region12: #{tpu_custom_call.1} parent=5 // pred_fallthru
        _
      %p305 = scmp.lt.s32.totalorder %s18, 2
      // Predicated region
      $region45: #{tpu_custom_call.1} parent=5 // pred_check
        %p306 = pneg %p305
      $region46: #{tpu_custom_call.1} parent=5 // pred_check_branch
        %308 = sbr.rel (%p306) target = $region48
      $region47: #{tpu_custom_call.1} parent=5 // pred_region
        // Predicated region
        $region49: #{tpu_custom_call.1} parent=47 // pred_check
          %p309 = pneg %p52
        $region50: #{tpu_custom_call.1} parent=47 // pred_check_branch
          %311 = sbr.rel (%p309) target = $region52
        $region51: #{tpu_custom_call.1} parent=47 // pred_region
          %s312 = sand.u32 %s42, 1
          %s313 = sand.u32 %s42, 1
          %s314 = smul.addr %s313, 256
          %s315 = scalar_lea.vmem [#allocation2], %s314
          %s316 = smul.u32 2, %s25
          %s317 = smul.u32 16, %s26
          %s318 = smul.addr %s316, 32
          %s319 = sadd.s32 %s317, %s318
          %s320 = smul.addr %s319, 8
          %s321 = scalar_lea.vmem %s0, %s320
          // Predicated region
          $region53: #{tpu_custom_call.1} parent=51 // pred_check
            _
          $region54: #{tpu_custom_call.1} parent=51 // pred_check_branch
            %323 = sbr.rel (0) target = $region56
          $region55: #{tpu_custom_call.1} parent=51 // pred_region
            // Predicated region
            $region57: #{tpu_custom_call.1} parent=55 // pred_check
              _
            $region58: #{tpu_custom_call.1} parent=55 // pred_check_branch
              %325 = sbr.rel (0) target = $region60
            $region59: #{tpu_custom_call.1} parent=55 // pred_region
              // Predicated region
              $region72: #{tpu_custom_call.1} parent=59 // pred_check
                _
              $region73: #{tpu_custom_call.1} parent=59 // pred_check_branch
                %403 = sbr.rel (0) target = $region75
              $region74: #{tpu_custom_call.1} parent=59 // pred_region
                loop: start=0, step=1, limit=1
                $region76: #{tpu_custom_call.1} parent=74 // loop_pre_header
                  _
                $region77: #{tpu_custom_call.1} parent=74 // loop_header
                  %s405 = sphi 0, %s409
                  %p406 = scmp.ge.s32.totalorder %s405, 1
                  %s410 = sphi %s321, %s321
                  %s411 = sphi %s315, %s315
                $region78: #{tpu_custom_call.1} parent=74 // loop_header_branch
                  %408 = sbr.rel (%p406) target = $region82
                $region79: #{tpu_custom_call.1} parent=74 // loop_body
                  %v412 = vld [vmem:[%s410] sm:$0xff]
                  %413 = vst [vmem:[%s411] sm:$0xff] %v412
                  %v414 = vld [vmem:[%s410 + $0x8] sm:$0xff]
                  %415 = vst [vmem:[%s411 + $0x8] sm:$0xff] %v414
                  %v416 = vld [vmem:[%s410 + $0x10] sm:$0xff]
                  %417 = vst [vmem:[%s411 + $0x10] sm:$0xff] %v416
                  %v418 = vld [vmem:[%s410 + $0x18] sm:$0xff]
                  %419 = vst [vmem:[%s411 + $0x18] sm:$0xff] %v418
                  %v420 = vld [vmem:[%s410 + $0x20] sm:$0xff]
                  %421 = vst [vmem:[%s411 + $0x20] sm:$0xff] %v420
                  %v422 = vld [vmem:[%s410 + $0x28] sm:$0xff]
                  %423 = vst [vmem:[%s411 + $0x28] sm:$0xff] %v422
                  %v424 = vld [vmem:[%s410 + $0x30] sm:$0xff]
                  %425 = vst [vmem:[%s411 + $0x30] sm:$0xff] %v424
                  %v426 = vld [vmem:[%s410 + $0x38] sm:$0xff]
                  %427 = vst [vmem:[%s411 + $0x38] sm:$0xff] %v426
                  %v428 = vld [vmem:[%s410 + $0x40] sm:$0xff]
                  %429 = vst [vmem:[%s411 + $0x40] sm:$0xff] %v428
                  %v430 = vld [vmem:[%s410 + $0x48] sm:$0xff]
                  %431 = vst [vmem:[%s411 + $0x48] sm:$0xff] %v430
                  %v432 = vld [vmem:[%s410 + $0x50] sm:$0xff]
                  %433 = vst [vmem:[%s411 + $0x50] sm:$0xff] %v432
                  %v434 = vld [vmem:[%s410 + $0x58] sm:$0xff]
                  %435 = vst [vmem:[%s411 + $0x58] sm:$0xff] %v434
                  %v436 = vld [vmem:[%s410 + $0x60] sm:$0xff]
                  %437 = vst [vmem:[%s411 + $0x60] sm:$0xff] %v436
                  %v438 = vld [vmem:[%s410 + $0x68] sm:$0xff]
                  %439 = vst [vmem:[%s411 + $0x68] sm:$0xff] %v438
                  %v440 = vld [vmem:[%s410 + $0x70] sm:$0xff]
                  %441 = vst [vmem:[%s411 + $0x70] sm:$0xff] %v440
                  %v442 = vld [vmem:[%s410 + $0x78] sm:$0xff]
                  %443 = vst [vmem:[%s411 + $0x78] sm:$0xff] %v442
                  %v444 = vld [vmem:[%s410 + $0x100] sm:$0xff]
                  %445 = vst [vmem:[%s411 + $0x80] sm:$0xff] %v444
                  %v446 = vld [vmem:[%s410 + $0x108] sm:$0xff]
                  %447 = vst [vmem:[%s411 + $0x88] sm:$0xff] %v446
                  %v448 = vld [vmem:[%s410 + $0x110] sm:$0xff]
                  %449 = vst [vmem:[%s411 + $0x90] sm:$0xff] %v448
                  %v450 = vld [vmem:[%s410 + $0x118] sm:$0xff]
                  %451 = vst [vmem:[%s411 + $0x98] sm:$0xff] %v450
                  %v452 = vld [vmem:[%s410 + $0x120] sm:$0xff]
                  %453 = vst [vmem:[%s411 + $0xa0] sm:$0xff] %v452
                  %v454 = vld [vmem:[%s410 + $0x128] sm:$0xff]
                  %455 = vst [vmem:[%s411 + $0xa8] sm:$0xff] %v454
                  %v456 = vld [vmem:[%s410 + $0x130] sm:$0xff]
                  %457 = vst [vmem:[%s411 + $0xb0] sm:$0xff] %v456
                  %v458 = vld [vmem:[%s410 + $0x138] sm:$0xff]
                  %459 = vst [vmem:[%s411 + $0xb8] sm:$0xff] %v458
                  %v460 = vld [vmem:[%s410 + $0x140] sm:$0xff]
                  %461 = vst [vmem:[%s411 + $0xc0] sm:$0xff] %v460
                  %v462 = vld [vmem:[%s410 + $0x148] sm:$0xff]
                  %463 = vst [vmem:[%s411 + $0xc8] sm:$0xff] %v462
                  %v464 = vld [vmem:[%s410 + $0x150] sm:$0xff]
                  %465 = vst [vmem:[%s411 + $0xd0] sm:$0xff] %v464
                  %v466 = vld [vmem:[%s410 + $0x158] sm:$0xff]
                  %467 = vst [vmem:[%s411 + $0xd8] sm:$0xff] %v466
                  %v468 = vld [vmem:[%s410 + $0x160] sm:$0xff]
                  %469 = vst [vmem:[%s411 + $0xe0] sm:$0xff] %v468
                  %v470 = vld [vmem:[%s410 + $0x168] sm:$0xff]
                  %471 = vst [vmem:[%s411 + $0xe8] sm:$0xff] %v470
                  %v472 = vld [vmem:[%s410 + $0x170] sm:$0xff]
                  %473 = vst [vmem:[%s411 + $0xf0] sm:$0xff] %v472
                  %v474 = vld [vmem:[%s410 + $0x178] sm:$0xff]
                  %475 = vst [vmem:[%s411 + $0xf8] sm:$0xff] %v474
                $region80: #{tpu_custom_call.1} parent=74 // loop_footer
                  %s409 = sadd.s32 1, %s405
                $region81: #{tpu_custom_call.1} parent=74 // loop_footer_branch
                  %404 = sbr.rel target = $region77
                $region82: #{tpu_custom_call.1} parent=74 // loop_exit
                  _
              $region75: #{tpu_custom_call.1} parent=59 // pred_fallthru
                _
              // Predicated region
              $region83: #{tpu_custom_call.1} parent=59 // pred_check
                _
              $region84: #{tpu_custom_call.1} parent=59 // pred_check_branch
                %477 = sbr.rel target = $region86
              $region85: #{tpu_custom_call.1} parent=59 // pred_region
                _
              $region86: #{tpu_custom_call.1} parent=59 // pred_fallthru
                _
            $region60: #{tpu_custom_call.1} parent=55 // pred_fallthru
              _
            // Predicated region
            $region61: #{tpu_custom_call.1} parent=55 // pred_check
              _
            $region62: #{tpu_custom_call.1} parent=55 // pred_check_branch
              %327 = sbr.rel target = $region64
            $region63: #{tpu_custom_call.1} parent=55 // pred_region
              %s329 = ssub.s32 256, 1
              loop: start=0, step=1, limit=1
              $region65: #{tpu_custom_call.1} parent=63 // loop_pre_header
                _
              $region66: #{tpu_custom_call.1} parent=63 // loop_header
                %s331 = sphi 0, %s335
                %p332 = scmp.ge.s32.totalorder %s331, 1
                %s336 = sphi %s321, %s321
                %s337 = sphi %s315, %s315
              $region67: #{tpu_custom_call.1} parent=63 // loop_header_branch
                %334 = sbr.rel (%p332) target = $region71
              $region68: #{tpu_custom_call.1} parent=63 // loop_body
                %v338 = vld [vmem:[%s336] sm:%s329]
                %339 = vst [vmem:[%s337] sm:%s329] %v338
                %v340 = vld [vmem:[%s336 + $0x8] sm:%s329]
                %341 = vst [vmem:[%s337 + $0x8] sm:%s329] %v340
                %v342 = vld [vmem:[%s336 + $0x10] sm:%s329]
                %343 = vst [vmem:[%s337 + $0x10] sm:%s329] %v342
                %v344 = vld [vmem:[%s336 + $0x18] sm:%s329]
                %345 = vst [vmem:[%s337 + $0x18] sm:%s329] %v344
                %v346 = vld [vmem:[%s336 + $0x20] sm:%s329]
                %347 = vst [vmem:[%s337 + $0x20] sm:%s329] %v346
                %v348 = vld [vmem:[%s336 + $0x28] sm:%s329]
                %349 = vst [vmem:[%s337 + $0x28] sm:%s329] %v348
                %v350 = vld [vmem:[%s336 + $0x30] sm:%s329]
                %351 = vst [vmem:[%s337 + $0x30] sm:%s329] %v350
                %v352 = vld [vmem:[%s336 + $0x38] sm:%s329]
                %353 = vst [vmem:[%s337 + $0x38] sm:%s329] %v352
                %v354 = vld [vmem:[%s336 + $0x40] sm:%s329]
                %355 = vst [vmem:[%s337 + $0x40] sm:%s329] %v354
                %v356 = vld [vmem:[%s336 + $0x48] sm:%s329]
                %357 = vst [vmem:[%s337 + $0x48] sm:%s329] %v356
                %v358 = vld [vmem:[%s336 + $0x50] sm:%s329]
                %359 = vst [vmem:[%s337 + $0x50] sm:%s329] %v358
                %v360 = vld [vmem:[%s336 + $0x58] sm:%s329]
                %361 = vst [vmem:[%s337 + $0x58] sm:%s329] %v360
                %v362 = vld [vmem:[%s336 + $0x60] sm:%s329]
                %363 = vst [vmem:[%s337 + $0x60] sm:%s329] %v362
                %v364 = vld [vmem:[%s336 + $0x68] sm:%s329]
                %365 = vst [vmem:[%s337 + $0x68] sm:%s329] %v364
                %v366 = vld [vmem:[%s336 + $0x70] sm:%s329]
                %367 = vst [vmem:[%s337 + $0x70] sm:%s329] %v366
                %v368 = vld [vmem:[%s336 + $0x78] sm:%s329]
                %369 = vst [vmem:[%s337 + $0x78] sm:%s329] %v368
                %v370 = vld [vmem:[%s336 + $0x100] sm:%s329]
                %371 = vst [vmem:[%s337 + $0x80] sm:%s329] %v370
                %v372 = vld [vmem:[%s336 + $0x108] sm:%s329]
                %373 = vst [vmem:[%s337 + $0x88] sm:%s329] %v372
                %v374 = vld [vmem:[%s336 + $0x110] sm:%s329]
                %375 = vst [vmem:[%s337 + $0x90] sm:%s329] %v374
                %v376 = vld [vmem:[%s336 + $0x118] sm:%s329]
                %377 = vst [vmem:[%s337 + $0x98] sm:%s329] %v376
                %v378 = vld [vmem:[%s336 + $0x120] sm:%s329]
                %379 = vst [vmem:[%s337 + $0xa0] sm:%s329] %v378
                %v380 = vld [vmem:[%s336 + $0x128] sm:%s329]
                %381 = vst [vmem:[%s337 + $0xa8] sm:%s329] %v380
                %v382 = vld [vmem:[%s336 + $0x130] sm:%s329]
                %383 = vst [vmem:[%s337 + $0xb0] sm:%s329] %v382
                %v384 = vld [vmem:[%s336 + $0x138] sm:%s329]
                %385 = vst [vmem:[%s337 + $0xb8] sm:%s329] %v384
                %v386 = vld [vmem:[%s336 + $0x140] sm:%s329]
                %387 = vst [vmem:[%s337 + $0xc0] sm:%s329] %v386
                %v388 = vld [vmem:[%s336 + $0x148] sm:%s329]
                %389 = vst [vmem:[%s337 + $0xc8] sm:%s329] %v388
                %v390 = vld [vmem:[%s336 + $0x150] sm:%s329]
                %391 = vst [vmem:[%s337 + $0xd0] sm:%s329] %v390
                %v392 = vld [vmem:[%s336 + $0x158] sm:%s329]
                %393 = vst [vmem:[%s337 + $0xd8] sm:%s329] %v392
                %v394 = vld [vmem:[%s336 + $0x160] sm:%s329]
                %395 = vst [vmem:[%s337 + $0xe0] sm:%s329] %v394
                %v396 = vld [vmem:[%s336 + $0x168] sm:%s329]
                %397 = vst [vmem:[%s337 + $0xe8] sm:%s329] %v396
                %v398 = vld [vmem:[%s336 + $0x170] sm:%s329]
                %399 = vst [vmem:[%s337 + $0xf0] sm:%s329] %v398
                %v400 = vld [vmem:[%s336 + $0x178] sm:%s329]
                %401 = vst [vmem:[%s337 + $0xf8] sm:%s329] %v400
              $region69: #{tpu_custom_call.1} parent=63 // loop_footer
                %s335 = sadd.s32 1, %s331
              $region70: #{tpu_custom_call.1} parent=63 // loop_footer_branch
                %330 = sbr.rel target = $region66
              $region71: #{tpu_custom_call.1} parent=63 // loop_exit
                _
            $region64: #{tpu_custom_call.1} parent=55 // pred_fallthru
              _
          $region56: #{tpu_custom_call.1} parent=51 // pred_fallthru
            _
          %478 = vnop
        $region52: #{tpu_custom_call.1} parent=47 // pred_fallthru
          _
      $region48: #{tpu_custom_call.1} parent=5 // pred_fallthru
        _
      %p479 = scmp.le.s32.totalorder 1, %s18
      %p480 = scmp.lt.s32.totalorder %s18, 3
      %p481 = pnand %p479, %p480
      %p482 = pneg %p481
      // Predicated region
      $region87: #{tpu_custom_call.1} parent=5 // pred_check
        _
      $region88: #{tpu_custom_call.1} parent=5 // pred_check_branch
        %484 = sbr.rel (%p481) target = $region90
      $region89: #{tpu_custom_call.1} parent=5 // pred_region
        %s485 = ssub.s32 %s18, 1
        %s486 = sand.u32 %s45, 1
        %s487 = sand.u32 %s45, 1
        %s488 = smul.addr %s487, 256
        %s489 = scalar_lea.vmem [#allocation2], %s488
        // Predicated region
        $region91: #{tpu_custom_call.1} parent=89 // pred_check
          %p490 = pneg %p58
        $region92: #{tpu_custom_call.1} parent=89 // pred_check_branch
          %492 = sbr.rel (%p490) target = $region94
        $region93: #{tpu_custom_call.1} parent=89 // pred_region
          _
        $region94: #{tpu_custom_call.1} parent=89 // pred_fallthru
          _
        %s493 = sand.u32 %s45, 1
        %s494 = sand.u32 %s45, 1
        %s495 = smul.addr %s494, 256
        %s496 = scalar_lea.vmem [#allocation2], %s495
        %p497 = pneg %p58
        %p498 = pneg %p55
        %s499 = smul.u32 2, %s27
        %p500 = scmp.lt.s32.totalorder %s499, 1
        %s501 = scalar_select %p500, %s499, 1
        %s502 = smul.addr %s501, 8
        %s503 = smul.addr %s502, 8
        %s504 = scalar_lea.vmem %s1, %s503
        %p505 = pneg %p84
        %p506 = pneg %p81
        %p507 = pneg %p105
        %p508 = pneg %p102
        %p509 = pneg %p126
        %p510 = pneg %p123
        %p511 = pneg %p147
        %p512 = pneg %p144
        %p513 = pneg %p168
        %p514 = pneg %p165
        %p515 = pneg %p189
        %p516 = pneg %p186
        %p517 = pneg %p210
        %p518 = pneg %p207
        %p519 = pneg %p231
        %p520 = pneg %p228
        %p521 = pneg %p259
        %p522 = pneg %p256
        %s523 = sand.u32 %s246, 1
        %s524 = scalar_lea.sflag [#allocation4], %s523
        %s525 = sand.u32 %s246, 1
        %s526 = smul.addr %s525, 256
        %s527 = scalar_lea.vmem [#allocation3], %s526
        %s528 = smul.u32 2, %s27
        %s529 = smul.u32 16, %s28
        %s530 = smul.u32 2, %s27
        %p531 = scmp.lt.s32.totalorder %s530, 1
        %s532 = scalar_select %p531, %s530, 1
        %s533 = smul.addr %s532, 8
        %s534 = smul.addr %s533, 8
        %s535 = scalar_lea.vmem %s1, %s534
        %s536 = smul.u32 2, %s27
        %s537 = smul.u32 2, %s27
        %s538 = smul.u32 16, %s28
        %v539 = vld [vmem:[%s8] sm:$0x1]
        %v540 = vld [vmem:[%s8 + $0x1] sm:$0x1]
        %v541 = vld [vmem:[%s8 + $0x2] sm:$0x1]
        %v542 = vld [vmem:[%s8 + $0x3] sm:$0x1]
        %v543 = vld [vmem:[%s8 + $0x4] sm:$0x1]
        %v544 = vld [vmem:[%s8 + $0x5] sm:$0x1]
        %v545 = vld [vmem:[%s489] sm:$0xff]
        %v546 = vld [vmem:[%s489 + $0x8] sm:$0xff]
        %v547 = vld [vmem:[%s489 + $0x10] sm:$0xff]
        %v548 = vld [vmem:[%s489 + $0x18] sm:$0xff]
        %v549 = vld [vmem:[%s489 + $0x20] sm:$0xff]
        %v550 = vld [vmem:[%s489 + $0x28] sm:$0xff]
        %v551 = vld [vmem:[%s489 + $0x30] sm:$0xff]
        %v552 = vld [vmem:[%s489 + $0x38] sm:$0xff]
        %v553 = vld [vmem:[%s489 + $0x40] sm:$0xff]
        %v554 = vld [vmem:[%s489 + $0x48] sm:$0xff]
        %v555 = vld [vmem:[%s489 + $0x50] sm:$0xff]
        %v556 = vld [vmem:[%s489 + $0x58] sm:$0xff]
        %v557 = vld [vmem:[%s489 + $0x60] sm:$0xff]
        %v558 = vld [vmem:[%s489 + $0x68] sm:$0xff]
        %v559 = vld [vmem:[%s489 + $0x70] sm:$0xff]
        %v560 = vld [vmem:[%s489 + $0x78] sm:$0xff]
        %v561 = vld [vmem:[%s489 + $0x80] sm:$0xff]
        %v562 = vld [vmem:[%s489 + $0x88] sm:$0xff]
        %v563 = vld [vmem:[%s489 + $0x90] sm:$0xff]
        %v564 = vld [vmem:[%s489 + $0x98] sm:$0xff]
        %v565 = vld [vmem:[%s489 + $0xa0] sm:$0xff]
        %v566 = vld [vmem:[%s489 + $0xa8] sm:$0xff]
        %v567 = vld [vmem:[%s489 + $0xb0] sm:$0xff]
        %v568 = vld [vmem:[%s489 + $0xb8] sm:$0xff]
        %v569 = vld [vmem:[%s489 + $0xc0] sm:$0xff]
        %v570 = vld [vmem:[%s489 + $0xc8] sm:$0xff]
        %v571 = vld [vmem:[%s489 + $0xd0] sm:$0xff]
        %v572 = vld [vmem:[%s489 + $0xd8] sm:$0xff]
        %v573 = vld [vmem:[%s489 + $0xe0] sm:$0xff]
        %v574 = vld [vmem:[%s489 + $0xe8] sm:$0xff]
        %v575 = vld [vmem:[%s489 + $0xf0] sm:$0xff]
        %v576 = vld [vmem:[%s489 + $0xf8] sm:$0xff]
        %v577 = vld [vmem:[%s535] sm:$0xff]
        %v578 = vld [vmem:[%s535 + $0x8] sm:$0xff]
        %v579 = vld [vmem:[%s535 + $0x10] sm:$0xff]
        %v580 = vld [vmem:[%s535 + $0x18] sm:$0xff]
        %v581 = vld [vmem:[%s535 + $0x20] sm:$0xff]
        %v582 = vld [vmem:[%s535 + $0x28] sm:$0xff]
        %v583 = vld [vmem:[%s535 + $0x30] sm:$0xff]
        %v584 = vld [vmem:[%s535 + $0x38] sm:$0xff]
        %v585 = vld [vmem:[%s535 + $0x40] sm:$0xff]
        %v586 = vld [vmem:[%s535 + $0x48] sm:$0xff]
        %v587 = vld [vmem:[%s535 + $0x50] sm:$0xff]
        %v588 = vld [vmem:[%s535 + $0x58] sm:$0xff]
        %v589 = vld [vmem:[%s535 + $0x60] sm:$0xff]
        %v590 = vld [vmem:[%s535 + $0x68] sm:$0xff]
        %v591 = vld [vmem:[%s535 + $0x70] sm:$0xff]
        %v592 = vld [vmem:[%s535 + $0x78] sm:$0xff]
        %v593 = vld [vmem:[%s2] sm:$0xff]
        %v594 = vld [vmem:[%s2 + $0x8] sm:$0xff]
        %v595 = vld [vmem:[%s2 + $0x10] sm:$0xff]
        %v596 = vld [vmem:[%s2 + $0x18] sm:$0xff]
        %v597 = vperm.slane %v539, 0
        %vm598 = vcmask 261120
        %v600 = vsel %vm598, %v545, 0
        %v603 = vsel %vm598, %v546, 0
        %v606 = vsel %vm598, %v547, 0
        %v609 = vsel %vm598, %v548, 0
        %v612 = vsel %vm598, %v549, 0
        %v615 = vsel %vm598, %v550, 0
        %v618 = vsel %vm598, %v551, 0
        %v621 = vsel %vm598, %v552, 0
        %v624 = vsel %vm598, %v553, 0
        %v627 = vsel %vm598, %v554, 0
        %v630 = vsel %vm598, %v555, 0
        %v633 = vsel %vm598, %v556, 0
        %v636 = vsel %vm598, %v557, 0
        %v639 = vsel %vm598, %v558, 0
        %v642 = vsel %vm598, %v559, 0
        %v645 = vsel %vm598, %v560, 0
        %v648 = vsel %vm598, %v561, 0
        %v651 = vsel %vm598, %v562, 0
        %v654 = vsel %vm598, %v563, 0
        %v657 = vsel %vm598, %v564, 0
        %v660 = vsel %vm598, %v565, 0
        %v663 = vsel %vm598, %v566, 0
        %v666 = vsel %vm598, %v567, 0
        %v669 = vsel %vm598, %v568, 0
        %v672 = vsel %vm598, %v569, 0
        %v675 = vsel %vm598, %v570, 0
        %v678 = vsel %vm598, %v571, 0
        %v681 = vsel %vm598, %v572, 0
        %v684 = vsel %vm598, %v573, 0
        %v687 = vsel %vm598, %v574, 0
        %v690 = vsel %vm598, %v575, 0
        %v693 = vsel %vm598, %v576, 0
        %695 = vmatpush.msra.mxu0 0.0
        %696 = vmatpush.msra.mxu0 0.0
        %697 = vmatpush.msra.mxu0 0.0
        %698 = vmatpush.msra.mxu0 0.0
        %699 = vmatpush.msra.mxu0 0.0
        %700 = vmatpush.msra.mxu0 0.0
        %701 = vmatpush.msra.mxu0 0.0
        %702 = vmatpush.msra.mxu0 0.0
        %703 = vmatpush.msra.mxu0 0.0
        %704 = vmatpush.msra.mxu0 0.0
        %705 = vmatpush.msra.mxu0 0.0
        %706 = vmatpush.msra.mxu0 0.0
        %707 = vmatpush.msra.mxu0 %v596
        %708 = vmatpush.msra.mxu0 %v595
        %709 = vmatpush.msra.mxu0 %v594
        %710 = vmatpush.msra.mxu0 %v593
        %711 = vmatmul.f32.gmra.mxu0 %v600
        %v712 = vpop.f32.mrf.mxu0
        %v713 = vadd.f32 %v597, %v712
        %714 = vmatmul.f32.gmra.mxu0 %v603
        %v715 = vpop.f32.mrf.mxu0
        %v716 = vadd.f32 %v597, %v715
        %717 = vmatmul.f32.gmra.mxu0 %v606
        %v718 = vpop.f32.mrf.mxu0
        %v719 = vadd.f32 %v597, %v718
        %720 = vmatmul.f32.gmra.mxu0 %v609
        %v721 = vpop.f32.mrf.mxu0
        %v722 = vadd.f32 %v597, %v721
        %723 = vmatmul.f32.gmra.mxu0 %v612
        %v724 = vpop.f32.mrf.mxu0
        %v725 = vadd.f32 %v597, %v724
        %726 = vmatmul.f32.gmra.mxu0 %v615
        %v727 = vpop.f32.mrf.mxu0
        %v728 = vadd.f32 %v597, %v727
        %729 = vmatmul.f32.gmra.mxu0 %v618
        %v730 = vpop.f32.mrf.mxu0
        %v731 = vadd.f32 %v597, %v730
        %732 = vmatmul.f32.gmra.mxu0 %v621
        %v733 = vpop.f32.mrf.mxu0
        %v734 = vadd.f32 %v597, %v733
        %735 = vmatmul.f32.gmra.mxu0 %v624
        %v736 = vpop.f32.mrf.mxu0
        %v737 = vadd.f32 %v597, %v736
        %738 = vmatmul.f32.gmra.mxu0 %v627
        %v739 = vpop.f32.mrf.mxu0
        %v740 = vadd.f32 %v597, %v739
        %741 = vmatmul.f32.gmra.mxu0 %v630
        %v742 = vpop.f32.mrf.mxu0
        %v743 = vadd.f32 %v597, %v742
        %744 = vmatmul.f32.gmra.mxu0 %v633
        %v745 = vpop.f32.mrf.mxu0
        %v746 = vadd.f32 %v597, %v745
        %747 = vmatmul.f32.gmra.mxu0 %v636
        %v748 = vpop.f32.mrf.mxu0
        %v749 = vadd.f32 %v597, %v748
        %750 = vmatmul.f32.gmra.mxu0 %v639
        %v751 = vpop.f32.mrf.mxu0
        %v752 = vadd.f32 %v597, %v751
        %753 = vmatmul.f32.gmra.mxu0 %v642
        %v754 = vpop.f32.mrf.mxu0
        %v755 = vadd.f32 %v597, %v754
        %756 = vmatmul.f32.gmra.mxu0 %v645
        %v757 = vpop.f32.mrf.mxu0
        %v758 = vadd.f32 %v597, %v757
        %759 = vmatmul.f32.gmra.mxu0 %v648
        %v760 = vpop.f32.mrf.mxu0
        %v761 = vadd.f32 %v597, %v760
        %762 = vmatmul.f32.gmra.mxu0 %v651
        %v763 = vpop.f32.mrf.mxu0
        %v764 = vadd.f32 %v597, %v763
        %765 = vmatmul.f32.gmra.mxu0 %v654
        %v766 = vpop.f32.mrf.mxu0
        %v767 = vadd.f32 %v597, %v766
        %768 = vmatmul.f32.gmra.mxu0 %v657
        %v769 = vpop.f32.mrf.mxu0
        %v770 = vadd.f32 %v597, %v769
        %771 = vmatmul.f32.gmra.mxu0 %v660
        %v772 = vpop.f32.mrf.mxu0
        %v773 = vadd.f32 %v597, %v772
        %774 = vmatmul.f32.gmra.mxu0 %v663
        %v775 = vpop.f32.mrf.mxu0
        %v776 = vadd.f32 %v597, %v775
        %777 = vmatmul.f32.gmra.mxu0 %v666
        %v778 = vpop.f32.mrf.mxu0
        %v779 = vadd.f32 %v597, %v778
        %780 = vmatmul.f32.gmra.mxu0 %v669
        %v781 = vpop.f32.mrf.mxu0
        %v782 = vadd.f32 %v597, %v781
        %783 = vmatmul.f32.gmra.mxu0 %v672
        %v784 = vpop.f32.mrf.mxu0
        %v785 = vadd.f32 %v597, %v784
        %786 = vmatmul.f32.gmra.mxu0 %v675
        %v787 = vpop.f32.mrf.mxu0
        %v788 = vadd.f32 %v597, %v787
        %789 = vmatmul.f32.gmra.mxu0 %v678
        %v790 = vpop.f32.mrf.mxu0
        %v791 = vadd.f32 %v597, %v790
        %792 = vmatmul.f32.gmra.mxu0 %v681
        %v793 = vpop.f32.mrf.mxu0
        %v794 = vadd.f32 %v597, %v793
        %795 = vmatmul.f32.gmra.mxu0 %v684
        %v796 = vpop.f32.mrf.mxu0
        %v797 = vadd.f32 %v597, %v796
        %798 = vmatmul.f32.gmra.mxu0 %v687
        %v799 = vpop.f32.mrf.mxu0
        %v800 = vadd.f32 %v597, %v799
        %801 = vmatmul.f32.gmra.mxu0 %v690
        %v802 = vpop.f32.mrf.mxu0
        %v803 = vadd.f32 %v597, %v802
        %804 = vmatmul.f32.gmra.mxu0 %v693
        %v805 = vpop.f32.mrf.mxu0
        %v806 = vadd.f32 %v597, %v805
        %807 = vdwg.mxu0
        %v808 = vmax.f32 %v713, 0.0
        %v809 = vmax.f32 %v716, 0.0
        %v810 = vmax.f32 %v719, 0.0
        %v811 = vmax.f32 %v722, 0.0
        %v812 = vmax.f32 %v725, 0.0
        %v813 = vmax.f32 %v728, 0.0
        %v814 = vmax.f32 %v731, 0.0
        %v815 = vmax.f32 %v734, 0.0
        %v816 = vmax.f32 %v737, 0.0
        %v817 = vmax.f32 %v740, 0.0
        %v818 = vmax.f32 %v743, 0.0
        %v819 = vmax.f32 %v746, 0.0
        %v820 = vmax.f32 %v749, 0.0
        %v821 = vmax.f32 %v752, 0.0
        %v822 = vmax.f32 %v755, 0.0
        %v823 = vmax.f32 %v758, 0.0
        %v824 = vmax.f32 %v761, 0.0
        %v825 = vmax.f32 %v764, 0.0
        %v826 = vmax.f32 %v767, 0.0
        %v827 = vmax.f32 %v770, 0.0
        %v828 = vmax.f32 %v773, 0.0
        %v829 = vmax.f32 %v776, 0.0
        %v830 = vmax.f32 %v779, 0.0
        %v831 = vmax.f32 %v782, 0.0
        %v832 = vmax.f32 %v785, 0.0
        %v833 = vmax.f32 %v788, 0.0
        %v834 = vmax.f32 %v791, 0.0
        %v835 = vmax.f32 %v794, 0.0
        %v836 = vmax.f32 %v797, 0.0
        %v837 = vmax.f32 %v800, 0.0
        %v838 = vmax.f32 %v803, 0.0
        %v839 = vmax.f32 %v806, 0.0
        %v840 = vld [vmem:[%s3] sm:$0xff]
        %v841 = vld [vmem:[%s3 + $0x8] sm:$0xff]
        %v842 = vperm.slane %v540, 0
        %vm843 = vcmask 130048
        %v845 = vsel %vm843, %v808, 0
        %v848 = vsel %vm843, %v809, 0
        %v851 = vsel %vm843, %v810, 0
        %v854 = vsel %vm843, %v811, 0
        %v857 = vsel %vm843, %v812, 0
        %v860 = vsel %vm843, %v813, 0
        %v863 = vsel %vm843, %v814, 0
        %v866 = vsel %vm843, %v815, 0
        %v869 = vsel %vm843, %v816, 0
        %v872 = vsel %vm843, %v817, 0
        %v875 = vsel %vm843, %v818, 0
        %v878 = vsel %vm843, %v819, 0
        %v881 = vsel %vm843, %v820, 0
        %v884 = vsel %vm843, %v821, 0
        %v887 = vsel %vm843, %v822, 0
        %v890 = vsel %vm843, %v823, 0
        %v893 = vsel %vm843, %v824, 0
        %v896 = vsel %vm843, %v825, 0
        %v899 = vsel %vm843, %v826, 0
        %v902 = vsel %vm843, %v827, 0
        %v905 = vsel %vm843, %v828, 0
        %v908 = vsel %vm843, %v829, 0
        %v911 = vsel %vm843, %v830, 0
        %v914 = vsel %vm843, %v831, 0
        %v917 = vsel %vm843, %v832, 0
        %v920 = vsel %vm843, %v833, 0
        %v923 = vsel %vm843, %v834, 0
        %v926 = vsel %vm843, %v835, 0
        %v929 = vsel %vm843, %v836, 0
        %v932 = vsel %vm843, %v837, 0
        %v935 = vsel %vm843, %v838, 0
        %v938 = vsel %vm843, %v839, 0
        %940 = vmatpush.msra.mxu0 0.0
        %941 = vmatpush.msra.mxu0 0.0
        %942 = vmatpush.msra.mxu0 0.0
        %943 = vmatpush.msra.mxu0 0.0
        %944 = vmatpush.msra.mxu0 0.0
        %945 = vmatpush.msra.mxu0 0.0
        %946 = vmatpush.msra.mxu0 0.0
        %947 = vmatpush.msra.mxu0 0.0
        %948 = vmatpush.msra.mxu0 0.0
        %949 = vmatpush.msra.mxu0 0.0
        %950 = vmatpush.msra.mxu0 0.0
        %951 = vmatpush.msra.mxu0 0.0
        %952 = vmatpush.msra.mxu0 0.0
        %953 = vmatpush.msra.mxu0 0.0
        %954 = vmatpush.msra.mxu0 %v841
        %955 = vmatpush.msra.mxu0 %v840
        %956 = vmatmul.f32.gmra.mxu0 %v845
        %v957 = vpop.f32.mrf.mxu0
        %v958 = vadd.f32 %v842, %v957
        %959 = vmatmul.f32.gmra.mxu0 %v848
        %v960 = vpop.f32.mrf.mxu0
        %v961 = vadd.f32 %v842, %v960
        %962 = vmatmul.f32.gmra.mxu0 %v851
        %v963 = vpop.f32.mrf.mxu0
        %v964 = vadd.f32 %v842, %v963
        %965 = vmatmul.f32.gmra.mxu0 %v854
        %v966 = vpop.f32.mrf.mxu0
        %v967 = vadd.f32 %v842, %v966
        %968 = vmatmul.f32.gmra.mxu0 %v857
        %v969 = vpop.f32.mrf.mxu0
        %v970 = vadd.f32 %v842, %v969
        %971 = vmatmul.f32.gmra.mxu0 %v860
        %v972 = vpop.f32.mrf.mxu0
        %v973 = vadd.f32 %v842, %v972
        %974 = vmatmul.f32.gmra.mxu0 %v863
        %v975 = vpop.f32.mrf.mxu0
        %v976 = vadd.f32 %v842, %v975
        %977 = vmatmul.f32.gmra.mxu0 %v866
        %v978 = vpop.f32.mrf.mxu0
        %v979 = vadd.f32 %v842, %v978
        %980 = vmatmul.f32.gmra.mxu0 %v869
        %v981 = vpop.f32.mrf.mxu0
        %v982 = vadd.f32 %v842, %v981
        %983 = vmatmul.f32.gmra.mxu0 %v872
        %v984 = vpop.f32.mrf.mxu0
        %v985 = vadd.f32 %v842, %v984
        %986 = vmatmul.f32.gmra.mxu0 %v875
        %v987 = vpop.f32.mrf.mxu0
        %v988 = vadd.f32 %v842, %v987
        %989 = vmatmul.f32.gmra.mxu0 %v878
        %v990 = vpop.f32.mrf.mxu0
        %v991 = vadd.f32 %v842, %v990
        %992 = vmatmul.f32.gmra.mxu0 %v881
        %v993 = vpop.f32.mrf.mxu0
        %v994 = vadd.f32 %v842, %v993
        %995 = vmatmul.f32.gmra.mxu0 %v884
        %v996 = vpop.f32.mrf.mxu0
        %v997 = vadd.f32 %v842, %v996
        %998 = vmatmul.f32.gmra.mxu0 %v887
        %v999 = vpop.f32.mrf.mxu0
        %v1000 = vadd.f32 %v842, %v999
        %1001 = vmatmul.f32.gmra.mxu0 %v890
        %v1002 = vpop.f32.mrf.mxu0
        %v1003 = vadd.f32 %v842, %v1002
        %1004 = vmatmul.f32.gmra.mxu0 %v893
        %v1005 = vpop.f32.mrf.mxu0
        %v1006 = vadd.f32 %v842, %v1005
        %1007 = vmatmul.f32.gmra.mxu0 %v896
        %v1008 = vpop.f32.mrf.mxu0
        %v1009 = vadd.f32 %v842, %v1008
        %1010 = vmatmul.f32.gmra.mxu0 %v899
        %v1011 = vpop.f32.mrf.mxu0
        %v1012 = vadd.f32 %v842, %v1011
        %1013 = vmatmul.f32.gmra.mxu0 %v902
        %v1014 = vpop.f32.mrf.mxu0
        %v1015 = vadd.f32 %v842, %v1014
        %1016 = vmatmul.f32.gmra.mxu0 %v905
        %v1017 = vpop.f32.mrf.mxu0
        %v1018 = vadd.f32 %v842, %v1017
        %1019 = vmatmul.f32.gmra.mxu0 %v908
        %v1020 = vpop.f32.mrf.mxu0
        %v1021 = vadd.f32 %v842, %v1020
        %1022 = vmatmul.f32.gmra.mxu0 %v911
        %v1023 = vpop.f32.mrf.mxu0
        %v1024 = vadd.f32 %v842, %v1023
        %1025 = vmatmul.f32.gmra.mxu0 %v914
        %v1026 = vpop.f32.mrf.mxu0
        %v1027 = vadd.f32 %v842, %v1026
        %1028 = vmatmul.f32.gmra.mxu0 %v917
        %v1029 = vpop.f32.mrf.mxu0
        %v1030 = vadd.f32 %v842, %v1029
        %1031 = vmatmul.f32.gmra.mxu0 %v920
        %v1032 = vpop.f32.mrf.mxu0
        %v1033 = vadd.f32 %v842, %v1032
        %1034 = vmatmul.f32.gmra.mxu0 %v923
        %v1035 = vpop.f32.mrf.mxu0
        %v1036 = vadd.f32 %v842, %v1035
        %1037 = vmatmul.f32.gmra.mxu0 %v926
        %v1038 = vpop.f32.mrf.mxu0
        %v1039 = vadd.f32 %v842, %v1038
        %1040 = vmatmul.f32.gmra.mxu0 %v929
        %v1041 = vpop.f32.mrf.mxu0
        %v1042 = vadd.f32 %v842, %v1041
        %1043 = vmatmul.f32.gmra.mxu0 %v932
        %v1044 = vpop.f32.mrf.mxu0
        %v1045 = vadd.f32 %v842, %v1044
        %1046 = vmatmul.f32.gmra.mxu0 %v935
        %v1047 = vpop.f32.mrf.mxu0
        %v1048 = vadd.f32 %v842, %v1047
        %1049 = vmatmul.f32.gmra.mxu0 %v938
        %v1050 = vpop.f32.mrf.mxu0
        %v1051 = vadd.f32 %v842, %v1050
        %1052 = vdwg.mxu0
        %v1053 = vmax.f32 %v958, 0.0
        %v1054 = vmax.f32 %v961, 0.0
        %v1055 = vmax.f32 %v964, 0.0
        %v1056 = vmax.f32 %v967, 0.0
        %v1057 = vmax.f32 %v970, 0.0
        %v1058 = vmax.f32 %v973, 0.0
        %v1059 = vmax.f32 %v976, 0.0
        %v1060 = vmax.f32 %v979, 0.0
        %v1061 = vmax.f32 %v982, 0.0
        %v1062 = vmax.f32 %v985, 0.0
        %v1063 = vmax.f32 %v988, 0.0
        %v1064 = vmax.f32 %v991, 0.0
        %v1065 = vmax.f32 %v994, 0.0
        %v1066 = vmax.f32 %v997, 0.0
        %v1067 = vmax.f32 %v1000, 0.0
        %v1068 = vmax.f32 %v1003, 0.0
        %v1069 = vmax.f32 %v1006, 0.0
        %v1070 = vmax.f32 %v1009, 0.0
        %v1071 = vmax.f32 %v1012, 0.0
        %v1072 = vmax.f32 %v1015, 0.0
        %v1073 = vmax.f32 %v1018, 0.0
        %v1074 = vmax.f32 %v1021, 0.0
        %v1075 = vmax.f32 %v1024, 0.0
        %v1076 = vmax.f32 %v1027, 0.0
        %v1077 = vmax.f32 %v1030, 0.0
        %v1078 = vmax.f32 %v1033, 0.0
        %v1079 = vmax.f32 %v1036, 0.0
        %v1080 = vmax.f32 %v1039, 0.0
        %v1081 = vmax.f32 %v1042, 0.0
        %v1082 = vmax.f32 %v1045, 0.0
        %v1083 = vmax.f32 %v1048, 0.0
        %v1084 = vmax.f32 %v1051, 0.0
        %v1085 = vld [vmem:[%s4] sm:$0xff]
        %v1086 = vld [vmem:[%s4 + $0x8] sm:$0xff]
        %v1087 = vld [vmem:[%s4 + $0x10] sm:$0xff]
        %v1088 = vld [vmem:[%s4 + $0x18] sm:$0xff]
        %v1089 = vperm.slane %v541, 0
        %v1091 = vsel %vm598, %v577, 0
        %v1094 = vsel %vm598, %v578, 0
        %v1097 = vsel %vm598, %v579, 0
        %v1100 = vsel %vm598, %v580, 0
        %v1103 = vsel %vm598, %v581, 0
        %v1106 = vsel %vm598, %v582, 0
        %v1109 = vsel %vm598, %v583, 0
        %v1112 = vsel %vm598, %v584, 0
        %v1115 = vsel %vm598, %v585, 0
        %v1118 = vsel %vm598, %v586, 0
        %v1121 = vsel %vm598, %v587, 0
        %v1124 = vsel %vm598, %v588, 0
        %v1127 = vsel %vm598, %v589, 0
        %v1130 = vsel %vm598, %v590, 0
        %v1133 = vsel %vm598, %v591, 0
        %v1136 = vsel %vm598, %v592, 0
        %1138 = vmatpush.msra.mxu0 0.0
        %1139 = vmatpush.msra.mxu0 0.0
        %1140 = vmatpush.msra.mxu0 0.0
        %1141 = vmatpush.msra.mxu0 0.0
        %1142 = vmatpush.msra.mxu0 0.0
        %1143 = vmatpush.msra.mxu0 0.0
        %1144 = vmatpush.msra.mxu0 0.0
        %1145 = vmatpush.msra.mxu0 0.0
        %1146 = vmatpush.msra.mxu0 0.0
        %1147 = vmatpush.msra.mxu0 0.0
        %1148 = vmatpush.msra.mxu0 0.0
        %1149 = vmatpush.msra.mxu0 0.0
        %1150 = vmatpush.msra.mxu0 %v1088
        %1151 = vmatpush.msra.mxu0 %v1087
        %1152 = vmatpush.msra.mxu0 %v1086
        %1153 = vmatpush.msra.mxu0 %v1085
        %1154 = vmatmul.f32.gmra.mxu0 %v1091
        %v1155 = vpop.f32.mrf.mxu0
        %v1156 = vadd.f32 %v1089, %v1155
        %1157 = vmatmul.f32.gmra.mxu0 %v1094
        %v1158 = vpop.f32.mrf.mxu0
        %v1159 = vadd.f32 %v1089, %v1158
        %1160 = vmatmul.f32.gmra.mxu0 %v1097
        %v1161 = vpop.f32.mrf.mxu0
        %v1162 = vadd.f32 %v1089, %v1161
        %1163 = vmatmul.f32.gmra.mxu0 %v1100
        %v1164 = vpop.f32.mrf.mxu0
        %v1165 = vadd.f32 %v1089, %v1164
        %1166 = vmatmul.f32.gmra.mxu0 %v1103
        %v1167 = vpop.f32.mrf.mxu0
        %v1168 = vadd.f32 %v1089, %v1167
        %1169 = vmatmul.f32.gmra.mxu0 %v1106
        %v1170 = vpop.f32.mrf.mxu0
        %v1171 = vadd.f32 %v1089, %v1170
        %1172 = vmatmul.f32.gmra.mxu0 %v1109
        %v1173 = vpop.f32.mrf.mxu0
        %v1174 = vadd.f32 %v1089, %v1173
        %1175 = vmatmul.f32.gmra.mxu0 %v1112
        %v1176 = vpop.f32.mrf.mxu0
        %v1177 = vadd.f32 %v1089, %v1176
        %1178 = vmatmul.f32.gmra.mxu0 %v1115
        %v1179 = vpop.f32.mrf.mxu0
        %v1180 = vadd.f32 %v1089, %v1179
        %1181 = vmatmul.f32.gmra.mxu0 %v1118
        %v1182 = vpop.f32.mrf.mxu0
        %v1183 = vadd.f32 %v1089, %v1182
        %1184 = vmatmul.f32.gmra.mxu0 %v1121
        %v1185 = vpop.f32.mrf.mxu0
        %v1186 = vadd.f32 %v1089, %v1185
        %1187 = vmatmul.f32.gmra.mxu0 %v1124
        %v1188 = vpop.f32.mrf.mxu0
        %v1189 = vadd.f32 %v1089, %v1188
        %1190 = vmatmul.f32.gmra.mxu0 %v1127
        %v1191 = vpop.f32.mrf.mxu0
        %v1192 = vadd.f32 %v1089, %v1191
        %1193 = vmatmul.f32.gmra.mxu0 %v1130
        %v1194 = vpop.f32.mrf.mxu0
        %v1195 = vadd.f32 %v1089, %v1194
        %1196 = vmatmul.f32.gmra.mxu0 %v1133
        %v1197 = vpop.f32.mrf.mxu0
        %v1198 = vadd.f32 %v1089, %v1197
        %1199 = vmatmul.f32.gmra.mxu0 %v1136
        %v1200 = vpop.f32.mrf.mxu0
        %v1201 = vadd.f32 %v1089, %v1200
        %1202 = vdwg.mxu0
        %v1203 = vmax.f32 %v1156, 0.0
        %v1204 = vmax.f32 %v1159, 0.0
        %v1205 = vmax.f32 %v1162, 0.0
        %v1206 = vmax.f32 %v1165, 0.0
        %v1207 = vmax.f32 %v1168, 0.0
        %v1208 = vmax.f32 %v1171, 0.0
        %v1209 = vmax.f32 %v1174, 0.0
        %v1210 = vmax.f32 %v1177, 0.0
        %v1211 = vmax.f32 %v1180, 0.0
        %v1212 = vmax.f32 %v1183, 0.0
        %v1213 = vmax.f32 %v1186, 0.0
        %v1214 = vmax.f32 %v1189, 0.0
        %v1215 = vmax.f32 %v1192, 0.0
        %v1216 = vmax.f32 %v1195, 0.0
        %v1217 = vmax.f32 %v1198, 0.0
        %v1218 = vmax.f32 %v1201, 0.0
        %v1219 = vld [vmem:[%s5] sm:$0xff]
        %v1220 = vld [vmem:[%s5 + $0x8] sm:$0xff]
        %v1221 = vperm.slane %v542, 0
        %v1223 = vsel %vm843, %v1203, 0
        %v1226 = vsel %vm843, %v1204, 0
        %v1229 = vsel %vm843, %v1205, 0
        %v1232 = vsel %vm843, %v1206, 0
        %v1235 = vsel %vm843, %v1207, 0
        %v1238 = vsel %vm843, %v1208, 0
        %v1241 = vsel %vm843, %v1209, 0
        %v1244 = vsel %vm843, %v1210, 0
        %v1247 = vsel %vm843, %v1211, 0
        %v1250 = vsel %vm843, %v1212, 0
        %v1253 = vsel %vm843, %v1213, 0
        %v1256 = vsel %vm843, %v1214, 0
        %v1259 = vsel %vm843, %v1215, 0
        %v1262 = vsel %vm843, %v1216, 0
        %v1265 = vsel %vm843, %v1217, 0
        %v1268 = vsel %vm843, %v1218, 0
        %1270 = vmatpush.msra.mxu0 0.0
        %1271 = vmatpush.msra.mxu0 0.0
        %1272 = vmatpush.msra.mxu0 0.0
        %1273 = vmatpush.msra.mxu0 0.0
        %1274 = vmatpush.msra.mxu0 0.0
        %1275 = vmatpush.msra.mxu0 0.0
        %1276 = vmatpush.msra.mxu0 0.0
        %1277 = vmatpush.msra.mxu0 0.0
        %1278 = vmatpush.msra.mxu0 0.0
        %1279 = vmatpush.msra.mxu0 0.0
        %1280 = vmatpush.msra.mxu0 0.0
        %1281 = vmatpush.msra.mxu0 0.0
        %1282 = vmatpush.msra.mxu0 0.0
        %1283 = vmatpush.msra.mxu0 0.0
        %1284 = vmatpush.msra.mxu0 %v1220
        %1285 = vmatpush.msra.mxu0 %v1219
        %1286 = vmatmul.f32.gmra.mxu0 %v1223
        %v1287 = vpop.f32.mrf.mxu0
        %v1288 = vadd.f32 %v1221, %v1287
        %1289 = vmatmul.f32.gmra.mxu0 %v1226
        %v1290 = vpop.f32.mrf.mxu0
        %v1291 = vadd.f32 %v1221, %v1290
        %1292 = vmatmul.f32.gmra.mxu0 %v1229
        %v1293 = vpop.f32.mrf.mxu0
        %v1294 = vadd.f32 %v1221, %v1293
        %1295 = vmatmul.f32.gmra.mxu0 %v1232
        %v1296 = vpop.f32.mrf.mxu0
        %v1297 = vadd.f32 %v1221, %v1296
        %1298 = vmatmul.f32.gmra.mxu0 %v1235
        %v1299 = vpop.f32.mrf.mxu0
        %v1300 = vadd.f32 %v1221, %v1299
        %1301 = vmatmul.f32.gmra.mxu0 %v1238
        %v1302 = vpop.f32.mrf.mxu0
        %v1303 = vadd.f32 %v1221, %v1302
        %1304 = vmatmul.f32.gmra.mxu0 %v1241
        %v1305 = vpop.f32.mrf.mxu0
        %v1306 = vadd.f32 %v1221, %v1305
        %1307 = vmatmul.f32.gmra.mxu0 %v1244
        %v1308 = vpop.f32.mrf.mxu0
        %v1309 = vadd.f32 %v1221, %v1308
        %1310 = vmatmul.f32.gmra.mxu0 %v1247
        %v1311 = vpop.f32.mrf.mxu0
        %v1312 = vadd.f32 %v1221, %v1311
        %1313 = vmatmul.f32.gmra.mxu0 %v1250
        %v1314 = vpop.f32.mrf.mxu0
        %v1315 = vadd.f32 %v1221, %v1314
        %1316 = vmatmul.f32.gmra.mxu0 %v1253
        %v1317 = vpop.f32.mrf.mxu0
        %v1318 = vadd.f32 %v1221, %v1317
        %1319 = vmatmul.f32.gmra.mxu0 %v1256
        %v1320 = vpop.f32.mrf.mxu0
        %v1321 = vadd.f32 %v1221, %v1320
        %1322 = vmatmul.f32.gmra.mxu0 %v1259
        %v1323 = vpop.f32.mrf.mxu0
        %v1324 = vadd.f32 %v1221, %v1323
        %1325 = vmatmul.f32.gmra.mxu0 %v1262
        %v1326 = vpop.f32.mrf.mxu0
        %v1327 = vadd.f32 %v1221, %v1326
        %1328 = vmatmul.f32.gmra.mxu0 %v1265
        %v1329 = vpop.f32.mrf.mxu0
        %v1330 = vadd.f32 %v1221, %v1329
        %1331 = vmatmul.f32.gmra.mxu0 %v1268
        %v1332 = vpop.f32.mrf.mxu0
        %v1333 = vadd.f32 %v1221, %v1332
        %1334 = vdwg.mxu0
        %v1335 = vmax.f32 %v1288, 0.0
        %v1336 = vmax.f32 %v1291, 0.0
        %v1337 = vmax.f32 %v1294, 0.0
        %v1338 = vmax.f32 %v1297, 0.0
        %v1339 = vmax.f32 %v1300, 0.0
        %v1340 = vmax.f32 %v1303, 0.0
        %v1341 = vmax.f32 %v1306, 0.0
        %v1342 = vmax.f32 %v1309, 0.0
        %v1343 = vmax.f32 %v1312, 0.0
        %v1344 = vmax.f32 %v1315, 0.0
        %v1345 = vmax.f32 %v1318, 0.0
        %v1346 = vmax.f32 %v1321, 0.0
        %v1347 = vmax.f32 %v1324, 0.0
        %v1348 = vmax.f32 %v1327, 0.0
        %v1349 = vmax.f32 %v1330, 0.0
        %v1350 = vmax.f32 %v1333, 0.0
        %v1352 = vsel %vm843, %v1053, 0
        %v1355 = vsel %vm843, %v1054, 0
        %v1358 = vsel %vm843, %v1055, 0
        %v1361 = vsel %vm843, %v1056, 0
        %v1364 = vsel %vm843, %v1057, 0
        %v1367 = vsel %vm843, %v1058, 0
        %v1370 = vsel %vm843, %v1059, 0
        %v1373 = vsel %vm843, %v1060, 0
        %v1376 = vsel %vm843, %v1061, 0
        %v1379 = vsel %vm843, %v1062, 0
        %v1382 = vsel %vm843, %v1063, 0
        %v1385 = vsel %vm843, %v1064, 0
        %v1388 = vsel %vm843, %v1065, 0
        %v1391 = vsel %vm843, %v1066, 0
        %v1394 = vsel %vm843, %v1067, 0
        %v1397 = vsel %vm843, %v1068, 0
        %v1400 = vsel %vm843, %v1335, 0
        %v1403 = vsel %vm843, %v1336, 0
        %v1406 = vsel %vm843, %v1337, 0
        %v1409 = vsel %vm843, %v1338, 0
        %v1412 = vsel %vm843, %v1339, 0
        %v1415 = vsel %vm843, %v1340, 0
        %v1418 = vsel %vm843, %v1341, 0
        %v1421 = vsel %vm843, %v1342, 0
        %1423 = vmatpush.xpose.msra.mxu0 0.0
        %1424 = vmatpush.xpose.msra.mxu0 0.0
        %1425 = vmatpush.xpose.msra.mxu0 0.0
        %1426 = vmatpush.xpose.msra.mxu0 0.0
        %1427 = vmatpush.xpose.msra.mxu0 0.0
        %1428 = vmatpush.xpose.msra.mxu0 0.0
        %1429 = vmatpush.xpose.msra.mxu0 0.0
        %1430 = vmatpush.xpose.msra.mxu0 0.0
        %1431 = vmatpush.xpose.msra.mxu0 %v1421
        %1432 = vmatpush.xpose.msra.mxu0 %v1418
        %1433 = vmatpush.xpose.msra.mxu0 %v1415
        %1434 = vmatpush.xpose.msra.mxu0 %v1412
        %1435 = vmatpush.xpose.msra.mxu0 %v1409
        %1436 = vmatpush.xpose.msra.mxu0 %v1406
        %1437 = vmatpush.xpose.msra.mxu0 %v1403
        %1438 = vmatpush.xpose.msra.mxu0 %v1400
        %1439 = vmatmul.f32.gmra.mxu0 %v1352
        %v1440 = vpop.f32.mrf.mxu0
        %v1441 = vadd.f32 0.0, %v1440
        %1442 = vmatmul.f32.gmra.mxu0 %v1355
        %v1443 = vpop.f32.mrf.mxu0
        %v1444 = vadd.f32 0.0, %v1443
        %1445 = vmatmul.f32.gmra.mxu0 %v1358
        %v1446 = vpop.f32.mrf.mxu0
        %v1447 = vadd.f32 0.0, %v1446
        %1448 = vmatmul.f32.gmra.mxu0 %v1361
        %v1449 = vpop.f32.mrf.mxu0
        %v1450 = vadd.f32 0.0, %v1449
        %1451 = vmatmul.f32.gmra.mxu0 %v1364
        %v1452 = vpop.f32.mrf.mxu0
        %v1453 = vadd.f32 0.0, %v1452
        %1454 = vmatmul.f32.gmra.mxu0 %v1367
        %v1455 = vpop.f32.mrf.mxu0
        %v1456 = vadd.f32 0.0, %v1455
        %1457 = vmatmul.f32.gmra.mxu0 %v1370
        %v1458 = vpop.f32.mrf.mxu0
        %v1459 = vadd.f32 0.0, %v1458
        %1460 = vmatmul.f32.gmra.mxu0 %v1373
        %v1461 = vpop.f32.mrf.mxu0
        %v1462 = vadd.f32 0.0, %v1461
        %1463 = vmatmul.f32.gmra.mxu0 %v1376
        %v1464 = vpop.f32.mrf.mxu0
        %v1465 = vadd.f32 0.0, %v1464
        %1466 = vmatmul.f32.gmra.mxu0 %v1379
        %v1467 = vpop.f32.mrf.mxu0
        %v1468 = vadd.f32 0.0, %v1467
        %1469 = vmatmul.f32.gmra.mxu0 %v1382
        %v1470 = vpop.f32.mrf.mxu0
        %v1471 = vadd.f32 0.0, %v1470
        %1472 = vmatmul.f32.gmra.mxu0 %v1385
        %v1473 = vpop.f32.mrf.mxu0
        %v1474 = vadd.f32 0.0, %v1473
        %1475 = vmatmul.f32.gmra.mxu0 %v1388
        %v1476 = vpop.f32.mrf.mxu0
        %v1477 = vadd.f32 0.0, %v1476
        %1478 = vmatmul.f32.gmra.mxu0 %v1391
        %v1479 = vpop.f32.mrf.mxu0
        %v1480 = vadd.f32 0.0, %v1479
        %1481 = vmatmul.f32.gmra.mxu0 %v1394
        %v1482 = vpop.f32.mrf.mxu0
        %v1483 = vadd.f32 0.0, %v1482
        %1484 = vmatmul.f32.gmra.mxu0 %v1397
        %v1485 = vpop.f32.mrf.mxu0
        %v1486 = vadd.f32 0.0, %v1485
        %1487 = vdwg.mxu0
        %v1489 = vsel %vm843, %v1069, 0
        %v1492 = vsel %vm843, %v1070, 0
        %v1495 = vsel %vm843, %v1071, 0
        %v1498 = vsel %vm843, %v1072, 0
        %v1501 = vsel %vm843, %v1073, 0
        %v1504 = vsel %vm843, %v1074, 0
        %v1507 = vsel %vm843, %v1075, 0
        %v1510 = vsel %vm843, %v1076, 0
        %v1513 = vsel %vm843, %v1077, 0
        %v1516 = vsel %vm843, %v1078, 0
        %v1519 = vsel %vm843, %v1079, 0
        %v1522 = vsel %vm843, %v1080, 0
        %v1525 = vsel %vm843, %v1081, 0
        %v1528 = vsel %vm843, %v1082, 0
        %v1531 = vsel %vm843, %v1083, 0
        %v1534 = vsel %vm843, %v1084, 0
        %v1537 = vsel %vm843, %v1343, 0
        %v1540 = vsel %vm843, %v1344, 0
        %v1543 = vsel %vm843, %v1345, 0
        %v1546 = vsel %vm843, %v1346, 0
        %v1549 = vsel %vm843, %v1347, 0
        %v1552 = vsel %vm843, %v1348, 0
        %v1555 = vsel %vm843, %v1349, 0
        %v1558 = vsel %vm843, %v1350, 0
        %1560 = vmatpush.xpose.msra.mxu0 0.0
        %1561 = vmatpush.xpose.msra.mxu0 0.0
        %1562 = vmatpush.xpose.msra.mxu0 0.0
        %1563 = vmatpush.xpose.msra.mxu0 0.0
        %1564 = vmatpush.xpose.msra.mxu0 0.0
        %1565 = vmatpush.xpose.msra.mxu0 0.0
        %1566 = vmatpush.xpose.msra.mxu0 0.0
        %1567 = vmatpush.xpose.msra.mxu0 0.0
        %1568 = vmatpush.xpose.msra.mxu0 %v1558
        %1569 = vmatpush.xpose.msra.mxu0 %v1555
        %1570 = vmatpush.xpose.msra.mxu0 %v1552
        %1571 = vmatpush.xpose.msra.mxu0 %v1549
        %1572 = vmatpush.xpose.msra.mxu0 %v1546
        %1573 = vmatpush.xpose.msra.mxu0 %v1543
        %1574 = vmatpush.xpose.msra.mxu0 %v1540
        %1575 = vmatpush.xpose.msra.mxu0 %v1537
        %1576 = vmatmul.f32.gmra.mxu0 %v1489
        %v1577 = vpop.f32.mrf.mxu0
        %v1578 = vadd.f32 0.0, %v1577
        %1579 = vmatmul.f32.gmra.mxu0 %v1492
        %v1580 = vpop.f32.mrf.mxu0
        %v1581 = vadd.f32 0.0, %v1580
        %1582 = vmatmul.f32.gmra.mxu0 %v1495
        %v1583 = vpop.f32.mrf.mxu0
        %v1584 = vadd.f32 0.0, %v1583
        %1585 = vmatmul.f32.gmra.mxu0 %v1498
        %v1586 = vpop.f32.mrf.mxu0
        %v1587 = vadd.f32 0.0, %v1586
        %1588 = vmatmul.f32.gmra.mxu0 %v1501
        %v1589 = vpop.f32.mrf.mxu0
        %v1590 = vadd.f32 0.0, %v1589
        %1591 = vmatmul.f32.gmra.mxu0 %v1504
        %v1592 = vpop.f32.mrf.mxu0
        %v1593 = vadd.f32 0.0, %v1592
        %1594 = vmatmul.f32.gmra.mxu0 %v1507
        %v1595 = vpop.f32.mrf.mxu0
        %v1596 = vadd.f32 0.0, %v1595
        %1597 = vmatmul.f32.gmra.mxu0 %v1510
        %v1598 = vpop.f32.mrf.mxu0
        %v1599 = vadd.f32 0.0, %v1598
        %1600 = vmatmul.f32.gmra.mxu0 %v1513
        %v1601 = vpop.f32.mrf.mxu0
        %v1602 = vadd.f32 0.0, %v1601
        %1603 = vmatmul.f32.gmra.mxu0 %v1516
        %v1604 = vpop.f32.mrf.mxu0
        %v1605 = vadd.f32 0.0, %v1604
        %1606 = vmatmul.f32.gmra.mxu0 %v1519
        %v1607 = vpop.f32.mrf.mxu0
        %v1608 = vadd.f32 0.0, %v1607
        %1609 = vmatmul.f32.gmra.mxu0 %v1522
        %v1610 = vpop.f32.mrf.mxu0
        %v1611 = vadd.f32 0.0, %v1610
        %1612 = vmatmul.f32.gmra.mxu0 %v1525
        %v1613 = vpop.f32.mrf.mxu0
        %v1614 = vadd.f32 0.0, %v1613
        %1615 = vmatmul.f32.gmra.mxu0 %v1528
        %v1616 = vpop.f32.mrf.mxu0
        %v1617 = vadd.f32 0.0, %v1616
        %1618 = vmatmul.f32.gmra.mxu0 %v1531
        %v1619 = vpop.f32.mrf.mxu0
        %v1620 = vadd.f32 0.0, %v1619
        %1621 = vmatmul.f32.gmra.mxu0 %v1534
        %v1622 = vpop.f32.mrf.mxu0
        %v1623 = vadd.f32 0.0, %v1622
        %1624 = vdwg.mxu0
        %vm1625 = vcmask 523264
        %v1626 = vsel %vm1625, %v1441, -inf
        %1627 = vmax.xlane.f32.xlu0 %v1626
        %v1628 = vpop.xlane.xlu0 %1627
        %v1629 = vsel %vm1625, %v1444, -inf
        %1630 = vmax.xlane.f32.xlu0 %v1629
        %v1631 = vpop.xlane.xlu0 %1630
        %v1632 = vsel %vm1625, %v1447, -inf
        %1633 = vmax.xlane.f32.xlu0 %v1632
        %v1634 = vpop.xlane.xlu0 %1633
        %v1635 = vsel %vm1625, %v1450, -inf
        %1636 = vmax.xlane.f32.xlu0 %v1635
        %v1637 = vpop.xlane.xlu0 %1636
        %v1638 = vsel %vm1625, %v1453, -inf
        %1639 = vmax.xlane.f32.xlu0 %v1638
        %v1640 = vpop.xlane.xlu0 %1639
        %v1641 = vsel %vm1625, %v1456, -inf
        %1642 = vmax.xlane.f32.xlu0 %v1641
        %v1643 = vpop.xlane.xlu0 %1642
        %v1644 = vsel %vm1625, %v1459, -inf
        %1645 = vmax.xlane.f32.xlu0 %v1644
        %v1646 = vpop.xlane.xlu0 %1645
        %v1647 = vsel %vm1625, %v1462, -inf
        %1648 = vmax.xlane.f32.xlu0 %v1647
        %v1649 = vpop.xlane.xlu0 %1648
        %v1650 = vsel %vm1625, %v1465, -inf
        %1651 = vmax.xlane.f32.xlu0 %v1650
        %v1652 = vpop.xlane.xlu0 %1651
        %v1653 = vsel %vm1625, %v1468, -inf
        %1654 = vmax.xlane.f32.xlu0 %v1653
        %v1655 = vpop.xlane.xlu0 %1654
        %v1656 = vsel %vm1625, %v1471, -inf
        %1657 = vmax.xlane.f32.xlu0 %v1656
        %v1658 = vpop.xlane.xlu0 %1657
        %v1659 = vsel %vm1625, %v1474, -inf
        %1660 = vmax.xlane.f32.xlu0 %v1659
        %v1661 = vpop.xlane.xlu0 %1660
        %v1662 = vsel %vm1625, %v1477, -inf
        %1663 = vmax.xlane.f32.xlu0 %v1662
        %v1664 = vpop.xlane.xlu0 %1663
        %v1665 = vsel %vm1625, %v1480, -inf
        %1666 = vmax.xlane.f32.xlu0 %v1665
        %v1667 = vpop.xlane.xlu0 %1666
        %v1668 = vsel %vm1625, %v1483, -inf
        %1669 = vmax.xlane.f32.xlu0 %v1668
        %v1670 = vpop.xlane.xlu0 %1669
        %v1671 = vsel %vm1625, %v1486, -inf
        %1672 = vmax.xlane.f32.xlu0 %v1671
        %v1673 = vpop.xlane.xlu0 %1672
        %v1674 = vsel %vm1625, %v1578, -inf
        %1675 = vmax.xlane.f32.xlu0 %v1674
        %v1676 = vpop.xlane.xlu0 %1675
        %v1677 = vsel %vm1625, %v1581, -inf
        %1678 = vmax.xlane.f32.xlu0 %v1677
        %v1679 = vpop.xlane.xlu0 %1678
        %v1680 = vsel %vm1625, %v1584, -inf
        %1681 = vmax.xlane.f32.xlu0 %v1680
        %v1682 = vpop.xlane.xlu0 %1681
        %v1683 = vsel %vm1625, %v1587, -inf
        %1684 = vmax.xlane.f32.xlu0 %v1683
        %v1685 = vpop.xlane.xlu0 %1684
        %v1686 = vsel %vm1625, %v1590, -inf
        %1687 = vmax.xlane.f32.xlu0 %v1686
        %v1688 = vpop.xlane.xlu0 %1687
        %v1689 = vsel %vm1625, %v1593, -inf
        %1690 = vmax.xlane.f32.xlu0 %v1689
        %v1691 = vpop.xlane.xlu0 %1690
        %v1692 = vsel %vm1625, %v1596, -inf
        %1693 = vmax.xlane.f32.xlu0 %v1692
        %v1694 = vpop.xlane.xlu0 %1693
        %v1695 = vsel %vm1625, %v1599, -inf
        %1696 = vmax.xlane.f32.xlu0 %v1695
        %v1697 = vpop.xlane.xlu0 %1696
        %v1698 = vsel %vm1625, %v1602, -inf
        %1699 = vmax.xlane.f32.xlu0 %v1698
        %v1700 = vpop.xlane.xlu0 %1699
        %v1701 = vsel %vm1625, %v1605, -inf
        %1702 = vmax.xlane.f32.xlu0 %v1701
        %v1703 = vpop.xlane.xlu0 %1702
        %v1704 = vsel %vm1625, %v1608, -inf
        %1705 = vmax.xlane.f32.xlu0 %v1704
        %v1706 = vpop.xlane.xlu0 %1705
        %v1707 = vsel %vm1625, %v1611, -inf
        %1708 = vmax.xlane.f32.xlu0 %v1707
        %v1709 = vpop.xlane.xlu0 %1708
        %v1710 = vsel %vm1625, %v1614, -inf
        %1711 = vmax.xlane.f32.xlu0 %v1710
        %v1712 = vpop.xlane.xlu0 %1711
        %v1713 = vsel %vm1625, %v1617, -inf
        %1714 = vmax.xlane.f32.xlu0 %v1713
        %v1715 = vpop.xlane.xlu0 %1714
        %v1716 = vsel %vm1625, %v1620, -inf
        %1717 = vmax.xlane.f32.xlu0 %v1716
        %v1718 = vpop.xlane.xlu0 %1717
        %v1719 = vsel %vm1625, %v1623, -inf
        %1720 = vmax.xlane.f32.xlu0 %v1719
        %v1721 = vpop.xlane.xlu0 %1720
        %v1722 = vsub.f32 %v1441, %v1628
        %v1723 = vsub.f32 %v1444, %v1631
        %v1724 = vsub.f32 %v1447, %v1634
        %v1725 = vsub.f32 %v1450, %v1637
        %v1726 = vsub.f32 %v1453, %v1640
        %v1727 = vsub.f32 %v1456, %v1643
        %v1728 = vsub.f32 %v1459, %v1646
        %v1729 = vsub.f32 %v1462, %v1649
        %v1730 = vsub.f32 %v1465, %v1652
        %v1731 = vsub.f32 %v1468, %v1655
        %v1732 = vsub.f32 %v1471, %v1658
        %v1733 = vsub.f32 %v1474, %v1661
        %v1734 = vsub.f32 %v1477, %v1664
        %v1735 = vsub.f32 %v1480, %v1667
        %v1736 = vsub.f32 %v1483, %v1670
        %v1737 = vsub.f32 %v1486, %v1673
        %v1738 = vsub.f32 %v1578, %v1676
        %v1739 = vsub.f32 %v1581, %v1679
        %v1740 = vsub.f32 %v1584, %v1682
        %v1741 = vsub.f32 %v1587, %v1685
        %v1742 = vsub.f32 %v1590, %v1688
        %v1743 = vsub.f32 %v1593, %v1691
        %v1744 = vsub.f32 %v1596, %v1694
        %v1745 = vsub.f32 %v1599, %v1697
        %v1746 = vsub.f32 %v1602, %v1700
        %v1747 = vsub.f32 %v1605, %v1703
        %v1748 = vsub.f32 %v1608, %v1706
        %v1749 = vsub.f32 %v1611, %v1709
        %v1750 = vsub.f32 %v1614, %v1712
        %v1751 = vsub.f32 %v1617, %v1715
        %v1752 = vsub.f32 %v1620, %v1718
        %v1753 = vsub.f32 %v1623, %v1721
        %v1754 = vmul.f32 %v1722, 1.442695
        %v1755 = vpow.pop %v1754
        %v1756 = vmul.f32 %v1723, 1.442695
        %v1757 = vpow.pop %v1756
        %v1758 = vmul.f32 %v1724, 1.442695
        %v1759 = vpow.pop %v1758
        %v1760 = vmul.f32 %v1725, 1.442695
        %v1761 = vpow.pop %v1760
        %v1762 = vmul.f32 %v1726, 1.442695
        %v1763 = vpow.pop %v1762
        %v1764 = vmul.f32 %v1727, 1.442695
        %v1765 = vpow.pop %v1764
        %v1766 = vmul.f32 %v1728, 1.442695
        %v1767 = vpow.pop %v1766
        %v1768 = vmul.f32 %v1729, 1.442695
        %v1769 = vpow.pop %v1768
        %v1770 = vmul.f32 %v1730, 1.442695
        %v1771 = vpow.pop %v1770
        %v1772 = vmul.f32 %v1731, 1.442695
        %v1773 = vpow.pop %v1772
        %v1774 = vmul.f32 %v1732, 1.442695
        %v1775 = vpow.pop %v1774
        %v1776 = vmul.f32 %v1733, 1.442695
        %v1777 = vpow.pop %v1776
        %v1778 = vmul.f32 %v1734, 1.442695
        %v1779 = vpow.pop %v1778
        %v1780 = vmul.f32 %v1735, 1.442695
        %v1781 = vpow.pop %v1780
        %v1782 = vmul.f32 %v1736, 1.442695
        %v1783 = vpow.pop %v1782
        %v1784 = vmul.f32 %v1737, 1.442695
        %v1785 = vpow.pop %v1784
        %v1786 = vmul.f32 %v1738, 1.442695
        %v1787 = vpow.pop %v1786
        %v1788 = vmul.f32 %v1739, 1.442695
        %v1789 = vpow.pop %v1788
        %v1790 = vmul.f32 %v1740, 1.442695
        %v1791 = vpow.pop %v1790
        %v1792 = vmul.f32 %v1741, 1.442695
        %v1793 = vpow.pop %v1792
        %v1794 = vmul.f32 %v1742, 1.442695
        %v1795 = vpow.pop %v1794
        %v1796 = vmul.f32 %v1743, 1.442695
        %v1797 = vpow.pop %v1796
        %v1798 = vmul.f32 %v1744, 1.442695
        %v1799 = vpow.pop %v1798
        %v1800 = vmul.f32 %v1745, 1.442695
        %v1801 = vpow.pop %v1800
        %v1802 = vmul.f32 %v1746, 1.442695
        %v1803 = vpow.pop %v1802
        %v1804 = vmul.f32 %v1747, 1.442695
        %v1805 = vpow.pop %v1804
        %v1806 = vmul.f32 %v1748, 1.442695
        %v1807 = vpow.pop %v1806
        %v1808 = vmul.f32 %v1749, 1.442695
        %v1809 = vpow.pop %v1808
        %v1810 = vmul.f32 %v1750, 1.442695
        %v1811 = vpow.pop %v1810
        %v1812 = vmul.f32 %v1751, 1.442695
        %v1813 = vpow.pop %v1812
        %v1814 = vmul.f32 %v1752, 1.442695
        %v1815 = vpow.pop %v1814
        %v1816 = vmul.f32 %v1753, 1.442695
        %v1817 = vpow.pop %v1816
        %v1818 = vsel %vm1625, %v1755, 0.0
        %1819 = vadd.xlane.f32.xlu0 %v1818
        %v1820 = vpop.xlane.xlu0 %1819
        %v1821 = vsel %vm1625, %v1757, 0.0
        %1822 = vadd.xlane.f32.xlu0 %v1821
        %v1823 = vpop.xlane.xlu0 %1822
        %v1824 = vsel %vm1625, %v1759, 0.0
        %1825 = vadd.xlane.f32.xlu0 %v1824
        %v1826 = vpop.xlane.xlu0 %1825
        %v1827 = vsel %vm1625, %v1761, 0.0
        %1828 = vadd.xlane.f32.xlu0 %v1827
        %v1829 = vpop.xlane.xlu0 %1828
        %v1830 = vsel %vm1625, %v1763, 0.0
        %1831 = vadd.xlane.f32.xlu0 %v1830
        %v1832 = vpop.xlane.xlu0 %1831
        %v1833 = vsel %vm1625, %v1765, 0.0
        %1834 = vadd.xlane.f32.xlu0 %v1833
        %v1835 = vpop.xlane.xlu0 %1834
        %v1836 = vsel %vm1625, %v1767, 0.0
        %1837 = vadd.xlane.f32.xlu0 %v1836
        %v1838 = vpop.xlane.xlu0 %1837
        %v1839 = vsel %vm1625, %v1769, 0.0
        %1840 = vadd.xlane.f32.xlu0 %v1839
        %v1841 = vpop.xlane.xlu0 %1840
        %v1842 = vsel %vm1625, %v1771, 0.0
        %1843 = vadd.xlane.f32.xlu0 %v1842
        %v1844 = vpop.xlane.xlu0 %1843
        %v1845 = vsel %vm1625, %v1773, 0.0
        %1846 = vadd.xlane.f32.xlu0 %v1845
        %v1847 = vpop.xlane.xlu0 %1846
        %v1848 = vsel %vm1625, %v1775, 0.0
        %1849 = vadd.xlane.f32.xlu0 %v1848
        %v1850 = vpop.xlane.xlu0 %1849
        %v1851 = vsel %vm1625, %v1777, 0.0
        %1852 = vadd.xlane.f32.xlu0 %v1851
        %v1853 = vpop.xlane.xlu0 %1852
        %v1854 = vsel %vm1625, %v1779, 0.0
        %1855 = vadd.xlane.f32.xlu0 %v1854
        %v1856 = vpop.xlane.xlu0 %1855
        %v1857 = vsel %vm1625, %v1781, 0.0
        %1858 = vadd.xlane.f32.xlu0 %v1857
        %v1859 = vpop.xlane.xlu0 %1858
        %v1860 = vsel %vm1625, %v1783, 0.0
        %1861 = vadd.xlane.f32.xlu0 %v1860
        %v1862 = vpop.xlane.xlu0 %1861
        %v1863 = vsel %vm1625, %v1785, 0.0
        %1864 = vadd.xlane.f32.xlu0 %v1863
        %v1865 = vpop.xlane.xlu0 %1864
        %v1866 = vsel %vm1625, %v1787, 0.0
        %1867 = vadd.xlane.f32.xlu0 %v1866
        %v1868 = vpop.xlane.xlu0 %1867
        %v1869 = vsel %vm1625, %v1789, 0.0
        %1870 = vadd.xlane.f32.xlu0 %v1869
        %v1871 = vpop.xlane.xlu0 %1870
        %v1872 = vsel %vm1625, %v1791, 0.0
        %1873 = vadd.xlane.f32.xlu0 %v1872
        %v1874 = vpop.xlane.xlu0 %1873
        %v1875 = vsel %vm1625, %v1793, 0.0
        %1876 = vadd.xlane.f32.xlu0 %v1875
        %v1877 = vpop.xlane.xlu0 %1876
        %v1878 = vsel %vm1625, %v1795, 0.0
        %1879 = vadd.xlane.f32.xlu0 %v1878
        %v1880 = vpop.xlane.xlu0 %1879
        %v1881 = vsel %vm1625, %v1797, 0.0
        %1882 = vadd.xlane.f32.xlu0 %v1881
        %v1883 = vpop.xlane.xlu0 %1882
        %v1884 = vsel %vm1625, %v1799, 0.0
        %1885 = vadd.xlane.f32.xlu0 %v1884
        %v1886 = vpop.xlane.xlu0 %1885
        %v1887 = vsel %vm1625, %v1801, 0.0
        %1888 = vadd.xlane.f32.xlu0 %v1887
        %v1889 = vpop.xlane.xlu0 %1888
        %v1890 = vsel %vm1625, %v1803, 0.0
        %1891 = vadd.xlane.f32.xlu0 %v1890
        %v1892 = vpop.xlane.xlu0 %1891
        %v1893 = vsel %vm1625, %v1805, 0.0
        %1894 = vadd.xlane.f32.xlu0 %v1893
        %v1895 = vpop.xlane.xlu0 %1894
        %v1896 = vsel %vm1625, %v1807, 0.0
        %1897 = vadd.xlane.f32.xlu0 %v1896
        %v1898 = vpop.xlane.xlu0 %1897
        %v1899 = vsel %vm1625, %v1809, 0.0
        %1900 = vadd.xlane.f32.xlu0 %v1899
        %v1901 = vpop.xlane.xlu0 %1900
        %v1902 = vsel %vm1625, %v1811, 0.0
        %1903 = vadd.xlane.f32.xlu0 %v1902
        %v1904 = vpop.xlane.xlu0 %1903
        %v1905 = vsel %vm1625, %v1813, 0.0
        %1906 = vadd.xlane.f32.xlu0 %v1905
        %v1907 = vpop.xlane.xlu0 %1906
        %v1908 = vsel %vm1625, %v1815, 0.0
        %1909 = vadd.xlane.f32.xlu0 %v1908
        %v1910 = vpop.xlane.xlu0 %1909
        %v1911 = vsel %vm1625, %v1817, 0.0
        %1912 = vadd.xlane.f32.xlu0 %v1911
        %v1913 = vpop.xlane.xlu0 %1912
        %v1914 = vrcp.pop %v1820
        %v1915 = vmul.f32 %v1820, %v1914
        %v1916 = vsub.f32 1.0, %v1915
        %v1917 = vmul.f32 %v1914, %v1916
        %v1918 = vadd.f32 %v1914, %v1917
        %vm1919 = vweird.f32 %v1820
        %vm1920 = vweird.f32 %v1914
        %vm1921 = vmor %vm1919, %vm1920
        %v1922 = vsel %vm1921, %v1914, %v1918
        %v1923 = vand.u32 2147483647, %v1820
        %vm1924 = vcmp.eq.f32.partialorder %v1923, 8.507059e+37
        %v1925 = vand.u32 %v1820, 2147483648
        %v1926 = vor.u32 1.1754944e-38, %v1925
        %v1927 = vsel %vm1924, %v1926, %v1922
        %v1928 = vmul.f32 %v1755, %v1927
        %v1929 = vrcp.pop %v1823
        %v1930 = vmul.f32 %v1823, %v1929
        %v1931 = vsub.f32 1.0, %v1930
        %v1932 = vmul.f32 %v1929, %v1931
        %v1933 = vadd.f32 %v1929, %v1932
        %vm1934 = vweird.f32 %v1823
        %vm1935 = vweird.f32 %v1929
        %vm1936 = vmor %vm1934, %vm1935
        %v1937 = vsel %vm1936, %v1929, %v1933
        %v1938 = vand.u32 2147483647, %v1823
        %vm1939 = vcmp.eq.f32.partialorder %v1938, 8.507059e+37
        %v1940 = vand.u32 %v1823, 2147483648
        %v1941 = vor.u32 1.1754944e-38, %v1940
        %v1942 = vsel %vm1939, %v1941, %v1937
        %v1943 = vmul.f32 %v1757, %v1942
        %v1944 = vrcp.pop %v1826
        %v1945 = vmul.f32 %v1826, %v1944
        %v1946 = vsub.f32 1.0, %v1945
        %v1947 = vmul.f32 %v1944, %v1946
        %v1948 = vadd.f32 %v1944, %v1947
        %vm1949 = vweird.f32 %v1826
        %vm1950 = vweird.f32 %v1944
        %vm1951 = vmor %vm1949, %vm1950
        %v1952 = vsel %vm1951, %v1944, %v1948
        %v1953 = vand.u32 2147483647, %v1826
        %vm1954 = vcmp.eq.f32.partialorder %v1953, 8.507059e+37
        %v1955 = vand.u32 %v1826, 2147483648
        %v1956 = vor.u32 1.1754944e-38, %v1955
        %v1957 = vsel %vm1954, %v1956, %v1952
        %v1958 = vmul.f32 %v1759, %v1957
        %v1959 = vrcp.pop %v1829
        %v1960 = vmul.f32 %v1829, %v1959
        %v1961 = vsub.f32 1.0, %v1960
        %v1962 = vmul.f32 %v1959, %v1961
        %v1963 = vadd.f32 %v1959, %v1962
        %vm1964 = vweird.f32 %v1829
        %vm1965 = vweird.f32 %v1959
        %vm1966 = vmor %vm1964, %vm1965
        %v1967 = vsel %vm1966, %v1959, %v1963
        %v1968 = vand.u32 2147483647, %v1829
        %vm1969 = vcmp.eq.f32.partialorder %v1968, 8.507059e+37
        %v1970 = vand.u32 %v1829, 2147483648
        %v1971 = vor.u32 1.1754944e-38, %v1970
        %v1972 = vsel %vm1969, %v1971, %v1967
        %v1973 = vmul.f32 %v1761, %v1972
        %v1974 = vrcp.pop %v1832
        %v1975 = vmul.f32 %v1832, %v1974
        %v1976 = vsub.f32 1.0, %v1975
        %v1977 = vmul.f32 %v1974, %v1976
        %v1978 = vadd.f32 %v1974, %v1977
        %vm1979 = vweird.f32 %v1832
        %vm1980 = vweird.f32 %v1974
        %vm1981 = vmor %vm1979, %vm1980
        %v1982 = vsel %vm1981, %v1974, %v1978
        %v1983 = vand.u32 2147483647, %v1832
        %vm1984 = vcmp.eq.f32.partialorder %v1983, 8.507059e+37
        %v1985 = vand.u32 %v1832, 2147483648
        %v1986 = vor.u32 1.1754944e-38, %v1985
        %v1987 = vsel %vm1984, %v1986, %v1982
        %v1988 = vmul.f32 %v1763, %v1987
        %v1989 = vrcp.pop %v1835
        %v1990 = vmul.f32 %v1835, %v1989
        %v1991 = vsub.f32 1.0, %v1990
        %v1992 = vmul.f32 %v1989, %v1991
        %v1993 = vadd.f32 %v1989, %v1992
        %vm1994 = vweird.f32 %v1835
        %vm1995 = vweird.f32 %v1989
        %vm1996 = vmor %vm1994, %vm1995
        %v1997 = vsel %vm1996, %v1989, %v1993
        %v1998 = vand.u32 2147483647, %v1835
        %vm1999 = vcmp.eq.f32.partialorder %v1998, 8.507059e+37
        %v2000 = vand.u32 %v1835, 2147483648
        %v2001 = vor.u32 1.1754944e-38, %v2000
        %v2002 = vsel %vm1999, %v2001, %v1997
        %v2003 = vmul.f32 %v1765, %v2002
        %v2004 = vrcp.pop %v1838
        %v2005 = vmul.f32 %v1838, %v2004
        %v2006 = vsub.f32 1.0, %v2005
        %v2007 = vmul.f32 %v2004, %v2006
        %v2008 = vadd.f32 %v2004, %v2007
        %vm2009 = vweird.f32 %v1838
        %vm2010 = vweird.f32 %v2004
        %vm2011 = vmor %vm2009, %vm2010
        %v2012 = vsel %vm2011, %v2004, %v2008
        %v2013 = vand.u32 2147483647, %v1838
        %vm2014 = vcmp.eq.f32.partialorder %v2013, 8.507059e+37
        %v2015 = vand.u32 %v1838, 2147483648
        %v2016 = vor.u32 1.1754944e-38, %v2015
        %v2017 = vsel %vm2014, %v2016, %v2012
        %v2018 = vmul.f32 %v1767, %v2017
        %v2019 = vrcp.pop %v1841
        %v2020 = vmul.f32 %v1841, %v2019
        %v2021 = vsub.f32 1.0, %v2020
        %v2022 = vmul.f32 %v2019, %v2021
        %v2023 = vadd.f32 %v2019, %v2022
        %vm2024 = vweird.f32 %v1841
        %vm2025 = vweird.f32 %v2019
        %vm2026 = vmor %vm2024, %vm2025
        %v2027 = vsel %vm2026, %v2019, %v2023
        %v2028 = vand.u32 2147483647, %v1841
        %vm2029 = vcmp.eq.f32.partialorder %v2028, 8.507059e+37
        %v2030 = vand.u32 %v1841, 2147483648
        %v2031 = vor.u32 1.1754944e-38, %v2030
        %v2032 = vsel %vm2029, %v2031, %v2027
        %v2033 = vmul.f32 %v1769, %v2032
        %v2034 = vrcp.pop %v1844
        %v2035 = vmul.f32 %v1844, %v2034
        %v2036 = vsub.f32 1.0, %v2035
        %v2037 = vmul.f32 %v2034, %v2036
        %v2038 = vadd.f32 %v2034, %v2037
        %vm2039 = vweird.f32 %v1844
        %vm2040 = vweird.f32 %v2034
        %vm2041 = vmor %vm2039, %vm2040
        %v2042 = vsel %vm2041, %v2034, %v2038
        %v2043 = vand.u32 2147483647, %v1844
        %vm2044 = vcmp.eq.f32.partialorder %v2043, 8.507059e+37
        %v2045 = vand.u32 %v1844, 2147483648
        %v2046 = vor.u32 1.1754944e-38, %v2045
        %v2047 = vsel %vm2044, %v2046, %v2042
        %v2048 = vmul.f32 %v1771, %v2047
        %v2049 = vrcp.pop %v1847
        %v2050 = vmul.f32 %v1847, %v2049
        %v2051 = vsub.f32 1.0, %v2050
        %v2052 = vmul.f32 %v2049, %v2051
        %v2053 = vadd.f32 %v2049, %v2052
        %vm2054 = vweird.f32 %v1847
        %vm2055 = vweird.f32 %v2049
        %vm2056 = vmor %vm2054, %vm2055
        %v2057 = vsel %vm2056, %v2049, %v2053
        %v2058 = vand.u32 2147483647, %v1847
        %vm2059 = vcmp.eq.f32.partialorder %v2058, 8.507059e+37
        %v2060 = vand.u32 %v1847, 2147483648
        %v2061 = vor.u32 1.1754944e-38, %v2060
        %v2062 = vsel %vm2059, %v2061, %v2057
        %v2063 = vmul.f32 %v1773, %v2062
        %v2064 = vrcp.pop %v1850
        %v2065 = vmul.f32 %v1850, %v2064
        %v2066 = vsub.f32 1.0, %v2065
        %v2067 = vmul.f32 %v2064, %v2066
        %v2068 = vadd.f32 %v2064, %v2067
        %vm2069 = vweird.f32 %v1850
        %vm2070 = vweird.f32 %v2064
        %vm2071 = vmor %vm2069, %vm2070
        %v2072 = vsel %vm2071, %v2064, %v2068
        %v2073 = vand.u32 2147483647, %v1850
        %vm2074 = vcmp.eq.f32.partialorder %v2073, 8.507059e+37
        %v2075 = vand.u32 %v1850, 2147483648
        %v2076 = vor.u32 1.1754944e-38, %v2075
        %v2077 = vsel %vm2074, %v2076, %v2072
        %v2078 = vmul.f32 %v1775, %v2077
        %v2079 = vrcp.pop %v1853
        %v2080 = vmul.f32 %v1853, %v2079
        %v2081 = vsub.f32 1.0, %v2080
        %v2082 = vmul.f32 %v2079, %v2081
        %v2083 = vadd.f32 %v2079, %v2082
        %vm2084 = vweird.f32 %v1853
        %vm2085 = vweird.f32 %v2079
        %vm2086 = vmor %vm2084, %vm2085
        %v2087 = vsel %vm2086, %v2079, %v2083
        %v2088 = vand.u32 2147483647, %v1853
        %vm2089 = vcmp.eq.f32.partialorder %v2088, 8.507059e+37
        %v2090 = vand.u32 %v1853, 2147483648
        %v2091 = vor.u32 1.1754944e-38, %v2090
        %v2092 = vsel %vm2089, %v2091, %v2087
        %v2093 = vmul.f32 %v1777, %v2092
        %v2094 = vrcp.pop %v1856
        %v2095 = vmul.f32 %v1856, %v2094
        %v2096 = vsub.f32 1.0, %v2095
        %v2097 = vmul.f32 %v2094, %v2096
        %v2098 = vadd.f32 %v2094, %v2097
        %vm2099 = vweird.f32 %v1856
        %vm2100 = vweird.f32 %v2094
        %vm2101 = vmor %vm2099, %vm2100
        %v2102 = vsel %vm2101, %v2094, %v2098
        %v2103 = vand.u32 2147483647, %v1856
        %vm2104 = vcmp.eq.f32.partialorder %v2103, 8.507059e+37
        %v2105 = vand.u32 %v1856, 2147483648
        %v2106 = vor.u32 1.1754944e-38, %v2105
        %v2107 = vsel %vm2104, %v2106, %v2102
        %v2108 = vmul.f32 %v1779, %v2107
        %v2109 = vrcp.pop %v1859
        %v2110 = vmul.f32 %v1859, %v2109
        %v2111 = vsub.f32 1.0, %v2110
        %v2112 = vmul.f32 %v2109, %v2111
        %v2113 = vadd.f32 %v2109, %v2112
        %vm2114 = vweird.f32 %v1859
        %vm2115 = vweird.f32 %v2109
        %vm2116 = vmor %vm2114, %vm2115
        %v2117 = vsel %vm2116, %v2109, %v2113
        %v2118 = vand.u32 2147483647, %v1859
        %vm2119 = vcmp.eq.f32.partialorder %v2118, 8.507059e+37
        %v2120 = vand.u32 %v1859, 2147483648
        %v2121 = vor.u32 1.1754944e-38, %v2120
        %v2122 = vsel %vm2119, %v2121, %v2117
        %v2123 = vmul.f32 %v1781, %v2122
        %v2124 = vrcp.pop %v1862
        %v2125 = vmul.f32 %v1862, %v2124
        %v2126 = vsub.f32 1.0, %v2125
        %v2127 = vmul.f32 %v2124, %v2126
        %v2128 = vadd.f32 %v2124, %v2127
        %vm2129 = vweird.f32 %v1862
        %vm2130 = vweird.f32 %v2124
        %vm2131 = vmor %vm2129, %vm2130
        %v2132 = vsel %vm2131, %v2124, %v2128
        %v2133 = vand.u32 2147483647, %v1862
        %vm2134 = vcmp.eq.f32.partialorder %v2133, 8.507059e+37
        %v2135 = vand.u32 %v1862, 2147483648
        %v2136 = vor.u32 1.1754944e-38, %v2135
        %v2137 = vsel %vm2134, %v2136, %v2132
        %v2138 = vmul.f32 %v1783, %v2137
        %v2139 = vrcp.pop %v1865
        %v2140 = vmul.f32 %v1865, %v2139
        %v2141 = vsub.f32 1.0, %v2140
        %v2142 = vmul.f32 %v2139, %v2141
        %v2143 = vadd.f32 %v2139, %v2142
        %vm2144 = vweird.f32 %v1865
        %vm2145 = vweird.f32 %v2139
        %vm2146 = vmor %vm2144, %vm2145
        %v2147 = vsel %vm2146, %v2139, %v2143
        %v2148 = vand.u32 2147483647, %v1865
        %vm2149 = vcmp.eq.f32.partialorder %v2148, 8.507059e+37
        %v2150 = vand.u32 %v1865, 2147483648
        %v2151 = vor.u32 1.1754944e-38, %v2150
        %v2152 = vsel %vm2149, %v2151, %v2147
        %v2153 = vmul.f32 %v1785, %v2152
        %v2154 = vrcp.pop %v1868
        %v2155 = vmul.f32 %v1868, %v2154
        %v2156 = vsub.f32 1.0, %v2155
        %v2157 = vmul.f32 %v2154, %v2156
        %v2158 = vadd.f32 %v2154, %v2157
        %vm2159 = vweird.f32 %v1868
        %vm2160 = vweird.f32 %v2154
        %vm2161 = vmor %vm2159, %vm2160
        %v2162 = vsel %vm2161, %v2154, %v2158
        %v2163 = vand.u32 2147483647, %v1868
        %vm2164 = vcmp.eq.f32.partialorder %v2163, 8.507059e+37
        %v2165 = vand.u32 %v1868, 2147483648
        %v2166 = vor.u32 1.1754944e-38, %v2165
        %v2167 = vsel %vm2164, %v2166, %v2162
        %v2168 = vmul.f32 %v1787, %v2167
        %v2169 = vrcp.pop %v1871
        %v2170 = vmul.f32 %v1871, %v2169
        %v2171 = vsub.f32 1.0, %v2170
        %v2172 = vmul.f32 %v2169, %v2171
        %v2173 = vadd.f32 %v2169, %v2172
        %vm2174 = vweird.f32 %v1871
        %vm2175 = vweird.f32 %v2169
        %vm2176 = vmor %vm2174, %vm2175
        %v2177 = vsel %vm2176, %v2169, %v2173
        %v2178 = vand.u32 2147483647, %v1871
        %vm2179 = vcmp.eq.f32.partialorder %v2178, 8.507059e+37
        %v2180 = vand.u32 %v1871, 2147483648
        %v2181 = vor.u32 1.1754944e-38, %v2180
        %v2182 = vsel %vm2179, %v2181, %v2177
        %v2183 = vmul.f32 %v1789, %v2182
        %v2184 = vrcp.pop %v1874
        %v2185 = vmul.f32 %v1874, %v2184
        %v2186 = vsub.f32 1.0, %v2185
        %v2187 = vmul.f32 %v2184, %v2186
        %v2188 = vadd.f32 %v2184, %v2187
        %vm2189 = vweird.f32 %v1874
        %vm2190 = vweird.f32 %v2184
        %vm2191 = vmor %vm2189, %vm2190
        %v2192 = vsel %vm2191, %v2184, %v2188
        %v2193 = vand.u32 2147483647, %v1874
        %vm2194 = vcmp.eq.f32.partialorder %v2193, 8.507059e+37
        %v2195 = vand.u32 %v1874, 2147483648
        %v2196 = vor.u32 1.1754944e-38, %v2195
        %v2197 = vsel %vm2194, %v2196, %v2192
        %v2198 = vmul.f32 %v1791, %v2197
        %v2199 = vrcp.pop %v1877
        %v2200 = vmul.f32 %v1877, %v2199
        %v2201 = vsub.f32 1.0, %v2200
        %v2202 = vmul.f32 %v2199, %v2201
        %v2203 = vadd.f32 %v2199, %v2202
        %vm2204 = vweird.f32 %v1877
        %vm2205 = vweird.f32 %v2199
        %vm2206 = vmor %vm2204, %vm2205
        %v2207 = vsel %vm2206, %v2199, %v2203
        %v2208 = vand.u32 2147483647, %v1877
        %vm2209 = vcmp.eq.f32.partialorder %v2208, 8.507059e+37
        %v2210 = vand.u32 %v1877, 2147483648
        %v2211 = vor.u32 1.1754944e-38, %v2210
        %v2212 = vsel %vm2209, %v2211, %v2207
        %v2213 = vmul.f32 %v1793, %v2212
        %v2214 = vrcp.pop %v1880
        %v2215 = vmul.f32 %v1880, %v2214
        %v2216 = vsub.f32 1.0, %v2215
        %v2217 = vmul.f32 %v2214, %v2216
        %v2218 = vadd.f32 %v2214, %v2217
        %vm2219 = vweird.f32 %v1880
        %vm2220 = vweird.f32 %v2214
        %vm2221 = vmor %vm2219, %vm2220
        %v2222 = vsel %vm2221, %v2214, %v2218
        %v2223 = vand.u32 2147483647, %v1880
        %vm2224 = vcmp.eq.f32.partialorder %v2223, 8.507059e+37
        %v2225 = vand.u32 %v1880, 2147483648
        %v2226 = vor.u32 1.1754944e-38, %v2225
        %v2227 = vsel %vm2224, %v2226, %v2222
        %v2228 = vmul.f32 %v1795, %v2227
        %v2229 = vrcp.pop %v1883
        %v2230 = vmul.f32 %v1883, %v2229
        %v2231 = vsub.f32 1.0, %v2230
        %v2232 = vmul.f32 %v2229, %v2231
        %v2233 = vadd.f32 %v2229, %v2232
        %vm2234 = vweird.f32 %v1883
        %vm2235 = vweird.f32 %v2229
        %vm2236 = vmor %vm2234, %vm2235
        %v2237 = vsel %vm2236, %v2229, %v2233
        %v2238 = vand.u32 2147483647, %v1883
        %vm2239 = vcmp.eq.f32.partialorder %v2238, 8.507059e+37
        %v2240 = vand.u32 %v1883, 2147483648
        %v2241 = vor.u32 1.1754944e-38, %v2240
        %v2242 = vsel %vm2239, %v2241, %v2237
        %v2243 = vmul.f32 %v1797, %v2242
        %v2244 = vrcp.pop %v1886
        %v2245 = vmul.f32 %v1886, %v2244
        %v2246 = vsub.f32 1.0, %v2245
        %v2247 = vmul.f32 %v2244, %v2246
        %v2248 = vadd.f32 %v2244, %v2247
        %vm2249 = vweird.f32 %v1886
        %vm2250 = vweird.f32 %v2244
        %vm2251 = vmor %vm2249, %vm2250
        %v2252 = vsel %vm2251, %v2244, %v2248
        %v2253 = vand.u32 2147483647, %v1886
        %vm2254 = vcmp.eq.f32.partialorder %v2253, 8.507059e+37
        %v2255 = vand.u32 %v1886, 2147483648
        %v2256 = vor.u32 1.1754944e-38, %v2255
        %v2257 = vsel %vm2254, %v2256, %v2252
        %v2258 = vmul.f32 %v1799, %v2257
        %v2259 = vrcp.pop %v1889
        %v2260 = vmul.f32 %v1889, %v2259
        %v2261 = vsub.f32 1.0, %v2260
        %v2262 = vmul.f32 %v2259, %v2261
        %v2263 = vadd.f32 %v2259, %v2262
        %vm2264 = vweird.f32 %v1889
        %vm2265 = vweird.f32 %v2259
        %vm2266 = vmor %vm2264, %vm2265
        %v2267 = vsel %vm2266, %v2259, %v2263
        %v2268 = vand.u32 2147483647, %v1889
        %vm2269 = vcmp.eq.f32.partialorder %v2268, 8.507059e+37
        %v2270 = vand.u32 %v1889, 2147483648
        %v2271 = vor.u32 1.1754944e-38, %v2270
        %v2272 = vsel %vm2269, %v2271, %v2267
        %v2273 = vmul.f32 %v1801, %v2272
        %v2274 = vrcp.pop %v1892
        %v2275 = vmul.f32 %v1892, %v2274
        %v2276 = vsub.f32 1.0, %v2275
        %v2277 = vmul.f32 %v2274, %v2276
        %v2278 = vadd.f32 %v2274, %v2277
        %vm2279 = vweird.f32 %v1892
        %vm2280 = vweird.f32 %v2274
        %vm2281 = vmor %vm2279, %vm2280
        %v2282 = vsel %vm2281, %v2274, %v2278
        %v2283 = vand.u32 2147483647, %v1892
        %vm2284 = vcmp.eq.f32.partialorder %v2283, 8.507059e+37
        %v2285 = vand.u32 %v1892, 2147483648
        %v2286 = vor.u32 1.1754944e-38, %v2285
        %v2287 = vsel %vm2284, %v2286, %v2282
        %v2288 = vmul.f32 %v1803, %v2287
        %v2289 = vrcp.pop %v1895
        %v2290 = vmul.f32 %v1895, %v2289
        %v2291 = vsub.f32 1.0, %v2290
        %v2292 = vmul.f32 %v2289, %v2291
        %v2293 = vadd.f32 %v2289, %v2292
        %vm2294 = vweird.f32 %v1895
        %vm2295 = vweird.f32 %v2289
        %vm2296 = vmor %vm2294, %vm2295
        %v2297 = vsel %vm2296, %v2289, %v2293
        %v2298 = vand.u32 2147483647, %v1895
        %vm2299 = vcmp.eq.f32.partialorder %v2298, 8.507059e+37
        %v2300 = vand.u32 %v1895, 2147483648
        %v2301 = vor.u32 1.1754944e-38, %v2300
        %v2302 = vsel %vm2299, %v2301, %v2297
        %v2303 = vmul.f32 %v1805, %v2302
        %v2304 = vrcp.pop %v1898
        %v2305 = vmul.f32 %v1898, %v2304
        %v2306 = vsub.f32 1.0, %v2305
        %v2307 = vmul.f32 %v2304, %v2306
        %v2308 = vadd.f32 %v2304, %v2307
        %vm2309 = vweird.f32 %v1898
        %vm2310 = vweird.f32 %v2304
        %vm2311 = vmor %vm2309, %vm2310
        %v2312 = vsel %vm2311, %v2304, %v2308
        %v2313 = vand.u32 2147483647, %v1898
        %vm2314 = vcmp.eq.f32.partialorder %v2313, 8.507059e+37
        %v2315 = vand.u32 %v1898, 2147483648
        %v2316 = vor.u32 1.1754944e-38, %v2315
        %v2317 = vsel %vm2314, %v2316, %v2312
        %v2318 = vmul.f32 %v1807, %v2317
        %v2319 = vrcp.pop %v1901
        %v2320 = vmul.f32 %v1901, %v2319
        %v2321 = vsub.f32 1.0, %v2320
        %v2322 = vmul.f32 %v2319, %v2321
        %v2323 = vadd.f32 %v2319, %v2322
        %vm2324 = vweird.f32 %v1901
        %vm2325 = vweird.f32 %v2319
        %vm2326 = vmor %vm2324, %vm2325
        %v2327 = vsel %vm2326, %v2319, %v2323
        %v2328 = vand.u32 2147483647, %v1901
        %vm2329 = vcmp.eq.f32.partialorder %v2328, 8.507059e+37
        %v2330 = vand.u32 %v1901, 2147483648
        %v2331 = vor.u32 1.1754944e-38, %v2330
        %v2332 = vsel %vm2329, %v2331, %v2327
        %v2333 = vmul.f32 %v1809, %v2332
        %v2334 = vrcp.pop %v1904
        %v2335 = vmul.f32 %v1904, %v2334
        %v2336 = vsub.f32 1.0, %v2335
        %v2337 = vmul.f32 %v2334, %v2336
        %v2338 = vadd.f32 %v2334, %v2337
        %vm2339 = vweird.f32 %v1904
        %vm2340 = vweird.f32 %v2334
        %vm2341 = vmor %vm2339, %vm2340
        %v2342 = vsel %vm2341, %v2334, %v2338
        %v2343 = vand.u32 2147483647, %v1904
        %vm2344 = vcmp.eq.f32.partialorder %v2343, 8.507059e+37
        %v2345 = vand.u32 %v1904, 2147483648
        %v2346 = vor.u32 1.1754944e-38, %v2345
        %v2347 = vsel %vm2344, %v2346, %v2342
        %v2348 = vmul.f32 %v1811, %v2347
        %v2349 = vrcp.pop %v1907
        %v2350 = vmul.f32 %v1907, %v2349
        %v2351 = vsub.f32 1.0, %v2350
        %v2352 = vmul.f32 %v2349, %v2351
        %v2353 = vadd.f32 %v2349, %v2352
        %vm2354 = vweird.f32 %v1907
        %vm2355 = vweird.f32 %v2349
        %vm2356 = vmor %vm2354, %vm2355
        %v2357 = vsel %vm2356, %v2349, %v2353
        %v2358 = vand.u32 2147483647, %v1907
        %vm2359 = vcmp.eq.f32.partialorder %v2358, 8.507059e+37
        %v2360 = vand.u32 %v1907, 2147483648
        %v2361 = vor.u32 1.1754944e-38, %v2360
        %v2362 = vsel %vm2359, %v2361, %v2357
        %v2363 = vmul.f32 %v1813, %v2362
        %v2364 = vrcp.pop %v1910
        %v2365 = vmul.f32 %v1910, %v2364
        %v2366 = vsub.f32 1.0, %v2365
        %v2367 = vmul.f32 %v2364, %v2366
        %v2368 = vadd.f32 %v2364, %v2367
        %vm2369 = vweird.f32 %v1910
        %vm2370 = vweird.f32 %v2364
        %vm2371 = vmor %vm2369, %vm2370
        %v2372 = vsel %vm2371, %v2364, %v2368
        %v2373 = vand.u32 2147483647, %v1910
        %vm2374 = vcmp.eq.f32.partialorder %v2373, 8.507059e+37
        %v2375 = vand.u32 %v1910, 2147483648
        %v2376 = vor.u32 1.1754944e-38, %v2375
        %v2377 = vsel %vm2374, %v2376, %v2372
        %v2378 = vmul.f32 %v1815, %v2377
        %v2379 = vrcp.pop %v1913
        %v2380 = vmul.f32 %v1913, %v2379
        %v2381 = vsub.f32 1.0, %v2380
        %v2382 = vmul.f32 %v2379, %v2381
        %v2383 = vadd.f32 %v2379, %v2382
        %vm2384 = vweird.f32 %v1913
        %vm2385 = vweird.f32 %v2379
        %vm2386 = vmor %vm2384, %vm2385
        %v2387 = vsel %vm2386, %v2379, %v2383
        %v2388 = vand.u32 2147483647, %v1913
        %vm2389 = vcmp.eq.f32.partialorder %v2388, 8.507059e+37
        %v2390 = vand.u32 %v1913, 2147483648
        %v2391 = vor.u32 1.1754944e-38, %v2390
        %v2392 = vsel %vm2389, %v2391, %v2387
        %v2393 = vmul.f32 %v1817, %v2392
        %2394 = vrot.lane.b32.xlu0 %v1203, 112
        %v2395 = vpop.permute.xlu0 %2394
        %2396 = vrot.lane.b32.xlu0 %v1204, 112
        %v2397 = vpop.permute.xlu0 %2396
        %2398 = vrot.lane.b32.xlu0 %v1205, 112
        %v2399 = vpop.permute.xlu0 %2398
        %2400 = vrot.lane.b32.xlu0 %v1206, 112
        %v2401 = vpop.permute.xlu0 %2400
        %2402 = vrot.lane.b32.xlu0 %v1207, 112
        %v2403 = vpop.permute.xlu0 %2402
        %2404 = vrot.lane.b32.xlu0 %v1208, 112
        %v2405 = vpop.permute.xlu0 %2404
        %2406 = vrot.lane.b32.xlu0 %v1209, 112
        %v2407 = vpop.permute.xlu0 %2406
        %2408 = vrot.lane.b32.xlu0 %v1210, 112
        %v2409 = vpop.permute.xlu0 %2408
        %v2419 = vsel %vm1625, %v1928, 0
        %v2422 = vsel %vm1625, %v1943, 0
        %v2425 = vsel %vm1625, %v1958, 0
        %v2428 = vsel %vm1625, %v1973, 0
        %v2431 = vsel %vm1625, %v1988, 0
        %v2434 = vsel %vm1625, %v2003, 0
        %v2437 = vsel %vm1625, %v2018, 0
        %v2440 = vsel %vm1625, %v2033, 0
        %v2443 = vsel %vm1625, %v2048, 0
        %v2446 = vsel %vm1625, %v2063, 0
        %v2449 = vsel %vm1625, %v2078, 0
        %v2452 = vsel %vm1625, %v2093, 0
        %v2455 = vsel %vm1625, %v2108, 0
        %v2458 = vsel %vm1625, %v2123, 0
        %v2461 = vsel %vm1625, %v2138, 0
        %v2464 = vsel %vm1625, %v2153, 0
        %2466 = vmatpush.msra.mxu0 0.0
        %2467 = vmatpush.msra.mxu0 0.0
        %2468 = vmatpush.msra.mxu0 0.0
        %2469 = vmatpush.msra.mxu0 0.0
        %2470 = vmatpush.msra.mxu0 0.0
        %2471 = vmatpush.msra.mxu0 0.0
        %2472 = vmatpush.msra.mxu0 0.0
        %2473 = vmatpush.msra.mxu0 0.0
        %2474 = vmatpush.msra.mxu0 %v2409
        %2475 = vmatpush.msra.mxu0 %v2407
        %2476 = vmatpush.msra.mxu0 %v2405
        %2477 = vmatpush.msra.mxu0 %v2403
        %2478 = vmatpush.msra.mxu0 %v2401
        %2479 = vmatpush.msra.mxu0 %v2399
        %2480 = vmatpush.msra.mxu0 %v2397
        %2481 = vmatpush.msra.mxu0 %v2395
        %2482 = vmatmul.f32.gmra.mxu0 %v2419
        %v2483 = vpop.f32.mrf.mxu0
        %v2484 = vadd.f32 0.0, %v2483
        %2485 = vmatmul.f32.gmra.mxu0 %v2422
        %v2486 = vpop.f32.mrf.mxu0
        %v2487 = vadd.f32 0.0, %v2486
        %2488 = vmatmul.f32.gmra.mxu0 %v2425
        %v2489 = vpop.f32.mrf.mxu0
        %v2490 = vadd.f32 0.0, %v2489
        %2491 = vmatmul.f32.gmra.mxu0 %v2428
        %v2492 = vpop.f32.mrf.mxu0
        %v2493 = vadd.f32 0.0, %v2492
        %2494 = vmatmul.f32.gmra.mxu0 %v2431
        %v2495 = vpop.f32.mrf.mxu0
        %v2496 = vadd.f32 0.0, %v2495
        %2497 = vmatmul.f32.gmra.mxu0 %v2434
        %v2498 = vpop.f32.mrf.mxu0
        %v2499 = vadd.f32 0.0, %v2498
        %2500 = vmatmul.f32.gmra.mxu0 %v2437
        %v2501 = vpop.f32.mrf.mxu0
        %v2502 = vadd.f32 0.0, %v2501
        %2503 = vmatmul.f32.gmra.mxu0 %v2440
        %v2504 = vpop.f32.mrf.mxu0
        %v2505 = vadd.f32 0.0, %v2504
        %2506 = vmatmul.f32.gmra.mxu0 %v2443
        %v2507 = vpop.f32.mrf.mxu0
        %v2508 = vadd.f32 0.0, %v2507
        %2509 = vmatmul.f32.gmra.mxu0 %v2446
        %v2510 = vpop.f32.mrf.mxu0
        %v2511 = vadd.f32 0.0, %v2510
        %2512 = vmatmul.f32.gmra.mxu0 %v2449
        %v2513 = vpop.f32.mrf.mxu0
        %v2514 = vadd.f32 0.0, %v2513
        %2515 = vmatmul.f32.gmra.mxu0 %v2452
        %v2516 = vpop.f32.mrf.mxu0
        %v2517 = vadd.f32 0.0, %v2516
        %2518 = vmatmul.f32.gmra.mxu0 %v2455
        %v2519 = vpop.f32.mrf.mxu0
        %v2520 = vadd.f32 0.0, %v2519
        %2521 = vmatmul.f32.gmra.mxu0 %v2458
        %v2522 = vpop.f32.mrf.mxu0
        %v2523 = vadd.f32 0.0, %v2522
        %2524 = vmatmul.f32.gmra.mxu0 %v2461
        %v2525 = vpop.f32.mrf.mxu0
        %v2526 = vadd.f32 0.0, %v2525
        %2527 = vmatmul.f32.gmra.mxu0 %v2464
        %v2528 = vpop.f32.mrf.mxu0
        %v2529 = vadd.f32 0.0, %v2528
        %2530 = vdwg.mxu0
        %2531 = vrot.lane.b32.xlu0 %v1211, 112
        %v2532 = vpop.permute.xlu0 %2531
        %2533 = vrot.lane.b32.xlu0 %v1212, 112
        %v2534 = vpop.permute.xlu0 %2533
        %2535 = vrot.lane.b32.xlu0 %v1213, 112
        %v2536 = vpop.permute.xlu0 %2535
        %2537 = vrot.lane.b32.xlu0 %v1214, 112
        %v2538 = vpop.permute.xlu0 %2537
        %2539 = vrot.lane.b32.xlu0 %v1215, 112
        %v2540 = vpop.permute.xlu0 %2539
        %2541 = vrot.lane.b32.xlu0 %v1216, 112
        %v2542 = vpop.permute.xlu0 %2541
        %2543 = vrot.lane.b32.xlu0 %v1217, 112
        %v2544 = vpop.permute.xlu0 %2543
        %2545 = vrot.lane.b32.xlu0 %v1218, 112
        %v2546 = vpop.permute.xlu0 %2545
        %v2556 = vsel %vm1625, %v2168, 0
        %v2559 = vsel %vm1625, %v2183, 0
        %v2562 = vsel %vm1625, %v2198, 0
        %v2565 = vsel %vm1625, %v2213, 0
        %v2568 = vsel %vm1625, %v2228, 0
        %v2571 = vsel %vm1625, %v2243, 0
        %v2574 = vsel %vm1625, %v2258, 0
        %v2577 = vsel %vm1625, %v2273, 0
        %v2580 = vsel %vm1625, %v2288, 0
        %v2583 = vsel %vm1625, %v2303, 0
        %v2586 = vsel %vm1625, %v2318, 0
        %v2589 = vsel %vm1625, %v2333, 0
        %v2592 = vsel %vm1625, %v2348, 0
        %v2595 = vsel %vm1625, %v2363, 0
        %v2598 = vsel %vm1625, %v2378, 0
        %v2601 = vsel %vm1625, %v2393, 0
        %2603 = vmatpush.msra.mxu0 0.0
        %2604 = vmatpush.msra.mxu0 0.0
        %2605 = vmatpush.msra.mxu0 0.0
        %2606 = vmatpush.msra.mxu0 0.0
        %2607 = vmatpush.msra.mxu0 0.0
        %2608 = vmatpush.msra.mxu0 0.0
        %2609 = vmatpush.msra.mxu0 0.0
        %2610 = vmatpush.msra.mxu0 0.0
        %2611 = vmatpush.msra.mxu0 %v2546
        %2612 = vmatpush.msra.mxu0 %v2544
        %2613 = vmatpush.msra.mxu0 %v2542
        %2614 = vmatpush.msra.mxu0 %v2540
        %2615 = vmatpush.msra.mxu0 %v2538
        %2616 = vmatpush.msra.mxu0 %v2536
        %2617 = vmatpush.msra.mxu0 %v2534
        %2618 = vmatpush.msra.mxu0 %v2532
        %2619 = vmatmul.f32.gmra.mxu0 %v2556
        %v2620 = vpop.f32.mrf.mxu0
        %v2621 = vadd.f32 0.0, %v2620
        %2622 = vmatmul.f32.gmra.mxu0 %v2559
        %v2623 = vpop.f32.mrf.mxu0
        %v2624 = vadd.f32 0.0, %v2623
        %2625 = vmatmul.f32.gmra.mxu0 %v2562
        %v2626 = vpop.f32.mrf.mxu0
        %v2627 = vadd.f32 0.0, %v2626
        %2628 = vmatmul.f32.gmra.mxu0 %v2565
        %v2629 = vpop.f32.mrf.mxu0
        %v2630 = vadd.f32 0.0, %v2629
        %2631 = vmatmul.f32.gmra.mxu0 %v2568
        %v2632 = vpop.f32.mrf.mxu0
        %v2633 = vadd.f32 0.0, %v2632
        %2634 = vmatmul.f32.gmra.mxu0 %v2571
        %v2635 = vpop.f32.mrf.mxu0
        %v2636 = vadd.f32 0.0, %v2635
        %2637 = vmatmul.f32.gmra.mxu0 %v2574
        %v2638 = vpop.f32.mrf.mxu0
        %v2639 = vadd.f32 0.0, %v2638
        %2640 = vmatmul.f32.gmra.mxu0 %v2577
        %v2641 = vpop.f32.mrf.mxu0
        %v2642 = vadd.f32 0.0, %v2641
        %2643 = vmatmul.f32.gmra.mxu0 %v2580
        %v2644 = vpop.f32.mrf.mxu0
        %v2645 = vadd.f32 0.0, %v2644
        %2646 = vmatmul.f32.gmra.mxu0 %v2583
        %v2647 = vpop.f32.mrf.mxu0
        %v2648 = vadd.f32 0.0, %v2647
        %2649 = vmatmul.f32.gmra.mxu0 %v2586
        %v2650 = vpop.f32.mrf.mxu0
        %v2651 = vadd.f32 0.0, %v2650
        %2652 = vmatmul.f32.gmra.mxu0 %v2589
        %v2653 = vpop.f32.mrf.mxu0
        %v2654 = vadd.f32 0.0, %v2653
        %2655 = vmatmul.f32.gmra.mxu0 %v2592
        %v2656 = vpop.f32.mrf.mxu0
        %v2657 = vadd.f32 0.0, %v2656
        %2658 = vmatmul.f32.gmra.mxu0 %v2595
        %v2659 = vpop.f32.mrf.mxu0
        %v2660 = vadd.f32 0.0, %v2659
        %2661 = vmatmul.f32.gmra.mxu0 %v2598
        %v2662 = vpop.f32.mrf.mxu0
        %v2663 = vadd.f32 0.0, %v2662
        %2664 = vmatmul.f32.gmra.mxu0 %v2601
        %v2665 = vpop.f32.mrf.mxu0
        %v2666 = vadd.f32 0.0, %v2665
        %2667 = vdwg.mxu0
        %v2668 = vld [vmem:[%s6] sm:$0xff]
        %v2669 = vld [vmem:[%s6 + $0x8] sm:$0xff]
        %v2670 = vperm.slane %v543, 0
        %v2672 = vsel %vm843, %v2484, 0
        %v2675 = vsel %vm843, %v2487, 0
        %v2678 = vsel %vm843, %v2490, 0
        %v2681 = vsel %vm843, %v2493, 0
        %v2684 = vsel %vm843, %v2496, 0
        %v2687 = vsel %vm843, %v2499, 0
        %v2690 = vsel %vm843, %v2502, 0
        %v2693 = vsel %vm843, %v2505, 0
        %v2696 = vsel %vm843, %v2508, 0
        %v2699 = vsel %vm843, %v2511, 0
        %v2702 = vsel %vm843, %v2514, 0
        %v2705 = vsel %vm843, %v2517, 0
        %v2708 = vsel %vm843, %v2520, 0
        %v2711 = vsel %vm843, %v2523, 0
        %v2714 = vsel %vm843, %v2526, 0
        %v2717 = vsel %vm843, %v2529, 0
        %v2720 = vsel %vm843, %v2621, 0
        %v2723 = vsel %vm843, %v2624, 0
        %v2726 = vsel %vm843, %v2627, 0
        %v2729 = vsel %vm843, %v2630, 0
        %v2732 = vsel %vm843, %v2633, 0
        %v2735 = vsel %vm843, %v2636, 0
        %v2738 = vsel %vm843, %v2639, 0
        %v2741 = vsel %vm843, %v2642, 0
        %v2744 = vsel %vm843, %v2645, 0
        %v2747 = vsel %vm843, %v2648, 0
        %v2750 = vsel %vm843, %v2651, 0
        %v2753 = vsel %vm843, %v2654, 0
        %v2756 = vsel %vm843, %v2657, 0
        %v2759 = vsel %vm843, %v2660, 0
        %v2762 = vsel %vm843, %v2663, 0
        %v2765 = vsel %vm843, %v2666, 0
        %2767 = vmatpush.msra.mxu0 0.0
        %2768 = vmatpush.msra.mxu0 0.0
        %2769 = vmatpush.msra.mxu0 0.0
        %2770 = vmatpush.msra.mxu0 0.0
        %2771 = vmatpush.msra.mxu0 0.0
        %2772 = vmatpush.msra.mxu0 0.0
        %2773 = vmatpush.msra.mxu0 0.0
        %2774 = vmatpush.msra.mxu0 0.0
        %2775 = vmatpush.msra.mxu0 0.0
        %2776 = vmatpush.msra.mxu0 0.0
        %2777 = vmatpush.msra.mxu0 0.0
        %2778 = vmatpush.msra.mxu0 0.0
        %2779 = vmatpush.msra.mxu0 0.0
        %2780 = vmatpush.msra.mxu0 0.0
        %2781 = vmatpush.msra.mxu0 %v2669
        %2782 = vmatpush.msra.mxu0 %v2668
        %2783 = vmatmul.f32.gmra.mxu0 %v2672
        %v2784 = vpop.f32.mrf.mxu0
        %v2785 = vadd.f32 %v2670, %v2784
        %2786 = vmatmul.f32.gmra.mxu0 %v2675
        %v2787 = vpop.f32.mrf.mxu0
        %v2788 = vadd.f32 %v2670, %v2787
        %2789 = vmatmul.f32.gmra.mxu0 %v2678
        %v2790 = vpop.f32.mrf.mxu0
        %v2791 = vadd.f32 %v2670, %v2790
        %2792 = vmatmul.f32.gmra.mxu0 %v2681
        %v2793 = vpop.f32.mrf.mxu0
        %v2794 = vadd.f32 %v2670, %v2793
        %2795 = vmatmul.f32.gmra.mxu0 %v2684
        %v2796 = vpop.f32.mrf.mxu0
        %v2797 = vadd.f32 %v2670, %v2796
        %2798 = vmatmul.f32.gmra.mxu0 %v2687
        %v2799 = vpop.f32.mrf.mxu0
        %v2800 = vadd.f32 %v2670, %v2799
        %2801 = vmatmul.f32.gmra.mxu0 %v2690
        %v2802 = vpop.f32.mrf.mxu0
        %v2803 = vadd.f32 %v2670, %v2802
        %2804 = vmatmul.f32.gmra.mxu0 %v2693
        %v2805 = vpop.f32.mrf.mxu0
        %v2806 = vadd.f32 %v2670, %v2805
        %2807 = vmatmul.f32.gmra.mxu0 %v2696
        %v2808 = vpop.f32.mrf.mxu0
        %v2809 = vadd.f32 %v2670, %v2808
        %2810 = vmatmul.f32.gmra.mxu0 %v2699
        %v2811 = vpop.f32.mrf.mxu0
        %v2812 = vadd.f32 %v2670, %v2811
        %2813 = vmatmul.f32.gmra.mxu0 %v2702
        %v2814 = vpop.f32.mrf.mxu0
        %v2815 = vadd.f32 %v2670, %v2814
        %2816 = vmatmul.f32.gmra.mxu0 %v2705
        %v2817 = vpop.f32.mrf.mxu0
        %v2818 = vadd.f32 %v2670, %v2817
        %2819 = vmatmul.f32.gmra.mxu0 %v2708
        %v2820 = vpop.f32.mrf.mxu0
        %v2821 = vadd.f32 %v2670, %v2820
        %2822 = vmatmul.f32.gmra.mxu0 %v2711
        %v2823 = vpop.f32.mrf.mxu0
        %v2824 = vadd.f32 %v2670, %v2823
        %2825 = vmatmul.f32.gmra.mxu0 %v2714
        %v2826 = vpop.f32.mrf.mxu0
        %v2827 = vadd.f32 %v2670, %v2826
        %2828 = vmatmul.f32.gmra.mxu0 %v2717
        %v2829 = vpop.f32.mrf.mxu0
        %v2830 = vadd.f32 %v2670, %v2829
        %2831 = vmatmul.f32.gmra.mxu0 %v2720
        %v2832 = vpop.f32.mrf.mxu0
        %v2833 = vadd.f32 %v2670, %v2832
        %2834 = vmatmul.f32.gmra.mxu0 %v2723
        %v2835 = vpop.f32.mrf.mxu0
        %v2836 = vadd.f32 %v2670, %v2835
        %2837 = vmatmul.f32.gmra.mxu0 %v2726
        %v2838 = vpop.f32.mrf.mxu0
        %v2839 = vadd.f32 %v2670, %v2838
        %2840 = vmatmul.f32.gmra.mxu0 %v2729
        %v2841 = vpop.f32.mrf.mxu0
        %v2842 = vadd.f32 %v2670, %v2841
        %2843 = vmatmul.f32.gmra.mxu0 %v2732
        %v2844 = vpop.f32.mrf.mxu0
        %v2845 = vadd.f32 %v2670, %v2844
        %2846 = vmatmul.f32.gmra.mxu0 %v2735
        %v2847 = vpop.f32.mrf.mxu0
        %v2848 = vadd.f32 %v2670, %v2847
        %2849 = vmatmul.f32.gmra.mxu0 %v2738
        %v2850 = vpop.f32.mrf.mxu0
        %v2851 = vadd.f32 %v2670, %v2850
        %2852 = vmatmul.f32.gmra.mxu0 %v2741
        %v2853 = vpop.f32.mrf.mxu0
        %v2854 = vadd.f32 %v2670, %v2853
        %2855 = vmatmul.f32.gmra.mxu0 %v2744
        %v2856 = vpop.f32.mrf.mxu0
        %v2857 = vadd.f32 %v2670, %v2856
        %2858 = vmatmul.f32.gmra.mxu0 %v2747
        %v2859 = vpop.f32.mrf.mxu0
        %v2860 = vadd.f32 %v2670, %v2859
        %2861 = vmatmul.f32.gmra.mxu0 %v2750
        %v2862 = vpop.f32.mrf.mxu0
        %v2863 = vadd.f32 %v2670, %v2862
        %2864 = vmatmul.f32.gmra.mxu0 %v2753
        %v2865 = vpop.f32.mrf.mxu0
        %v2866 = vadd.f32 %v2670, %v2865
        %2867 = vmatmul.f32.gmra.mxu0 %v2756
        %v2868 = vpop.f32.mrf.mxu0
        %v2869 = vadd.f32 %v2670, %v2868
        %2870 = vmatmul.f32.gmra.mxu0 %v2759
        %v2871 = vpop.f32.mrf.mxu0
        %v2872 = vadd.f32 %v2670, %v2871
        %2873 = vmatmul.f32.gmra.mxu0 %v2762
        %v2874 = vpop.f32.mrf.mxu0
        %v2875 = vadd.f32 %v2670, %v2874
        %2876 = vmatmul.f32.gmra.mxu0 %v2765
        %v2877 = vpop.f32.mrf.mxu0
        %v2878 = vadd.f32 %v2670, %v2877
        %2879 = vdwg.mxu0
        %v2880 = vmax.f32 %v2785, 0.0
        %v2881 = vmax.f32 %v2788, 0.0
        %v2882 = vmax.f32 %v2791, 0.0
        %v2883 = vmax.f32 %v2794, 0.0
        %v2884 = vmax.f32 %v2797, 0.0
        %v2885 = vmax.f32 %v2800, 0.0
        %v2886 = vmax.f32 %v2803, 0.0
        %v2887 = vmax.f32 %v2806, 0.0
        %v2888 = vmax.f32 %v2809, 0.0
        %v2889 = vmax.f32 %v2812, 0.0
        %v2890 = vmax.f32 %v2815, 0.0
        %v2891 = vmax.f32 %v2818, 0.0
        %v2892 = vmax.f32 %v2821, 0.0
        %v2893 = vmax.f32 %v2824, 0.0
        %v2894 = vmax.f32 %v2827, 0.0
        %v2895 = vmax.f32 %v2830, 0.0
        %v2896 = vmax.f32 %v2833, 0.0
        %v2897 = vmax.f32 %v2836, 0.0
        %v2898 = vmax.f32 %v2839, 0.0
        %v2899 = vmax.f32 %v2842, 0.0
        %v2900 = vmax.f32 %v2845, 0.0
        %v2901 = vmax.f32 %v2848, 0.0
        %v2902 = vmax.f32 %v2851, 0.0
        %v2903 = vmax.f32 %v2854, 0.0
        %v2904 = vmax.f32 %v2857, 0.0
        %v2905 = vmax.f32 %v2860, 0.0
        %v2906 = vmax.f32 %v2863, 0.0
        %v2907 = vmax.f32 %v2866, 0.0
        %v2908 = vmax.f32 %v2869, 0.0
        %v2909 = vmax.f32 %v2872, 0.0
        %v2910 = vmax.f32 %v2875, 0.0
        %v2911 = vmax.f32 %v2878, 0.0
        %v2912 = vld [vmem:[%s7] sm:$0xff]
        %v2913 = vld [vmem:[%s7 + $0x8] sm:$0xff]
        %v2914 = vld [vmem:[%s7 + $0x10] sm:$0xff]
        %v2915 = vld [vmem:[%s7 + $0x18] sm:$0xff]
        %v2916 = vld [vmem:[%s7 + $0x20] sm:$0xff]
        %v2917 = vld [vmem:[%s7 + $0x28] sm:$0xff]
        %v2918 = vld [vmem:[%s7 + $0x30] sm:$0xff]
        %v2919 = vld [vmem:[%s7 + $0x38] sm:$0xff]
        %2920 = vmatpush.msra.mxu0 0.0
        %2921 = vmatpush.msra.mxu0 0.0
        %2922 = vmatpush.msra.mxu0 0.0
        %2923 = vmatpush.msra.mxu0 0.0
        %2924 = vmatpush.msra.mxu0 0.0
        %2925 = vmatpush.msra.mxu0 0.0
        %2926 = vmatpush.msra.mxu0 0.0
        %2927 = vmatpush.msra.mxu0 0.0
        %2928 = vmatpush.msra.mxu0 0.0
        %2929 = vmatpush.msra.mxu0 0.0
        %2930 = vmatpush.msra.mxu0 0.0
        %2931 = vmatpush.msra.mxu0 0.0
        %2932 = vmatpush.msra.mxu0 %v2919
        %2933 = vmatpush.msra.mxu0 %v2918
        %2934 = vmatpush.msra.mxu0 %v2917
        %2935 = vmatpush.msra.mxu0 %v2916
        %2936 = vmatmul.f32.gmra.mxu0 %v600
        %v2937 = vpop.f32.mrf.mxu0
        %v2938 = vadd.f32 0.0, %v2937
        %2939 = vmatmul.f32.gmra.mxu0 %v603
        %v2940 = vpop.f32.mrf.mxu0
        %v2941 = vadd.f32 0.0, %v2940
        %2942 = vmatmul.f32.gmra.mxu0 %v606
        %v2943 = vpop.f32.mrf.mxu0
        %v2944 = vadd.f32 0.0, %v2943
        %2945 = vmatmul.f32.gmra.mxu0 %v609
        %v2946 = vpop.f32.mrf.mxu0
        %v2947 = vadd.f32 0.0, %v2946
        %2948 = vmatmul.f32.gmra.mxu0 %v612
        %v2949 = vpop.f32.mrf.mxu0
        %v2950 = vadd.f32 0.0, %v2949
        %2951 = vmatmul.f32.gmra.mxu0 %v615
        %v2952 = vpop.f32.mrf.mxu0
        %v2953 = vadd.f32 0.0, %v2952
        %2954 = vmatmul.f32.gmra.mxu0 %v618
        %v2955 = vpop.f32.mrf.mxu0
        %v2956 = vadd.f32 0.0, %v2955
        %2957 = vmatmul.f32.gmra.mxu0 %v621
        %v2958 = vpop.f32.mrf.mxu0
        %v2959 = vadd.f32 0.0, %v2958
        %2960 = vmatmul.f32.gmra.mxu0 %v624
        %v2961 = vpop.f32.mrf.mxu0
        %v2962 = vadd.f32 0.0, %v2961
        %2963 = vmatmul.f32.gmra.mxu0 %v627
        %v2964 = vpop.f32.mrf.mxu0
        %v2965 = vadd.f32 0.0, %v2964
        %2966 = vmatmul.f32.gmra.mxu0 %v630
        %v2967 = vpop.f32.mrf.mxu0
        %v2968 = vadd.f32 0.0, %v2967
        %2969 = vmatmul.f32.gmra.mxu0 %v633
        %v2970 = vpop.f32.mrf.mxu0
        %v2971 = vadd.f32 0.0, %v2970
        %2972 = vmatmul.f32.gmra.mxu0 %v636
        %v2973 = vpop.f32.mrf.mxu0
        %v2974 = vadd.f32 0.0, %v2973
        %2975 = vmatmul.f32.gmra.mxu0 %v639
        %v2976 = vpop.f32.mrf.mxu0
        %v2977 = vadd.f32 0.0, %v2976
        %2978 = vmatmul.f32.gmra.mxu0 %v642
        %v2979 = vpop.f32.mrf.mxu0
        %v2980 = vadd.f32 0.0, %v2979
        %2981 = vmatmul.f32.gmra.mxu0 %v645
        %v2982 = vpop.f32.mrf.mxu0
        %v2983 = vadd.f32 0.0, %v2982
        %2984 = vmatmul.f32.gmra.mxu0 %v648
        %v2985 = vpop.f32.mrf.mxu0
        %v2986 = vadd.f32 0.0, %v2985
        %2987 = vmatmul.f32.gmra.mxu0 %v651
        %v2988 = vpop.f32.mrf.mxu0
        %v2989 = vadd.f32 0.0, %v2988
        %2990 = vmatmul.f32.gmra.mxu0 %v654
        %v2991 = vpop.f32.mrf.mxu0
        %v2992 = vadd.f32 0.0, %v2991
        %2993 = vmatmul.f32.gmra.mxu0 %v657
        %v2994 = vpop.f32.mrf.mxu0
        %v2995 = vadd.f32 0.0, %v2994
        %2996 = vmatmul.f32.gmra.mxu0 %v660
        %v2997 = vpop.f32.mrf.mxu0
        %v2998 = vadd.f32 0.0, %v2997
        %2999 = vmatmul.f32.gmra.mxu0 %v663
        %v3000 = vpop.f32.mrf.mxu0
        %v3001 = vadd.f32 0.0, %v3000
        %3002 = vmatmul.f32.gmra.mxu0 %v666
        %v3003 = vpop.f32.mrf.mxu0
        %v3004 = vadd.f32 0.0, %v3003
        %3005 = vmatmul.f32.gmra.mxu0 %v669
        %v3006 = vpop.f32.mrf.mxu0
        %v3007 = vadd.f32 0.0, %v3006
        %3008 = vmatmul.f32.gmra.mxu0 %v672
        %v3009 = vpop.f32.mrf.mxu0
        %v3010 = vadd.f32 0.0, %v3009
        %3011 = vmatmul.f32.gmra.mxu0 %v675
        %v3012 = vpop.f32.mrf.mxu0
        %v3013 = vadd.f32 0.0, %v3012
        %3014 = vmatmul.f32.gmra.mxu0 %v678
        %v3015 = vpop.f32.mrf.mxu0
        %v3016 = vadd.f32 0.0, %v3015
        %3017 = vmatmul.f32.gmra.mxu0 %v681
        %v3018 = vpop.f32.mrf.mxu0
        %v3019 = vadd.f32 0.0, %v3018
        %3020 = vmatmul.f32.gmra.mxu0 %v684
        %v3021 = vpop.f32.mrf.mxu0
        %v3022 = vadd.f32 0.0, %v3021
        %3023 = vmatmul.f32.gmra.mxu0 %v687
        %v3024 = vpop.f32.mrf.mxu0
        %v3025 = vadd.f32 0.0, %v3024
        %3026 = vmatmul.f32.gmra.mxu0 %v690
        %v3027 = vpop.f32.mrf.mxu0
        %v3028 = vadd.f32 0.0, %v3027
        %3029 = vmatmul.f32.gmra.mxu0 %v693
        %v3030 = vpop.f32.mrf.mxu0
        %v3031 = vadd.f32 0.0, %v3030
        %3032 = vdwg.mxu0
        %v3034 = vsel %vm598, %v2880, 0
        %v3037 = vsel %vm598, %v2881, 0
        %v3040 = vsel %vm598, %v2882, 0
        %v3043 = vsel %vm598, %v2883, 0
        %v3046 = vsel %vm598, %v2884, 0
        %v3049 = vsel %vm598, %v2885, 0
        %v3052 = vsel %vm598, %v2886, 0
        %v3055 = vsel %vm598, %v2887, 0
        %v3058 = vsel %vm598, %v2888, 0
        %v3061 = vsel %vm598, %v2889, 0
        %v3064 = vsel %vm598, %v2890, 0
        %v3067 = vsel %vm598, %v2891, 0
        %v3070 = vsel %vm598, %v2892, 0
        %v3073 = vsel %vm598, %v2893, 0
        %v3076 = vsel %vm598, %v2894, 0
        %v3079 = vsel %vm598, %v2895, 0
        %v3082 = vsel %vm598, %v2896, 0
        %v3085 = vsel %vm598, %v2897, 0
        %v3088 = vsel %vm598, %v2898, 0
        %v3091 = vsel %vm598, %v2899, 0
        %v3094 = vsel %vm598, %v2900, 0
        %v3097 = vsel %vm598, %v2901, 0
        %v3100 = vsel %vm598, %v2902, 0
        %v3103 = vsel %vm598, %v2903, 0
        %v3106 = vsel %vm598, %v2904, 0
        %v3109 = vsel %vm598, %v2905, 0
        %v3112 = vsel %vm598, %v2906, 0
        %v3115 = vsel %vm598, %v2907, 0
        %v3118 = vsel %vm598, %v2908, 0
        %v3121 = vsel %vm598, %v2909, 0
        %v3124 = vsel %vm598, %v2910, 0
        %v3127 = vsel %vm598, %v2911, 0
        %3129 = vmatpush.msra.mxu0 0.0
        %3130 = vmatpush.msra.mxu0 0.0
        %3131 = vmatpush.msra.mxu0 0.0
        %3132 = vmatpush.msra.mxu0 0.0
        %3133 = vmatpush.msra.mxu0 0.0
        %3134 = vmatpush.msra.mxu0 0.0
        %3135 = vmatpush.msra.mxu0 0.0
        %3136 = vmatpush.msra.mxu0 0.0
        %3137 = vmatpush.msra.mxu0 0.0
        %3138 = vmatpush.msra.mxu0 0.0
        %3139 = vmatpush.msra.mxu0 0.0
        %3140 = vmatpush.msra.mxu0 0.0
        %3141 = vmatpush.msra.mxu0 %v2915
        %3142 = vmatpush.msra.mxu0 %v2914
        %3143 = vmatpush.msra.mxu0 %v2913
        %3144 = vmatpush.msra.mxu0 %v2912
        %3145 = vmatmul.f32.gmra.mxu0 %v3034
        %v3146 = vpop.f32.mrf.mxu0
        %v3147 = vadd.f32 %v2938, %v3146
        %3148 = vmatmul.f32.gmra.mxu0 %v3037
        %v3149 = vpop.f32.mrf.mxu0
        %v3150 = vadd.f32 %v2941, %v3149
        %3151 = vmatmul.f32.gmra.mxu0 %v3040
        %v3152 = vpop.f32.mrf.mxu0
        %v3153 = vadd.f32 %v2944, %v3152
        %3154 = vmatmul.f32.gmra.mxu0 %v3043
        %v3155 = vpop.f32.mrf.mxu0
        %v3156 = vadd.f32 %v2947, %v3155
        %3157 = vmatmul.f32.gmra.mxu0 %v3046
        %v3158 = vpop.f32.mrf.mxu0
        %v3159 = vadd.f32 %v2950, %v3158
        %3160 = vmatmul.f32.gmra.mxu0 %v3049
        %v3161 = vpop.f32.mrf.mxu0
        %v3162 = vadd.f32 %v2953, %v3161
        %3163 = vmatmul.f32.gmra.mxu0 %v3052
        %v3164 = vpop.f32.mrf.mxu0
        %v3165 = vadd.f32 %v2956, %v3164
        %3166 = vmatmul.f32.gmra.mxu0 %v3055
        %v3167 = vpop.f32.mrf.mxu0
        %v3168 = vadd.f32 %v2959, %v3167
        %3169 = vmatmul.f32.gmra.mxu0 %v3058
        %v3170 = vpop.f32.mrf.mxu0
        %v3171 = vadd.f32 %v2962, %v3170
        %3172 = vmatmul.f32.gmra.mxu0 %v3061
        %v3173 = vpop.f32.mrf.mxu0
        %v3174 = vadd.f32 %v2965, %v3173
        %3175 = vmatmul.f32.gmra.mxu0 %v3064
        %v3176 = vpop.f32.mrf.mxu0
        %v3177 = vadd.f32 %v2968, %v3176
        %3178 = vmatmul.f32.gmra.mxu0 %v3067
        %v3179 = vpop.f32.mrf.mxu0
        %v3180 = vadd.f32 %v2971, %v3179
        %3181 = vmatmul.f32.gmra.mxu0 %v3070
        %v3182 = vpop.f32.mrf.mxu0
        %v3183 = vadd.f32 %v2974, %v3182
        %3184 = vmatmul.f32.gmra.mxu0 %v3073
        %v3185 = vpop.f32.mrf.mxu0
        %v3186 = vadd.f32 %v2977, %v3185
        %3187 = vmatmul.f32.gmra.mxu0 %v3076
        %v3188 = vpop.f32.mrf.mxu0
        %v3189 = vadd.f32 %v2980, %v3188
        %3190 = vmatmul.f32.gmra.mxu0 %v3079
        %v3191 = vpop.f32.mrf.mxu0
        %v3192 = vadd.f32 %v2983, %v3191
        %3193 = vmatmul.f32.gmra.mxu0 %v3082
        %v3194 = vpop.f32.mrf.mxu0
        %v3195 = vadd.f32 %v2986, %v3194
        %3196 = vmatmul.f32.gmra.mxu0 %v3085
        %v3197 = vpop.f32.mrf.mxu0
        %v3198 = vadd.f32 %v2989, %v3197
        %3199 = vmatmul.f32.gmra.mxu0 %v3088
        %v3200 = vpop.f32.mrf.mxu0
        %v3201 = vadd.f32 %v2992, %v3200
        %3202 = vmatmul.f32.gmra.mxu0 %v3091
        %v3203 = vpop.f32.mrf.mxu0
        %v3204 = vadd.f32 %v2995, %v3203
        %3205 = vmatmul.f32.gmra.mxu0 %v3094
        %v3206 = vpop.f32.mrf.mxu0
        %v3207 = vadd.f32 %v2998, %v3206
        %3208 = vmatmul.f32.gmra.mxu0 %v3097
        %v3209 = vpop.f32.mrf.mxu0
        %v3210 = vadd.f32 %v3001, %v3209
        %3211 = vmatmul.f32.gmra.mxu0 %v3100
        %v3212 = vpop.f32.mrf.mxu0
        %v3213 = vadd.f32 %v3004, %v3212
        %3214 = vmatmul.f32.gmra.mxu0 %v3103
        %v3215 = vpop.f32.mrf.mxu0
        %v3216 = vadd.f32 %v3007, %v3215
        %3217 = vmatmul.f32.gmra.mxu0 %v3106
        %v3218 = vpop.f32.mrf.mxu0
        %v3219 = vadd.f32 %v3010, %v3218
        %3220 = vmatmul.f32.gmra.mxu0 %v3109
        %v3221 = vpop.f32.mrf.mxu0
        %v3222 = vadd.f32 %v3013, %v3221
        %3223 = vmatmul.f32.gmra.mxu0 %v3112
        %v3224 = vpop.f32.mrf.mxu0
        %v3225 = vadd.f32 %v3016, %v3224
        %3226 = vmatmul.f32.gmra.mxu0 %v3115
        %v3227 = vpop.f32.mrf.mxu0
        %v3228 = vadd.f32 %v3019, %v3227
        %3229 = vmatmul.f32.gmra.mxu0 %v3118
        %v3230 = vpop.f32.mrf.mxu0
        %v3231 = vadd.f32 %v3022, %v3230
        %3232 = vmatmul.f32.gmra.mxu0 %v3121
        %v3233 = vpop.f32.mrf.mxu0
        %v3234 = vadd.f32 %v3025, %v3233
        %3235 = vmatmul.f32.gmra.mxu0 %v3124
        %v3236 = vpop.f32.mrf.mxu0
        %v3237 = vadd.f32 %v3028, %v3236
        %3238 = vmatmul.f32.gmra.mxu0 %v3127
        %v3239 = vpop.f32.mrf.mxu0
        %v3240 = vadd.f32 %v3031, %v3239
        %3241 = vdwg.mxu0
        %v3242 = vperm.slane %v544, 0
        %v3243 = vadd.f32 %v3147, %v3242
        %v3244 = vadd.f32 %v3150, %v3242
        %v3245 = vadd.f32 %v3153, %v3242
        %v3246 = vadd.f32 %v3156, %v3242
        %v3247 = vadd.f32 %v3159, %v3242
        %v3248 = vadd.f32 %v3162, %v3242
        %v3249 = vadd.f32 %v3165, %v3242
        %v3250 = vadd.f32 %v3168, %v3242
        %v3251 = vadd.f32 %v3171, %v3242
        %v3252 = vadd.f32 %v3174, %v3242
        %v3253 = vadd.f32 %v3177, %v3242
        %v3254 = vadd.f32 %v3180, %v3242
        %v3255 = vadd.f32 %v3183, %v3242
        %v3256 = vadd.f32 %v3186, %v3242
        %v3257 = vadd.f32 %v3189, %v3242
        %v3258 = vadd.f32 %v3192, %v3242
        %v3259 = vadd.f32 %v3195, %v3242
        %v3260 = vadd.f32 %v3198, %v3242
        %v3261 = vadd.f32 %v3201, %v3242
        %v3262 = vadd.f32 %v3204, %v3242
        %v3263 = vadd.f32 %v3207, %v3242
        %v3264 = vadd.f32 %v3210, %v3242
        %v3265 = vadd.f32 %v3213, %v3242
        %v3266 = vadd.f32 %v3216, %v3242
        %v3267 = vadd.f32 %v3219, %v3242
        %v3268 = vadd.f32 %v3222, %v3242
        %v3269 = vadd.f32 %v3225, %v3242
        %v3270 = vadd.f32 %v3228, %v3242
        %v3271 = vadd.f32 %v3231, %v3242
        %v3272 = vadd.f32 %v3234, %v3242
        %v3273 = vadd.f32 %v3237, %v3242
        %v3274 = vadd.f32 %v3240, %v3242
        %v3275 = vmax.f32 %v3243, 0.0
        %v3276 = vmax.f32 %v3244, 0.0
        %v3277 = vmax.f32 %v3245, 0.0
        %v3278 = vmax.f32 %v3246, 0.0
        %v3279 = vmax.f32 %v3247, 0.0
        %v3280 = vmax.f32 %v3248, 0.0
        %v3281 = vmax.f32 %v3249, 0.0
        %v3282 = vmax.f32 %v3250, 0.0
        %v3283 = vmax.f32 %v3251, 0.0
        %v3284 = vmax.f32 %v3252, 0.0
        %v3285 = vmax.f32 %v3253, 0.0
        %v3286 = vmax.f32 %v3254, 0.0
        %v3287 = vmax.f32 %v3255, 0.0
        %v3288 = vmax.f32 %v3256, 0.0
        %v3289 = vmax.f32 %v3257, 0.0
        %v3290 = vmax.f32 %v3258, 0.0
        %v3291 = vmax.f32 %v3259, 0.0
        %v3292 = vmax.f32 %v3260, 0.0
        %v3293 = vmax.f32 %v3261, 0.0
        %v3294 = vmax.f32 %v3262, 0.0
        %v3295 = vmax.f32 %v3263, 0.0
        %v3296 = vmax.f32 %v3264, 0.0
        %v3297 = vmax.f32 %v3265, 0.0
        %v3298 = vmax.f32 %v3266, 0.0
        %v3299 = vmax.f32 %v3267, 0.0
        %v3300 = vmax.f32 %v3268, 0.0
        %v3301 = vmax.f32 %v3269, 0.0
        %v3302 = vmax.f32 %v3270, 0.0
        %v3303 = vmax.f32 %v3271, 0.0
        %v3304 = vmax.f32 %v3272, 0.0
        %v3305 = vmax.f32 %v3273, 0.0
        %v3306 = vmax.f32 %v3274, 0.0
        %3307 = vst [vmem:[%s527] sm:$0xff] %v3275
        %3308 = vst [vmem:[%s527 + $0x8] sm:$0xff] %v3276
        %3309 = vst [vmem:[%s527 + $0x10] sm:$0xff] %v3277
        %3310 = vst [vmem:[%s527 + $0x18] sm:$0xff] %v3278
        %3311 = vst [vmem:[%s527 + $0x20] sm:$0xff] %v3279
        %3312 = vst [vmem:[%s527 + $0x28] sm:$0xff] %v3280
        %3313 = vst [vmem:[%s527 + $0x30] sm:$0xff] %v3281
        %3314 = vst [vmem:[%s527 + $0x38] sm:$0xff] %v3282
        %3315 = vst [vmem:[%s527 + $0x40] sm:$0xff] %v3283
        %3316 = vst [vmem:[%s527 + $0x48] sm:$0xff] %v3284
        %3317 = vst [vmem:[%s527 + $0x50] sm:$0xff] %v3285
        %3318 = vst [vmem:[%s527 + $0x58] sm:$0xff] %v3286
        %3319 = vst [vmem:[%s527 + $0x60] sm:$0xff] %v3287
        %3320 = vst [vmem:[%s527 + $0x68] sm:$0xff] %v3288
        %3321 = vst [vmem:[%s527 + $0x70] sm:$0xff] %v3289
        %3322 = vst [vmem:[%s527 + $0x78] sm:$0xff] %v3290
        %3323 = vst [vmem:[%s527 + $0x80] sm:$0xff] %v3291
        %3324 = vst [vmem:[%s527 + $0x88] sm:$0xff] %v3292
        %3325 = vst [vmem:[%s527 + $0x90] sm:$0xff] %v3293
        %3326 = vst [vmem:[%s527 + $0x98] sm:$0xff] %v3294
        %3327 = vst [vmem:[%s527 + $0xa0] sm:$0xff] %v3295
        %3328 = vst [vmem:[%s527 + $0xa8] sm:$0xff] %v3296
        %3329 = vst [vmem:[%s527 + $0xb0] sm:$0xff] %v3297
        %3330 = vst [vmem:[%s527 + $0xb8] sm:$0xff] %v3298
        %3331 = vst [vmem:[%s527 + $0xc0] sm:$0xff] %v3299
        %3332 = vst [vmem:[%s527 + $0xc8] sm:$0xff] %v3300
        %3333 = vst [vmem:[%s527 + $0xd0] sm:$0xff] %v3301
        %3334 = vst [vmem:[%s527 + $0xd8] sm:$0xff] %v3302
        %3335 = vst [vmem:[%s527 + $0xe0] sm:$0xff] %v3303
        %3336 = vst [vmem:[%s527 + $0xe8] sm:$0xff] %v3304
        %3337 = vst [vmem:[%s527 + $0xf0] sm:$0xff] %v3305
        %3338 = vst [vmem:[%s527 + $0xf8] sm:$0xff] %v3306
        %s3339 = sand.u32 %s246, 1
        %s3340 = scalar_lea.sflag [#allocation4], %s3339
        %s3341 = sand.u32 %s246, 1
        %s3342 = smul.addr %s3341, 256
        %s3343 = scalar_lea.vmem [#allocation3], %s3342
        // Predicated region
        $region95: #{tpu_custom_call.1} parent=89 // pred_check
          %p3344 = pneg %p256
        $region96: #{tpu_custom_call.1} parent=89 // pred_check_branch
          %3346 = sbr.rel (%p3344) target = $region98
        $region97: #{tpu_custom_call.1} parent=89 // pred_region
          #allocation6 [shape = 'u32[6]{0}', space=smem, size = 0x18, scoped, tag = 'DMA stride descriptor']
          %s3347 = smul.u32 2, %s27
          %s3348 = smul.u32 16, %s28
          %3350 = vsyncadd %s3340, 0
          %s3351 = smul.addr %s3347, 32
          %s3352 = sadd.s32 %s3348, %s3351
          %s3353 = smul.addr %s3352, 8
          %s3354 = scalar_lea.hbm %s9, %s3353
          %s3356 = sshll.u32 1, 14
          %s3357 = sxor.u32 4294967295, %s3356
          %s3360 = sshll.u32 7, 18
          %s3361 = sxor.u32 4294967295, %s3360
          %s3362 = sand.u32 0, %s3361
          %s3364 = sor.u32 %s3362, 0
          %s3365 = sshll.u32 %s3343, 4
          %s3366 = int_to_ptr.vmem [resolvable:$true] %s3365
          %s3367 = sshll.u32 %s3354, 4
          %s3368 = int_to_ptr.hbm [resolvable:$true] %s3367
          %3374 = sst [smem:[#allocation6]] 2048
          %s3375 = scalar_lea.smem [#allocation6], 1
          %3376 = sst [smem:[%s3375]] 4096
          %s3377 = scalar_lea.smem [#allocation6], 2
          %3378 = sst [smem:[%s3377]] 16
          %s3379 = scalar_lea.smem [#allocation6], 3
          %3380 = sst [smem:[%s3379]] 128
          %s3381 = scalar_lea.smem [#allocation6], 4
          %3382 = sst [smem:[%s3381]] 128
          %s3383 = scalar_lea.smem [#allocation6], 5
          %3384 = sst [smem:[%s3383]] 8
          %3386 = dma.general %s3366, 4096, %s3368, %s3340, [#allocation5], [#allocation6], %s3364, 0
        $region98: #{tpu_custom_call.1} parent=89 // pred_fallthru
          _
      $region90: #{tpu_custom_call.1} parent=5 // pred_fallthru
        _
      %p3387 = scmp.le.s32.totalorder 2, %s18
      // Predicated region
      $region99: #{tpu_custom_call.1} parent=5 // pred_check
        %p3388 = pneg %p3387
      $region100: #{tpu_custom_call.1} parent=5 // pred_check_branch
        %3390 = sbr.rel (%p3388) target = $region102
      $region101: #{tpu_custom_call.1} parent=5 // pred_region
        %s3391 = ssub.s32 %s18, 2
        // Predicated region
        $region103: #{tpu_custom_call.1} parent=101 // pred_check
          %p3392 = pneg %p262
        $region104: #{tpu_custom_call.1} parent=101 // pred_check_branch
          %3394 = sbr.rel (%p3392) target = $region106
        $region105: #{tpu_custom_call.1} parent=101 // pred_region
          %s3395 = sand.u32 %s247, 1
          %s3396 = scalar_lea.sflag [#allocation4], %s3395
          %s3397 = sand.u32 %s247, 1
          %s3398 = smul.addr %s3397, 256
          %s3399 = scalar_lea.vmem [#allocation3], %s3398
          %3401 = dma.done %s3396, 4096
        $region106: #{tpu_custom_call.1} parent=101 // pred_fallthru
          _
      $region102: #{tpu_custom_call.1} parent=5 // pred_fallthru
        _
    $region6: #{tpu_custom_call.1} parent=1 // loop_footer
      %s22 = sadd.s32 1, %s18
    $region7: #{tpu_custom_call.1} parent=1 // loop_footer_branch
      %17 = sbr.rel target = $region3
    $region8: #{tpu_custom_call.1} parent=1 // loop_exit
      _
    %3402 = vsyncpa [#allocation4], 1
    %s3403 = scalar_lea.sflag [#allocation4], 1
    %3404 = vsyncpa %s3403, 1

</llo_original>
